<compile_context>
chip_gen: v5e
topology: v5e:2x2
jax: 0.10.0
libtpu: 0.0.40
codegen_flags: <defaults>
</compile_context>

<pallas_src>
import jax
import jax.numpy as jnp
from jax.experimental import pallas as pl
from jax.experimental.pallas import tpu as pltpu

D_IN, D1, D2, D3, D_OUT = 4096, 1024, 256, 64, 7
D1H = D1 // 2           # fc1 output half handled per "parallel" grid index

# fc1 contraction tile: D_IN/TK reduction steps per half.  2048 keeps the
# double-buffered W1 half-tile at 2 MiB (bf16) / 4 MiB (f32); 4096 is a valid
# sweep point on v6e/v7x if the one extra step ever shows in a trace.
TK = 2048


def _fc1_kernel(x_ref, w1_ref, b1_ref, h1_ref, acc_ref):
    """Accumulate x[:, kTK:(k+1)TK] @ W1[kTK:(k+1)TK, half] in f32; on the last
    reduction step add bias, apply ReLU and write this half of h1."""
    k = pl.program_id(2)

    @pl.when(k == 0)
    def _():
        acc_ref[...] = jnp.zeros_like(acc_ref)

    acc_ref[...] += jnp.dot(x_ref[...].astype(w1_ref.dtype), w1_ref[...],
                            preferred_element_type=jnp.float32)

    # Output block index is constant over k: only write on the final step.
    @pl.when(k == pl.num_programs(2) - 1)
    def _():
        h1_ref[...] = jnp.maximum(acc_ref[...] + b1_ref[...],
                                  0.0).astype(h1_ref.dtype)


def _tail_kernel(h1_ref, w2_ref, b2_ref, w3_ref, b3_ref, w4_ref, b4_ref,
                 o_ref):
    """fc2/fc3/fc4 (+ReLUs) entirely in VMEM; <2% of the model's bytes/FLOPs."""
    h2 = jnp.maximum(
        jnp.dot(h1_ref[...].astype(w2_ref.dtype), w2_ref[...],
                preferred_element_type=jnp.float32) + b2_ref[...], 0.0)
    h3 = jnp.maximum(
        jnp.dot(h2.astype(w3_ref.dtype), w3_ref[...],
                preferred_element_type=jnp.float32) + b3_ref[...], 0.0)
    logits = (jnp.dot(h3.astype(w4_ref.dtype), w4_ref[...],
                      preferred_element_type=jnp.float32) + b4_ref[...])
    o_ref[...] = logits.astype(o_ref.dtype)


def classifier_forward(x, params, *, tk=TK, tm=None):
    (w1, b1), (w2, b2), (w3, b3), (w4, b4) = params
    B = x.shape[0]
    assert x.shape[1] == D_IN
    assert D_IN % tk == 0
    n_k = D_IN // tk

    if tm is None:
        tm = B if B <= 256 else 256      # batch (M) tile for large batches
    assert B % tm == 0, f"batch {B} must be divisible by tm={tm}"
    n_m = B // tm

    # biases as f32 (1, N) rows for clean VMEM layout / broadcasting
    b1r, b2r, b3r, b4r = (b.astype(jnp.float32).reshape(1, -1)
                          for b in (b1, b2, b3, b4))

    # ---- kernel 1: fc1 (HBM-bandwidth bound on the W1 stream) --------------
    xb, wb = x.dtype.itemsize, w1.dtype.itemsize
    # double-buffered x / W1-half / b1 / h1 blocks + the f32 accumulator,
    # with ~2x headroom, clamped to [16 MiB, 32 MiB] so we never reserve more
    # than half of v7x's 64 MiB per-core VMEM.
    k1_need = (2 * (tm * tk * xb + tk * D1H * wb + D1H * 4 + tm * D1H * 4)
               + tm * D1H * 4)
    k1_vmem = min(max(2 * k1_need, 16 << 20), 32 << 20)

    fc1_cost = pl.CostEstimate(
        flops=2 * B * D_IN * D1, transcendentals=0,
        bytes_accessed=(2 * int(x.size) * xb        # x re-read once per half
                        + int(w1.size) * wb + D1 * 4 + B * D1 * 4))

    h1 = pl.pallas_call(
        _fc1_kernel,
        out_shape=jax.ShapeDtypeStruct((B, D1), jnp.float32),
        grid_spec=pltpu.PrefetchScalarGridSpec(
            num_scalar_prefetch=0,
            grid=(2, n_m, n_k),                      # (D1 half, batch, K)
            in_specs=[
                pl.BlockSpec((tm, tk), lambda h, m, k: (m, k)),    # x
                pl.BlockSpec((tk, D1H), lambda h, m, k: (k, h)),   # W1 half
                pl.BlockSpec((1, D1H), lambda h, m, k: (0, h)),    # b1 half
            ],
            out_specs=pl.BlockSpec((tm, D1H), lambda h, m, k: (m, h)),
            scratch_shapes=[pltpu.VMEM((tm, D1H), jnp.float32)]),
        cost_estimate=fc1_cost,
        compiler_params=pltpu.CompilerParams(
            # Leading "parallel" half-axis: on v7x each TensorCore streams its
            # own half of W1; the K axis carries the accumulator ("arbitrary").
            dimension_semantics=("parallel", "parallel", "arbitrary"),
            vmem_limit_bytes=int(k1_vmem)),
    )(x, w1, b1r)

    # ---- kernel 2: fc2..fc4 tail (tiny, fully VMEM-resident) ---------------
    tail_cost = pl.CostEstimate(
        flops=2 * B * (D1 * D2 + D2 * D3 + D3 * D_OUT), transcendentals=0,
        bytes_accessed=(B * D1 * 4
                        + int(w2.size) * w2.dtype.itemsize
                        + int(w3.size) * w3.dtype.itemsize
                        + int(w4.size) * w4.dtype.itemsize
                        + (D2 + D3 + D_OUT) * 4 + B * D_OUT * 4))

    out = pl.pallas_call(
        _tail_kernel,
        out_shape=jax.ShapeDtypeStruct((B, D_OUT), jnp.float32),
        grid_spec=pltpu.PrefetchScalarGridSpec(
            num_scalar_prefetch=0,
            grid=(n_m,),
            in_specs=[
                pl.BlockSpec((tm, D1), lambda m: (m, 0)),       # h1
                pl.BlockSpec((D1, D2), lambda m: (0, 0)),       # W2 (resident)
                pl.BlockSpec((1, D2), lambda m: (0, 0)),        # b2
                pl.BlockSpec((D2, D3), lambda m: (0, 0)),       # W3
                pl.BlockSpec((1, D3), lambda m: (0, 0)),        # b3
                pl.BlockSpec((D3, D_OUT), lambda m: (0, 0)),    # W4 (full)
                pl.BlockSpec((1, D_OUT), lambda m: (0, 0)),     # b4
            ],
            out_specs=pl.BlockSpec((tm, D_OUT), lambda m: (m, 0))),
        cost_estimate=tail_cost,
        compiler_params=pltpu.CompilerParams(
            dimension_semantics=("parallel",)),
    )(h1, w2, b2r, w3, b3r, w4, b4r)

    return out


def init_params(key, weights_dtype=jnp.bfloat16):
    """Deterministic init mimicking PyTorch Linear default (uniform +-1/sqrt(fan_in)).
    Weights stored as [in_features, out_features] (PyTorch weight.T); biases f32.
    bf16 weights are the default production path (halves W1 HBM traffic)."""
    dims = [(D_IN, D1), (D1, D2), (D2, D3), (D3, D_OUT)]
    params = []
    for i, (fan_in, fan_out) in enumerate(dims):
        kw, kb = jax.random.split(jax.random.fold_in(key, i))
        bound = 1.0 / (fan_in ** 0.5)
        w = jax.random.uniform(kw, (fan_in, fan_out), jnp.float32,
                               minval=-bound, maxval=bound).astype(weights_dtype)
        b = jax.random.uniform(kb, (fan_out,), jnp.float32,
                               minval=-bound, maxval=bound)
        params.append((w, b))
    return params


def classifier_ref(x, params):
    """Plain-JAX reference with the same dtype semantics as the kernels
    (operands in weight dtype, f32 accumulation, f32 bias/activations)."""
    h = x
    for i, (w, b) in enumerate(params):
        h = jnp.dot(h.astype(w.dtype), w,
                    preferred_element_type=jnp.float32) + b.astype(jnp.float32)
        if i < 3:
            h = jnp.maximum(h, 0.0)
    return h


if __name__ == "__main__":
    key = jax.random.PRNGKey(0)
    kx, kp = jax.random.split(key)

    B = 8
    x = jax.random.normal(kx, (B, D_IN), jnp.float32)

    fwd = jax.jit(classifier_forward)

    # --- bf16 weight streaming (default production path), f32 accumulation ---
    params_bf16 = init_params(kp)                    # bf16 weights, f32 biases
    out_bf16 = jax.block_until_ready(fwd(x, params_bf16))
    ref_bf16 = classifier_ref(x, params_bf16)
    assert out_bf16.shape == (B, D_OUT), out_bf16.shape
    assert jnp.allclose(out_bf16, ref_bf16, atol=5e-2, rtol=5e-2), \
        float(jnp.max(jnp.abs(out_bf16 - ref_bf16)))

    # --- f32 weights: exact-semantics check against the reference -----------
    params_f32 = init_params(kp, jnp.float32)
    out_f32 = jax.block_until_ready(fwd(x, params_f32))
    ref_f32 = classifier_ref(x, params_f32)
    assert out_f32.shape == (B, D_OUT), out_f32.shape
    assert jnp.allclose(out_f32, ref_f32, atol=1e-4, rtol=1e-4), \
        float(jnp.max(jnp.abs(out_f32 - ref_f32)))

    print("KERNEL_OK")
</pallas_src>

<mosaic_0001>
module attributes {stable_mosaic.version = 11 : i64} {
  func.func @_fc1_kernel(%arg0: i32, %arg1: i32, %arg2: i32, %arg3: memref<8x2048xf32, #tpu.memory_space<vmem>>, %arg4: memref<2048x512xbf16, #tpu.memory_space<vmem>>, %arg5: memref<1x512xf32, #tpu.memory_space<vmem>>, %arg6: memref<8x512xf32, #tpu.memory_space<vmem>>, %arg7: memref<8x512xf32, #tpu.memory_space<vmem>>) attributes {dimension_semantics = [#tpu.dimension_semantics<parallel>, #tpu.dimension_semantics<parallel>, #tpu.dimension_semantics<arbitrary>], iteration_bounds = array<i64: 2, 1, 2>, scalar_prefetch = 0 : i64, scratch_operands = 1 : i64, tpu.core_type = #tpu.core_type<tc>, window_params = [{transform_indices = @transform_0, window_bounds = array<i64: 8, 2048>}, {transform_indices = @transform_1, window_bounds = array<i64: 2048, 512>}, {transform_indices = @transform_2, window_bounds = array<i64: 1, 512>}, {transform_indices = @transform_3, window_bounds = array<i64: 8, 512>}]} {
    %c0_i32 = arith.constant 0 : i32
    %0 = arith.cmpi eq, %arg2, %c0_i32 : i32
    %1 = arith.extui %0 : i1 to i32
    %c0_i32_0 = arith.constant 0 : i32
    %2 = arith.cmpi ne, %1, %c0_i32_0 : i32
    scf.if %2 {
      %cst_9 = arith.constant 0.000000e+00 : f32
      %13 = vector.broadcast %cst_9 : f32 to vector<8x512xf32>
      %c0_10 = arith.constant 0 : index
      %c0_11 = arith.constant 0 : index
      %14 = vector.load %arg7[%c0_10, %c0_11] : memref<8x512xf32, #tpu.memory_space<vmem>>, vector<8x512xf32>
      tpu.vector_store %arg7[%c0_10, %c0_11], %13 {strides = array<i32>} : memref<8x512xf32, #tpu.memory_space<vmem>>, vector<8x512xf32>,
    } else {
    }
    %c0 = arith.constant 0 : index
    %c0_1 = arith.constant 0 : index
    %3 = vector.load %arg7[%c0, %c0_1] : memref<8x512xf32, #tpu.memory_space<vmem>>, vector<8x512xf32>
    %c0_2 = arith.constant 0 : index
    %c0_3 = arith.constant 0 : index
    %4 = vector.load %arg3[%c0_2, %c0_3] : memref<8x2048xf32, #tpu.memory_space<vmem>>, vector<8x2048xf32>
    %5 = arith.truncf %4 : vector<8x2048xf32> to vector<8x2048xbf16>
    %c0_4 = arith.constant 0 : index
    %c0_5 = arith.constant 0 : index
    %6 = vector.load %arg4[%c0_4, %c0_5] : memref<2048x512xbf16, #tpu.memory_space<vmem>>, vector<2048x512xbf16>
    %cst = arith.constant dense<0.000000e+00> : vector<8x512xf32>
    %7 = tpu.matmul %5, %6, %cst {dimension_numbers = #tpu.dot_dimension_numbers<[1], [0], [0], [1], [0, 0, 1, 1], [], []>} : vector<8x2048xbf16>, vector<2048x512xbf16>, vector<8x512xf32> -> vector<8x512xf32>
    %8 = arith.addf %3, %7 : vector<8x512xf32>
    %c0_6 = arith.constant 0 : index
    %c0_7 = arith.constant 0 : index
    %9 = vector.load %arg7[%c0_6, %c0_7] : memref<8x512xf32, #tpu.memory_space<vmem>>, vector<8x512xf32>
    tpu.vector_store %arg7[%c0_6, %c0_7], %8 {strides = array<i32>} : memref<8x512xf32, #tpu.memory_space<vmem>>, vector<8x512xf32>,
    %c1_i32 = arith.constant 1 : i32
    %10 = arith.cmpi eq, %arg2, %c1_i32 : i32
    %11 = arith.extui %10 : i1 to i32
    %c0_i32_8 = arith.constant 0 : i32
    %12 = arith.cmpi ne, %11, %c0_i32_8 : i32
    scf.if %12 {
      %c0_9 = arith.constant 0 : index
      %c0_10 = arith.constant 0 : index
      %13 = vector.load %arg7[%c0_9, %c0_10] : memref<8x512xf32, #tpu.memory_space<vmem>>, vector<8x512xf32>
      %c0_11 = arith.constant 0 : index
      %c0_12 = arith.constant 0 : index
      %14 = vector.load %arg5[%c0_11, %c0_12] : memref<1x512xf32, #tpu.memory_space<vmem>>, vector<1x512xf32>
      %15 = vector.broadcast %14 : vector<1x512xf32> to vector<8x512xf32>
      %16 = arith.addf %13, %15 : vector<8x512xf32>
      %cst_13 = arith.constant 0.000000e+00 : f32
      %17 = vector.broadcast %cst_13 : f32 to vector<8x512xf32>
      %18 = arith.maximumf %16, %17 : vector<8x512xf32>
      %c0_14 = arith.constant 0 : index
      %c0_15 = arith.constant 0 : index
      %19 = vector.load %arg6[%c0_14, %c0_15] : memref<8x512xf32, #tpu.memory_space<vmem>>, vector<8x512xf32>
      tpu.vector_store %arg6[%c0_14, %c0_15], %18 {strides = array<i32>} : memref<8x512xf32, #tpu.memory_space<vmem>>, vector<8x512xf32>,
    } else {
    }
    return
  }
  func.func @transform_0(%arg0: i32, %arg1: i32, %arg2: i32) -> (i32, i32) {
    %c0_i32 = arith.constant 0 : i32
    return %arg1, %arg2 : i32, i32
  }
  func.func @transform_1(%arg0: i32, %arg1: i32, %arg2: i32) -> (i32, i32) {
    %c0_i32 = arith.constant 0 : i32
    return %arg2, %arg0 : i32, i32
  }
  func.func @transform_2(%arg0: i32, %arg1: i32, %arg2: i32) -> (i32, i32) {
    %c0_i32 = arith.constant 0 : i32
    %c0_i32_0 = arith.constant 0 : i32
    return %c0_i32, %arg0 : i32, i32
  }
  func.func @transform_3(%arg0: i32, %arg1: i32, %arg2: i32) -> (i32, i32) {
    %c0_i32 = arith.constant 0 : i32
    return %arg1, %arg0 : i32, i32
  }
}

module attributes {stable_mosaic.version = 11 : i64} {
  func.func @_tail_kernel(%arg0: i32, %arg1: memref<8x1024xf32, #tpu.memory_space<vmem>>, %arg2: memref<1024x256xbf16, #tpu.memory_space<vmem>>, %arg3: memref<1x256xf32, #tpu.memory_space<vmem>>, %arg4: memref<256x64xbf16, #tpu.memory_space<vmem>>, %arg5: memref<1x64xf32, #tpu.memory_space<vmem>>, %arg6: memref<64x7xbf16, #tpu.memory_space<vmem>>, %arg7: memref<1x7xf32, #tpu.memory_space<vmem>>, %arg8: memref<8x7xf32, #tpu.memory_space<vmem>>) attributes {dimension_semantics = [#tpu.dimension_semantics<parallel>], iteration_bounds = array<i64: 1>, scalar_prefetch = 0 : i64, scratch_operands = 0 : i64, tpu.core_type = #tpu.core_type<tc>, window_params = [{transform_indices = @transform_0, window_bounds = array<i64: 8, 1024>}, {pipeline_mode = #tpu.pipeline_mode<synchronous>, transform_indices = @transform_1, window_bounds = array<i64: 1024, 256>}, {pipeline_mode = #tpu.pipeline_mode<synchronous>, transform_indices = @transform_2, window_bounds = array<i64: 1, 256>}, {pipeline_mode = #tpu.pipeline_mode<synchronous>, transform_indices = @transform_3, window_bounds = array<i64: 256, 64>}, {pipeline_mode = #tpu.pipeline_mode<synchronous>, transform_indices = @transform_4, window_bounds = array<i64: 1, 64>}, {pipeline_mode = #tpu.pipeline_mode<synchronous>, transform_indices = @transform_5, window_bounds = array<i64: 64, 7>}, {pipeline_mode = #tpu.pipeline_mode<synchronous>, transform_indices = @transform_6, window_bounds = array<i64: 1, 7>}, {transform_indices = @transform_7, window_bounds = array<i64: 8, 7>}]} {
    %c0 = arith.constant 0 : index
    %c0_0 = arith.constant 0 : index
    %0 = vector.load %arg1[%c0, %c0_0] : memref<8x1024xf32, #tpu.memory_space<vmem>>, vector<8x1024xf32>
    %1 = arith.truncf %0 : vector<8x1024xf32> to vector<8x1024xbf16>
    %c0_1 = arith.constant 0 : index
    %c0_2 = arith.constant 0 : index
    %2 = vector.load %arg2[%c0_1, %c0_2] : memref<1024x256xbf16, #tpu.memory_space<vmem>>, vector<1024x256xbf16>
    %cst = arith.constant dense<0.000000e+00> : vector<8x256xf32>
    %3 = tpu.matmul %1, %2, %cst {dimension_numbers = #tpu.dot_dimension_numbers<[1], [0], [0], [1], [0, 0, 1, 1], [], []>} : vector<8x1024xbf16>, vector<1024x256xbf16>, vector<8x256xf32> -> vector<8x256xf32>
    %c0_3 = arith.constant 0 : index
    %c0_4 = arith.constant 0 : index
    %4 = vector.load %arg3[%c0_3, %c0_4] : memref<1x256xf32, #tpu.memory_space<vmem>>, vector<1x256xf32>
    %5 = vector.broadcast %4 : vector<1x256xf32> to vector<8x256xf32>
    %6 = arith.addf %3, %5 : vector<8x256xf32>
    %cst_5 = arith.constant 0.000000e+00 : f32
    %7 = vector.broadcast %cst_5 : f32 to vector<8x256xf32>
    %8 = arith.maximumf %6, %7 : vector<8x256xf32>
    %9 = arith.truncf %8 : vector<8x256xf32> to vector<8x256xbf16>
    %c0_6 = arith.constant 0 : index
    %c0_7 = arith.constant 0 : index
    %10 = vector.load %arg4[%c0_6, %c0_7] : memref<256x64xbf16, #tpu.memory_space<vmem>>, vector<256x64xbf16>
    %cst_8 = arith.constant dense<0.000000e+00> : vector<8x64xf32>
    %11 = tpu.matmul %9, %10, %cst_8 {dimension_numbers = #tpu.dot_dimension_numbers<[1], [0], [0], [1], [0, 0, 1, 1], [], []>} : vector<8x256xbf16>, vector<256x64xbf16>, vector<8x64xf32> -> vector<8x64xf32>
    %c0_9 = arith.constant 0 : index
    %c0_10 = arith.constant 0 : index
    %12 = vector.load %arg5[%c0_9, %c0_10] : memref<1x64xf32, #tpu.memory_space<vmem>>, vector<1x64xf32>
    %13 = vector.broadcast %12 : vector<1x64xf32> to vector<8x64xf32>
    %14 = arith.addf %11, %13 : vector<8x64xf32>
    %cst_11 = arith.constant 0.000000e+00 : f32
    %15 = vector.broadcast %cst_11 : f32 to vector<8x64xf32>
    %16 = arith.maximumf %14, %15 : vector<8x64xf32>
    %17 = arith.truncf %16 : vector<8x64xf32> to vector<8x64xbf16>
    %c0_12 = arith.constant 0 : index
    %c0_13 = arith.constant 0 : index
    %18 = vector.load %arg6[%c0_12, %c0_13] : memref<64x7xbf16, #tpu.memory_space<vmem>>, vector<64x7xbf16>
    %cst_14 = arith.constant dense<0.000000e+00> : vector<8x7xf32>
    %19 = tpu.matmul %17, %18, %cst_14 {dimension_numbers = #tpu.dot_dimension_numbers<[1], [0], [0], [1], [0, 0, 1, 1], [], []>} : vector<8x64xbf16>, vector<64x7xbf16>, vector<8x7xf32> -> vector<8x7xf32>
    %c0_15 = arith.constant 0 : index
    %c0_16 = arith.constant 0 : index
    %20 = vector.load %arg7[%c0_15, %c0_16] : memref<1x7xf32, #tpu.memory_space<vmem>>, vector<1x7xf32>
    %21 = vector.broadcast %20 : vector<1x7xf32> to vector<8x7xf32>
    %22 = arith.addf %19, %21 : vector<8x7xf32>
    %c0_17 = arith.constant 0 : index
    %c0_18 = arith.constant 0 : index
    %23 = vector.load %arg8[%c0_17, %c0_18] : memref<8x7xf32, #tpu.memory_space<vmem>>, vector<8x7xf32>
    tpu.vector_store %arg8[%c0_17, %c0_18], %22 {strides = array<i32>} : memref<8x7xf32, #tpu.memory_space<vmem>>, vector<8x7xf32>,
    return
  }
  func.func @transform_0(%arg0: i32) -> (i32, i32) {
    %c0_i32 = arith.constant 0 : i32
    %c0_i32_0 = arith.constant 0 : i32
    return %arg0, %c0_i32 : i32, i32
  }
  func.func @transform_1(%arg0: i32) -> (i32, i32) {
    %c0_i32 = arith.constant 0 : i32
    %c0_i32_0 = arith.constant 0 : i32
    %c0_i32_1 = arith.constant 0 : i32
    return %c0_i32, %c0_i32_0 : i32, i32
  }
  func.func @transform_2(%arg0: i32) -> (i32, i32) {
    %c0_i32 = arith.constant 0 : i32
    %c0_i32_0 = arith.constant 0 : i32
    %c0_i32_1 = arith.constant 0 : i32
    return %c0_i32, %c0_i32_0 : i32, i32
  }
  func.func @transform_3(%arg0: i32) -> (i32, i32) {
    %c0_i32 = arith.constant 0 : i32
    %c0_i32_0 = arith.constant 0 : i32
    %c0_i32_1 = arith.constant 0 : i32
    return %c0_i32, %c0_i32_0 : i32, i32
  }
  func.func @transform_4(%arg0: i32) -> (i32, i32) {
    %c0_i32 = arith.constant 0 : i32
    %c0_i32_0 = arith.constant 0 : i32
    %c0_i32_1 = arith.constant 0 : i32
    return %c0_i32, %c0_i32_0 : i32, i32
  }
  func.func @transform_5(%arg0: i32) -> (i32, i32) {
    %c0_i32 = arith.constant 0 : i32
    %c0_i32_0 = arith.constant 0 : i32
    %c0_i32_1 = arith.constant 0 : i32
    return %c0_i32, %c0_i32_0 : i32, i32
  }
  func.func @transform_6(%arg0: i32) -> (i32, i32) {
    %c0_i32 = arith.constant 0 : i32
    %c0_i32_0 = arith.constant 0 : i32
    %c0_i32_1 = arith.constant 0 : i32
    return %c0_i32, %c0_i32_0 : i32, i32
  }
  func.func @transform_7(%arg0: i32) -> (i32, i32) {
    %c0_i32 = arith.constant 0 : i32
    %c0_i32_0 = arith.constant 0 : i32
    return %arg0, %c0_i32 : i32, i32
  }
}

</mosaic_0001>

<llo_original>
// kernel: classifier_forward.3
$region0: #{classifier_forward.3}
  #allocation0 [shape = 'u32[]', space=smem, size = 0x4, offset = 0x4, fixed_abs, tag = 'smem constant byte address 0x4 - core index']
  #allocation1 [shape = 'u32[72,128]{1,0:T(1,128)}', space=vmem, size = 0x9000, scoped, tag = 'internal scratch']
  %s0 = inlined_call_operand.vmem [shape: f32[8,1024], index: 0, kind: input, shape index: {}]
  %s1 = inlined_call_operand.vmem [shape: bf16[1024,256], index: 1, kind: input, shape index: {}]
  %s2 = inlined_call_operand.vmem [shape: f32[1,256], index: 2, kind: input, shape index: {}]
  %s3 = inlined_call_operand.vmem [shape: bf16[256,64], index: 3, kind: input, shape index: {}]
  %s4 = inlined_call_operand.vmem [shape: f32[1,64], index: 4, kind: input, shape index: {}]
  %s5 = inlined_call_operand.vmem [shape: bf16[64,7], index: 5, kind: input, shape index: {}]
  %s6 = inlined_call_operand.vmem [shape: f32[1,7], index: 6, kind: input, shape index: {}]
  %s7 = inlined_call_operand.hbm [shape: f32[8,7], index: 7, kind: output, shape index: {}]
  %s8 = sld [smem:[#allocation0]]
  $region38: #{classifier_forward.3} parent=0
    _
  %s10 = ssub.s32 1, %s8
  %s11 = scalar_select 0, %s10, %s8
  $region1: #{classifier_forward.3} parent=0
    #allocation2 [shape = 'u8[4096]{0}', space=vmem, size = 0x1000, scoped, tag = 'output window, operand 0, single buffered']
    #allocation3 [shape = 's32[1]{0}', space=sflag, size = 0x4, scoped, tag = 'scoped memory for classifier_forward.3']
    %12 = vsyncpa [#allocation3], 0
    // Predicated region
    $region2: #{classifier_forward.3} parent=1 // pred_check
      _
    $region3: #{classifier_forward.3} parent=1 // pred_check_branch
      %14 = sbr.rel (0) target = $region5
    $region4: #{classifier_forward.3} parent=1 // pred_region
      _
    $region5: #{classifier_forward.3} parent=1 // pred_fallthru
      _
    // Predicated region
    $region6: #{classifier_forward.3} parent=1 // pred_check
      _
    $region7: #{classifier_forward.3} parent=1 // pred_check_branch
      %16 = sbr.rel (0) target = $region9
    $region8: #{classifier_forward.3} parent=1 // pred_region
      _
    $region9: #{classifier_forward.3} parent=1 // pred_fallthru
      _
    // Predicated region
    $region10: #{classifier_forward.3} parent=1 // pred_check
      _
    $region11: #{classifier_forward.3} parent=1 // pred_check_branch
      %18 = sbr.rel (0) target = $region13
    $region12: #{classifier_forward.3} parent=1 // pred_region
      _
    $region13: #{classifier_forward.3} parent=1 // pred_fallthru
      _
    // Predicated region
    $region14: #{classifier_forward.3} parent=1 // pred_check
      _
    $region15: #{classifier_forward.3} parent=1 // pred_check_branch
      %20 = sbr.rel (0) target = $region17
    $region16: #{classifier_forward.3} parent=1 // pred_region
      _
    $region17: #{classifier_forward.3} parent=1 // pred_fallthru
      _
    // Predicated region
    $region18: #{classifier_forward.3} parent=1 // pred_check
      _
    $region19: #{classifier_forward.3} parent=1 // pred_check_branch
      %22 = sbr.rel (0) target = $region21
    $region20: #{classifier_forward.3} parent=1 // pred_region
      _
    $region21: #{classifier_forward.3} parent=1 // pred_fallthru
      _
    // Predicated region
    $region22: #{classifier_forward.3} parent=1 // pred_check
      _
    $region23: #{classifier_forward.3} parent=1 // pred_check_branch
      %24 = sbr.rel (0) target = $region25
    $region24: #{classifier_forward.3} parent=1 // pred_region
      _
    $region25: #{classifier_forward.3} parent=1 // pred_fallthru
      _
    // Predicated region
    $region26: #{classifier_forward.3} parent=1 // pred_check
      _
    $region27: #{classifier_forward.3} parent=1 // pred_check_branch
      %26 = sbr.rel (0) target = $region29
    $region28: #{classifier_forward.3} parent=1 // pred_region
      _
    $region29: #{classifier_forward.3} parent=1 // pred_fallthru
      _
    %v28 = vld [vmem:[%s0] sm:$0xff]
    %v29 = vld [vmem:[%s0 + $0x8] sm:$0xff]
    %v30 = vld [vmem:[%s0 + $0x10] sm:$0xff]
    %v31 = vld [vmem:[%s0 + $0x18] sm:$0xff]
    %v32 = vld [vmem:[%s0 + $0x20] sm:$0xff]
    %v33 = vld [vmem:[%s0 + $0x28] sm:$0xff]
    %v34 = vld [vmem:[%s0 + $0x30] sm:$0xff]
    %v35 = vld [vmem:[%s0 + $0x38] sm:$0xff]
    %v36 = vpack.c.bf16 %v28, %v28
    %v37 = vpack.c.bf16 %v29, %v29
    %v38 = vpack.c.bf16 %v30, %v30
    %v39 = vpack.c.bf16 %v31, %v31
    %v40 = vpack.c.bf16 %v32, %v32
    %v41 = vpack.c.bf16 %v33, %v33
    %v42 = vpack.c.bf16 %v34, %v34
    %v43 = vpack.c.bf16 %v35, %v35
    %v44 = vld [vmem:[%s1] sm:$0xff]
    %v45 = vld [vmem:[%s1 + $0x8] sm:$0xff]
    %v46 = vld [vmem:[%s1 + $0x10] sm:$0xff]
    %v47 = vld [vmem:[%s1 + $0x18] sm:$0xff]
    %v48 = vld [vmem:[%s1 + $0x20] sm:$0xff]
    %v49 = vld [vmem:[%s1 + $0x28] sm:$0xff]
    %v50 = vld [vmem:[%s1 + $0x30] sm:$0xff]
    %v51 = vld [vmem:[%s1 + $0x38] sm:$0xff]
    %v52 = vld [vmem:[%s1 + $0x40] sm:$0xff]
    %v53 = vld [vmem:[%s1 + $0x48] sm:$0xff]
    %v54 = vld [vmem:[%s1 + $0x50] sm:$0xff]
    %v55 = vld [vmem:[%s1 + $0x58] sm:$0xff]
    %v56 = vld [vmem:[%s1 + $0x60] sm:$0xff]
    %v57 = vld [vmem:[%s1 + $0x68] sm:$0xff]
    %v58 = vld [vmem:[%s1 + $0x70] sm:$0xff]
    %v59 = vld [vmem:[%s1 + $0x78] sm:$0xff]
    %v60 = vld [vmem:[%s1 + $0x80] sm:$0xff]
    %v61 = vld [vmem:[%s1 + $0x88] sm:$0xff]
    %v62 = vld [vmem:[%s1 + $0x90] sm:$0xff]
    %v63 = vld [vmem:[%s1 + $0x98] sm:$0xff]
    %v64 = vld [vmem:[%s1 + $0xa0] sm:$0xff]
    %v65 = vld [vmem:[%s1 + $0xa8] sm:$0xff]
    %v66 = vld [vmem:[%s1 + $0xb0] sm:$0xff]
    %v67 = vld [vmem:[%s1 + $0xb8] sm:$0xff]
    %v68 = vld [vmem:[%s1 + $0xc0] sm:$0xff]
    %v69 = vld [vmem:[%s1 + $0xc8] sm:$0xff]
    %v70 = vld [vmem:[%s1 + $0xd0] sm:$0xff]
    %v71 = vld [vmem:[%s1 + $0xd8] sm:$0xff]
    %v72 = vld [vmem:[%s1 + $0xe0] sm:$0xff]
    %v73 = vld [vmem:[%s1 + $0xe8] sm:$0xff]
    %v74 = vld [vmem:[%s1 + $0xf0] sm:$0xff]
    %v75 = vld [vmem:[%s1 + $0xf8] sm:$0xff]
    %v76 = vld [vmem:[%s1 + $0x100] sm:$0xff]
    %v77 = vld [vmem:[%s1 + $0x108] sm:$0xff]
    %v78 = vld [vmem:[%s1 + $0x110] sm:$0xff]
    %v79 = vld [vmem:[%s1 + $0x118] sm:$0xff]
    %v80 = vld [vmem:[%s1 + $0x120] sm:$0xff]
    %v81 = vld [vmem:[%s1 + $0x128] sm:$0xff]
    %v82 = vld [vmem:[%s1 + $0x130] sm:$0xff]
    %v83 = vld [vmem:[%s1 + $0x138] sm:$0xff]
    %v84 = vld [vmem:[%s1 + $0x140] sm:$0xff]
    %v85 = vld [vmem:[%s1 + $0x148] sm:$0xff]
    %v86 = vld [vmem:[%s1 + $0x150] sm:$0xff]
    %v87 = vld [vmem:[%s1 + $0x158] sm:$0xff]
    %v88 = vld [vmem:[%s1 + $0x160] sm:$0xff]
    %v89 = vld [vmem:[%s1 + $0x168] sm:$0xff]
    %v90 = vld [vmem:[%s1 + $0x170] sm:$0xff]
    %v91 = vld [vmem:[%s1 + $0x178] sm:$0xff]
    %v92 = vld [vmem:[%s1 + $0x180] sm:$0xff]
    %v93 = vld [vmem:[%s1 + $0x188] sm:$0xff]
    %v94 = vld [vmem:[%s1 + $0x190] sm:$0xff]
    %v95 = vld [vmem:[%s1 + $0x198] sm:$0xff]
    %v96 = vld [vmem:[%s1 + $0x1a0] sm:$0xff]
    %v97 = vld [vmem:[%s1 + $0x1a8] sm:$0xff]
    %v98 = vld [vmem:[%s1 + $0x1b0] sm:$0xff]
    %v99 = vld [vmem:[%s1 + $0x1b8] sm:$0xff]
    %v100 = vld [vmem:[%s1 + $0x1c0] sm:$0xff]
    %v101 = vld [vmem:[%s1 + $0x1c8] sm:$0xff]
    %v102 = vld [vmem:[%s1 + $0x1d0] sm:$0xff]
    %v103 = vld [vmem:[%s1 + $0x1d8] sm:$0xff]
    %v104 = vld [vmem:[%s1 + $0x1e0] sm:$0xff]
    %v105 = vld [vmem:[%s1 + $0x1e8] sm:$0xff]
    %v106 = vld [vmem:[%s1 + $0x1f0] sm:$0xff]
    %v107 = vld [vmem:[%s1 + $0x1f8] sm:$0xff]
    %v108 = vld [vmem:[%s1 + $0x200] sm:$0xff]
    %v109 = vld [vmem:[%s1 + $0x208] sm:$0xff]
    %v110 = vld [vmem:[%s1 + $0x210] sm:$0xff]
    %v111 = vld [vmem:[%s1 + $0x218] sm:$0xff]
    %v112 = vld [vmem:[%s1 + $0x220] sm:$0xff]
    %v113 = vld [vmem:[%s1 + $0x228] sm:$0xff]
    %v114 = vld [vmem:[%s1 + $0x230] sm:$0xff]
    %v115 = vld [vmem:[%s1 + $0x238] sm:$0xff]
    %v116 = vld [vmem:[%s1 + $0x240] sm:$0xff]
    %v117 = vld [vmem:[%s1 + $0x248] sm:$0xff]
    %v118 = vld [vmem:[%s1 + $0x250] sm:$0xff]
    %v119 = vld [vmem:[%s1 + $0x258] sm:$0xff]
    %v120 = vld [vmem:[%s1 + $0x260] sm:$0xff]
    %v121 = vld [vmem:[%s1 + $0x268] sm:$0xff]
    %v122 = vld [vmem:[%s1 + $0x270] sm:$0xff]
    %v123 = vld [vmem:[%s1 + $0x278] sm:$0xff]
    %v124 = vld [vmem:[%s1 + $0x280] sm:$0xff]
    %v125 = vld [vmem:[%s1 + $0x288] sm:$0xff]
    %v126 = vld [vmem:[%s1 + $0x290] sm:$0xff]
    %v127 = vld [vmem:[%s1 + $0x298] sm:$0xff]
    %v128 = vld [vmem:[%s1 + $0x2a0] sm:$0xff]
    %v129 = vld [vmem:[%s1 + $0x2a8] sm:$0xff]
    %v130 = vld [vmem:[%s1 + $0x2b0] sm:$0xff]
    %v131 = vld [vmem:[%s1 + $0x2b8] sm:$0xff]
    %v132 = vld [vmem:[%s1 + $0x2c0] sm:$0xff]
    %v133 = vld [vmem:[%s1 + $0x2c8] sm:$0xff]
    %v134 = vld [vmem:[%s1 + $0x2d0] sm:$0xff]
    %v135 = vld [vmem:[%s1 + $0x2d8] sm:$0xff]
    %v136 = vld [vmem:[%s1 + $0x2e0] sm:$0xff]
    %v137 = vld [vmem:[%s1 + $0x2e8] sm:$0xff]
    %v138 = vld [vmem:[%s1 + $0x2f0] sm:$0xff]
    %v139 = vld [vmem:[%s1 + $0x2f8] sm:$0xff]
    %v140 = vld [vmem:[%s1 + $0x300] sm:$0xff]
    %v141 = vld [vmem:[%s1 + $0x308] sm:$0xff]
    %v142 = vld [vmem:[%s1 + $0x310] sm:$0xff]
    %v143 = vld [vmem:[%s1 + $0x318] sm:$0xff]
    %v144 = vld [vmem:[%s1 + $0x320] sm:$0xff]
    %v145 = vld [vmem:[%s1 + $0x328] sm:$0xff]
    %v146 = vld [vmem:[%s1 + $0x330] sm:$0xff]
    %v147 = vld [vmem:[%s1 + $0x338] sm:$0xff]
    %v148 = vld [vmem:[%s1 + $0x340] sm:$0xff]
    %v149 = vld [vmem:[%s1 + $0x348] sm:$0xff]
    %v150 = vld [vmem:[%s1 + $0x350] sm:$0xff]
    %v151 = vld [vmem:[%s1 + $0x358] sm:$0xff]
    %v152 = vld [vmem:[%s1 + $0x360] sm:$0xff]
    %v153 = vld [vmem:[%s1 + $0x368] sm:$0xff]
    %v154 = vld [vmem:[%s1 + $0x370] sm:$0xff]
    %v155 = vld [vmem:[%s1 + $0x378] sm:$0xff]
    %v156 = vld [vmem:[%s1 + $0x380] sm:$0xff]
    %v157 = vld [vmem:[%s1 + $0x388] sm:$0xff]
    %v158 = vld [vmem:[%s1 + $0x390] sm:$0xff]
    %v159 = vld [vmem:[%s1 + $0x398] sm:$0xff]
    %v160 = vld [vmem:[%s1 + $0x3a0] sm:$0xff]
    %v161 = vld [vmem:[%s1 + $0x3a8] sm:$0xff]
    %v162 = vld [vmem:[%s1 + $0x3b0] sm:$0xff]
    %v163 = vld [vmem:[%s1 + $0x3b8] sm:$0xff]
    %v164 = vld [vmem:[%s1 + $0x3c0] sm:$0xff]
    %v165 = vld [vmem:[%s1 + $0x3c8] sm:$0xff]
    %v166 = vld [vmem:[%s1 + $0x3d0] sm:$0xff]
    %v167 = vld [vmem:[%s1 + $0x3d8] sm:$0xff]
    %v168 = vld [vmem:[%s1 + $0x3e0] sm:$0xff]
    %v169 = vld [vmem:[%s1 + $0x3e8] sm:$0xff]
    %v170 = vld [vmem:[%s1 + $0x3f0] sm:$0xff]
    %v171 = vld [vmem:[%s1 + $0x3f8] sm:$0xff]
    %v172 = vld [vmem:[%s2] sm:$0x3]
    %v174 = vperm.slane %v172, 0
    %v175 = vperm.slane %v172, 1
    %v306 = vunpack.c.l.b16 %v44
    %v307 = vunpack.c.h.b16 %v44
    %v308 = vunpack.c.l.b16 %v45
    %v309 = vunpack.c.h.b16 %v45
    %v310 = vunpack.c.l.b16 %v46
    %v311 = vunpack.c.h.b16 %v46
    %v312 = vunpack.c.l.b16 %v47
    %v313 = vunpack.c.h.b16 %v47
    %v314 = vunpack.c.l.b16 %v48
    %v315 = vunpack.c.h.b16 %v48
    %v316 = vunpack.c.l.b16 %v49
    %v317 = vunpack.c.h.b16 %v49
    %v318 = vunpack.c.l.b16 %v50
    %v319 = vunpack.c.h.b16 %v50
    %v320 = vunpack.c.l.b16 %v51
    %v321 = vunpack.c.h.b16 %v51
    %v322 = vunpack.c.l.b16 %v52
    %v323 = vunpack.c.h.b16 %v52
    %v324 = vunpack.c.l.b16 %v53
    %v325 = vunpack.c.h.b16 %v53
    %v326 = vunpack.c.l.b16 %v54
    %v327 = vunpack.c.h.b16 %v54
    %v328 = vunpack.c.l.b16 %v55
    %v329 = vunpack.c.h.b16 %v55
    %v330 = vunpack.c.l.b16 %v56
    %v331 = vunpack.c.h.b16 %v56
    %v332 = vunpack.c.l.b16 %v57
    %v333 = vunpack.c.h.b16 %v57
    %v334 = vunpack.c.l.b16 %v58
    %v335 = vunpack.c.h.b16 %v58
    %v336 = vunpack.c.l.b16 %v59
    %v337 = vunpack.c.h.b16 %v59
    %v338 = vunpack.c.l.b16 %v60
    %v339 = vunpack.c.h.b16 %v60
    %v340 = vunpack.c.l.b16 %v61
    %v341 = vunpack.c.h.b16 %v61
    %v342 = vunpack.c.l.b16 %v62
    %v343 = vunpack.c.h.b16 %v62
    %v344 = vunpack.c.l.b16 %v63
    %v345 = vunpack.c.h.b16 %v63
    %v346 = vunpack.c.l.b16 %v64
    %v347 = vunpack.c.h.b16 %v64
    %v348 = vunpack.c.l.b16 %v65
    %v349 = vunpack.c.h.b16 %v65
    %v350 = vunpack.c.l.b16 %v66
    %v351 = vunpack.c.h.b16 %v66
    %v352 = vunpack.c.l.b16 %v67
    %v353 = vunpack.c.h.b16 %v67
    %v354 = vunpack.c.l.b16 %v68
    %v355 = vunpack.c.h.b16 %v68
    %v356 = vunpack.c.l.b16 %v69
    %v357 = vunpack.c.h.b16 %v69
    %v358 = vunpack.c.l.b16 %v70
    %v359 = vunpack.c.h.b16 %v70
    %v360 = vunpack.c.l.b16 %v71
    %v361 = vunpack.c.h.b16 %v71
    %v362 = vunpack.c.l.b16 %v72
    %v363 = vunpack.c.h.b16 %v72
    %v364 = vunpack.c.l.b16 %v73
    %v365 = vunpack.c.h.b16 %v73
    %v366 = vunpack.c.l.b16 %v74
    %v367 = vunpack.c.h.b16 %v74
    %v368 = vunpack.c.l.b16 %v75
    %v369 = vunpack.c.h.b16 %v75
    %v370 = vunpack.c.l.b16 %v76
    %v371 = vunpack.c.h.b16 %v76
    %v372 = vunpack.c.l.b16 %v77
    %v373 = vunpack.c.h.b16 %v77
    %v374 = vunpack.c.l.b16 %v78
    %v375 = vunpack.c.h.b16 %v78
    %v376 = vunpack.c.l.b16 %v79
    %v377 = vunpack.c.h.b16 %v79
    %v378 = vunpack.c.l.b16 %v80
    %v379 = vunpack.c.h.b16 %v80
    %v380 = vunpack.c.l.b16 %v81
    %v381 = vunpack.c.h.b16 %v81
    %v382 = vunpack.c.l.b16 %v82
    %v383 = vunpack.c.h.b16 %v82
    %v384 = vunpack.c.l.b16 %v83
    %v385 = vunpack.c.h.b16 %v83
    %v386 = vunpack.c.l.b16 %v84
    %v387 = vunpack.c.h.b16 %v84
    %v388 = vunpack.c.l.b16 %v85
    %v389 = vunpack.c.h.b16 %v85
    %v390 = vunpack.c.l.b16 %v86
    %v391 = vunpack.c.h.b16 %v86
    %v392 = vunpack.c.l.b16 %v87
    %v393 = vunpack.c.h.b16 %v87
    %v394 = vunpack.c.l.b16 %v88
    %v395 = vunpack.c.h.b16 %v88
    %v396 = vunpack.c.l.b16 %v89
    %v397 = vunpack.c.h.b16 %v89
    %v398 = vunpack.c.l.b16 %v90
    %v399 = vunpack.c.h.b16 %v90
    %v400 = vunpack.c.l.b16 %v91
    %v401 = vunpack.c.h.b16 %v91
    %v402 = vunpack.c.l.b16 %v92
    %v403 = vunpack.c.h.b16 %v92
    %v404 = vunpack.c.l.b16 %v93
    %v405 = vunpack.c.h.b16 %v93
    %v406 = vunpack.c.l.b16 %v94
    %v407 = vunpack.c.h.b16 %v94
    %v408 = vunpack.c.l.b16 %v95
    %v409 = vunpack.c.h.b16 %v95
    %v410 = vunpack.c.l.b16 %v96
    %v411 = vunpack.c.h.b16 %v96
    %v412 = vunpack.c.l.b16 %v97
    %v413 = vunpack.c.h.b16 %v97
    %v414 = vunpack.c.l.b16 %v98
    %v415 = vunpack.c.h.b16 %v98
    %v416 = vunpack.c.l.b16 %v99
    %v417 = vunpack.c.h.b16 %v99
    %v418 = vunpack.c.l.b16 %v100
    %v419 = vunpack.c.h.b16 %v100
    %v420 = vunpack.c.l.b16 %v101
    %v421 = vunpack.c.h.b16 %v101
    %v422 = vunpack.c.l.b16 %v102
    %v423 = vunpack.c.h.b16 %v102
    %v424 = vunpack.c.l.b16 %v103
    %v425 = vunpack.c.h.b16 %v103
    %v426 = vunpack.c.l.b16 %v104
    %v427 = vunpack.c.h.b16 %v104
    %v428 = vunpack.c.l.b16 %v105
    %v429 = vunpack.c.h.b16 %v105
    %v430 = vunpack.c.l.b16 %v106
    %v431 = vunpack.c.h.b16 %v106
    %v432 = vunpack.c.l.b16 %v107
    %v433 = vunpack.c.h.b16 %v107
    %v434 = vunpack.c.l.b16 %v108
    %v435 = vunpack.c.h.b16 %v108
    %v436 = vunpack.c.l.b16 %v109
    %v437 = vunpack.c.h.b16 %v109
    %v438 = vunpack.c.l.b16 %v110
    %v439 = vunpack.c.h.b16 %v110
    %v440 = vunpack.c.l.b16 %v111
    %v441 = vunpack.c.h.b16 %v111
    %v442 = vunpack.c.l.b16 %v112
    %v443 = vunpack.c.h.b16 %v112
    %v444 = vunpack.c.l.b16 %v113
    %v445 = vunpack.c.h.b16 %v113
    %v446 = vunpack.c.l.b16 %v114
    %v447 = vunpack.c.h.b16 %v114
    %v448 = vunpack.c.l.b16 %v115
    %v449 = vunpack.c.h.b16 %v115
    %v450 = vunpack.c.l.b16 %v116
    %v451 = vunpack.c.h.b16 %v116
    %v452 = vunpack.c.l.b16 %v117
    %v453 = vunpack.c.h.b16 %v117
    %v454 = vunpack.c.l.b16 %v118
    %v455 = vunpack.c.h.b16 %v118
    %v456 = vunpack.c.l.b16 %v119
    %v457 = vunpack.c.h.b16 %v119
    %v458 = vunpack.c.l.b16 %v120
    %v459 = vunpack.c.h.b16 %v120
    %v460 = vunpack.c.l.b16 %v121
    %v461 = vunpack.c.h.b16 %v121
    %v462 = vunpack.c.l.b16 %v122
    %v463 = vunpack.c.h.b16 %v122
    %v464 = vunpack.c.l.b16 %v123
    %v465 = vunpack.c.h.b16 %v123
    %v466 = vunpack.c.l.b16 %v124
    %v467 = vunpack.c.h.b16 %v124
    %v468 = vunpack.c.l.b16 %v125
    %v469 = vunpack.c.h.b16 %v125
    %v470 = vunpack.c.l.b16 %v126
    %v471 = vunpack.c.h.b16 %v126
    %v472 = vunpack.c.l.b16 %v127
    %v473 = vunpack.c.h.b16 %v127
    %v474 = vunpack.c.l.b16 %v128
    %v475 = vunpack.c.h.b16 %v128
    %v476 = vunpack.c.l.b16 %v129
    %v477 = vunpack.c.h.b16 %v129
    %v478 = vunpack.c.l.b16 %v130
    %v479 = vunpack.c.h.b16 %v130
    %v480 = vunpack.c.l.b16 %v131
    %v481 = vunpack.c.h.b16 %v131
    %v482 = vunpack.c.l.b16 %v132
    %v483 = vunpack.c.h.b16 %v132
    %v484 = vunpack.c.l.b16 %v133
    %v485 = vunpack.c.h.b16 %v133
    %v486 = vunpack.c.l.b16 %v134
    %v487 = vunpack.c.h.b16 %v134
    %v488 = vunpack.c.l.b16 %v135
    %v489 = vunpack.c.h.b16 %v135
    %v490 = vunpack.c.l.b16 %v136
    %v491 = vunpack.c.h.b16 %v136
    %v492 = vunpack.c.l.b16 %v137
    %v493 = vunpack.c.h.b16 %v137
    %v494 = vunpack.c.l.b16 %v138
    %v495 = vunpack.c.h.b16 %v138
    %v496 = vunpack.c.l.b16 %v139
    %v497 = vunpack.c.h.b16 %v139
    %v498 = vunpack.c.l.b16 %v140
    %v499 = vunpack.c.h.b16 %v140
    %v500 = vunpack.c.l.b16 %v141
    %v501 = vunpack.c.h.b16 %v141
    %v502 = vunpack.c.l.b16 %v142
    %v503 = vunpack.c.h.b16 %v142
    %v504 = vunpack.c.l.b16 %v143
    %v505 = vunpack.c.h.b16 %v143
    %v506 = vunpack.c.l.b16 %v144
    %v507 = vunpack.c.h.b16 %v144
    %v508 = vunpack.c.l.b16 %v145
    %v509 = vunpack.c.h.b16 %v145
    %v510 = vunpack.c.l.b16 %v146
    %v511 = vunpack.c.h.b16 %v146
    %v512 = vunpack.c.l.b16 %v147
    %v513 = vunpack.c.h.b16 %v147
    %v514 = vunpack.c.l.b16 %v148
    %v515 = vunpack.c.h.b16 %v148
    %v516 = vunpack.c.l.b16 %v149
    %v517 = vunpack.c.h.b16 %v149
    %v518 = vunpack.c.l.b16 %v150
    %v519 = vunpack.c.h.b16 %v150
    %v520 = vunpack.c.l.b16 %v151
    %v521 = vunpack.c.h.b16 %v151
    %v522 = vunpack.c.l.b16 %v152
    %v523 = vunpack.c.h.b16 %v152
    %v524 = vunpack.c.l.b16 %v153
    %v525 = vunpack.c.h.b16 %v153
    %v526 = vunpack.c.l.b16 %v154
    %v527 = vunpack.c.h.b16 %v154
    %v528 = vunpack.c.l.b16 %v155
    %v529 = vunpack.c.h.b16 %v155
    %v530 = vunpack.c.l.b16 %v156
    %v531 = vunpack.c.h.b16 %v156
    %v532 = vunpack.c.l.b16 %v157
    %v533 = vunpack.c.h.b16 %v157
    %v534 = vunpack.c.l.b16 %v158
    %v535 = vunpack.c.h.b16 %v158
    %v536 = vunpack.c.l.b16 %v159
    %v537 = vunpack.c.h.b16 %v159
    %v538 = vunpack.c.l.b16 %v160
    %v539 = vunpack.c.h.b16 %v160
    %v540 = vunpack.c.l.b16 %v161
    %v541 = vunpack.c.h.b16 %v161
    %v542 = vunpack.c.l.b16 %v162
    %v543 = vunpack.c.h.b16 %v162
    %v544 = vunpack.c.l.b16 %v163
    %v545 = vunpack.c.h.b16 %v163
    %v546 = vunpack.c.l.b16 %v164
    %v547 = vunpack.c.h.b16 %v164
    %v548 = vunpack.c.l.b16 %v165
    %v549 = vunpack.c.h.b16 %v165
    %v550 = vunpack.c.l.b16 %v166
    %v551 = vunpack.c.h.b16 %v166
    %v552 = vunpack.c.l.b16 %v167
    %v553 = vunpack.c.h.b16 %v167
    %v554 = vunpack.c.l.b16 %v168
    %v555 = vunpack.c.h.b16 %v168
    %v556 = vunpack.c.l.b16 %v169
    %v557 = vunpack.c.h.b16 %v169
    %v558 = vunpack.c.l.b16 %v170
    %v559 = vunpack.c.h.b16 %v170
    %v560 = vunpack.c.l.b16 %v171
    %v561 = vunpack.c.h.b16 %v171
    %v562 = vpack.c.b16 %v308, %v306
    %v563 = vpack.c.b16 %v309, %v307
    %v564 = vpack.c.b16 %v312, %v310
    %v565 = vpack.c.b16 %v313, %v311
    %v566 = vpack.c.b16 %v316, %v314
    %v567 = vpack.c.b16 %v317, %v315
    %v568 = vpack.c.b16 %v320, %v318
    %v569 = vpack.c.b16 %v321, %v319
    %v570 = vpack.c.b16 %v324, %v322
    %v571 = vpack.c.b16 %v325, %v323
    %v572 = vpack.c.b16 %v328, %v326
    %v573 = vpack.c.b16 %v329, %v327
    %v574 = vpack.c.b16 %v332, %v330
    %v575 = vpack.c.b16 %v333, %v331
    %v576 = vpack.c.b16 %v336, %v334
    %v577 = vpack.c.b16 %v337, %v335
    %v578 = vpack.c.b16 %v340, %v338
    %v579 = vpack.c.b16 %v341, %v339
    %v580 = vpack.c.b16 %v344, %v342
    %v581 = vpack.c.b16 %v345, %v343
    %v582 = vpack.c.b16 %v348, %v346
    %v583 = vpack.c.b16 %v349, %v347
    %v584 = vpack.c.b16 %v352, %v350
    %v585 = vpack.c.b16 %v353, %v351
    %v586 = vpack.c.b16 %v356, %v354
    %v587 = vpack.c.b16 %v357, %v355
    %v588 = vpack.c.b16 %v360, %v358
    %v589 = vpack.c.b16 %v361, %v359
    %v590 = vpack.c.b16 %v364, %v362
    %v591 = vpack.c.b16 %v365, %v363
    %v592 = vpack.c.b16 %v368, %v366
    %v593 = vpack.c.b16 %v369, %v367
    %v594 = vpack.c.b16 %v372, %v370
    %v595 = vpack.c.b16 %v373, %v371
    %v596 = vpack.c.b16 %v376, %v374
    %v597 = vpack.c.b16 %v377, %v375
    %v598 = vpack.c.b16 %v380, %v378
    %v599 = vpack.c.b16 %v381, %v379
    %v600 = vpack.c.b16 %v384, %v382
    %v601 = vpack.c.b16 %v385, %v383
    %v602 = vpack.c.b16 %v388, %v386
    %v603 = vpack.c.b16 %v389, %v387
    %v604 = vpack.c.b16 %v392, %v390
    %v605 = vpack.c.b16 %v393, %v391
    %v606 = vpack.c.b16 %v396, %v394
    %v607 = vpack.c.b16 %v397, %v395
    %v608 = vpack.c.b16 %v400, %v398
    %v609 = vpack.c.b16 %v401, %v399
    %v610 = vpack.c.b16 %v404, %v402
    %v611 = vpack.c.b16 %v405, %v403
    %v612 = vpack.c.b16 %v408, %v406
    %v613 = vpack.c.b16 %v409, %v407
    %v614 = vpack.c.b16 %v412, %v410
    %v615 = vpack.c.b16 %v413, %v411
    %v616 = vpack.c.b16 %v416, %v414
    %v617 = vpack.c.b16 %v417, %v415
    %v618 = vpack.c.b16 %v420, %v418
    %v619 = vpack.c.b16 %v421, %v419
    %v620 = vpack.c.b16 %v424, %v422
    %v621 = vpack.c.b16 %v425, %v423
    %v622 = vpack.c.b16 %v428, %v426
    %v623 = vpack.c.b16 %v429, %v427
    %v624 = vpack.c.b16 %v432, %v430
    %v625 = vpack.c.b16 %v433, %v431
    %v626 = vpack.c.b16 %v436, %v434
    %v627 = vpack.c.b16 %v437, %v435
    %v628 = vpack.c.b16 %v440, %v438
    %v629 = vpack.c.b16 %v441, %v439
    %v630 = vpack.c.b16 %v444, %v442
    %v631 = vpack.c.b16 %v445, %v443
    %v632 = vpack.c.b16 %v448, %v446
    %v633 = vpack.c.b16 %v449, %v447
    %v634 = vpack.c.b16 %v452, %v450
    %v635 = vpack.c.b16 %v453, %v451
    %v636 = vpack.c.b16 %v456, %v454
    %v637 = vpack.c.b16 %v457, %v455
    %v638 = vpack.c.b16 %v460, %v458
    %v639 = vpack.c.b16 %v461, %v459
    %v640 = vpack.c.b16 %v464, %v462
    %v641 = vpack.c.b16 %v465, %v463
    %v642 = vpack.c.b16 %v468, %v466
    %v643 = vpack.c.b16 %v469, %v467
    %v644 = vpack.c.b16 %v472, %v470
    %v645 = vpack.c.b16 %v473, %v471
    %v646 = vpack.c.b16 %v476, %v474
    %v647 = vpack.c.b16 %v477, %v475
    %v648 = vpack.c.b16 %v480, %v478
    %v649 = vpack.c.b16 %v481, %v479
    %v650 = vpack.c.b16 %v484, %v482
    %v651 = vpack.c.b16 %v485, %v483
    %v652 = vpack.c.b16 %v488, %v486
    %v653 = vpack.c.b16 %v489, %v487
    %v654 = vpack.c.b16 %v492, %v490
    %v655 = vpack.c.b16 %v493, %v491
    %v656 = vpack.c.b16 %v496, %v494
    %v657 = vpack.c.b16 %v497, %v495
    %v658 = vpack.c.b16 %v500, %v498
    %v659 = vpack.c.b16 %v501, %v499
    %v660 = vpack.c.b16 %v504, %v502
    %v661 = vpack.c.b16 %v505, %v503
    %v662 = vpack.c.b16 %v508, %v506
    %v663 = vpack.c.b16 %v509, %v507
    %v664 = vpack.c.b16 %v512, %v510
    %v665 = vpack.c.b16 %v513, %v511
    %v666 = vpack.c.b16 %v516, %v514
    %v667 = vpack.c.b16 %v517, %v515
    %v668 = vpack.c.b16 %v520, %v518
    %v669 = vpack.c.b16 %v521, %v519
    %v670 = vpack.c.b16 %v524, %v522
    %v671 = vpack.c.b16 %v525, %v523
    %v672 = vpack.c.b16 %v528, %v526
    %v673 = vpack.c.b16 %v529, %v527
    %v674 = vpack.c.b16 %v532, %v530
    %v675 = vpack.c.b16 %v533, %v531
    %v676 = vpack.c.b16 %v536, %v534
    %v677 = vpack.c.b16 %v537, %v535
    %v678 = vpack.c.b16 %v540, %v538
    %v679 = vpack.c.b16 %v541, %v539
    %v680 = vpack.c.b16 %v544, %v542
    %v681 = vpack.c.b16 %v545, %v543
    %v682 = vpack.c.b16 %v548, %v546
    %v683 = vpack.c.b16 %v549, %v547
    %v684 = vpack.c.b16 %v552, %v550
    %v685 = vpack.c.b16 %v553, %v551
    %v686 = vpack.c.b16 %v556, %v554
    %v687 = vpack.c.b16 %v557, %v555
    %v688 = vpack.c.b16 %v560, %v558
    %v689 = vpack.c.b16 %v561, %v559
    %818 = vmatpush.bf16.msra.mxu0 %v576
    %819 = vmatpush.bf16.msra.mxu0 %v574
    %820 = vmatpush.bf16.msra.mxu0 %v572
    %821 = vmatpush.bf16.msra.mxu0 %v570
    %822 = vmatpush.bf16.msra.mxu0 %v568
    %823 = vmatpush.bf16.msra.mxu0 %v566
    %824 = vmatpush.bf16.msra.mxu0 %v564
    %825 = vmatpush.bf16.msra.mxu0 %v562
    %826 = vmatmul.bf16.gmra.mxu0 %v36
    %v827 = vpop.f32.mrf.mxu0
    %v828 = vadd.f32 %v174, %v827
    %v829 = vpop.f32.mrf.mxu0
    %830 = vdwg.mxu0
    %831 = vmatpush.bf16.msra.mxu0 %v592
    %832 = vmatpush.bf16.msra.mxu0 %v590
    %833 = vmatpush.bf16.msra.mxu0 %v588
    %834 = vmatpush.bf16.msra.mxu0 %v586
    %835 = vmatpush.bf16.msra.mxu0 %v584
    %836 = vmatpush.bf16.msra.mxu0 %v582
    %837 = vmatpush.bf16.msra.mxu0 %v580
    %838 = vmatpush.bf16.msra.mxu0 %v578
    %839 = vmatmul.bf16.gmra.mxu0 %v37
    %v840 = vpop.f32.mrf.mxu0
    %v841 = vadd.f32 %v828, %v840
    %v842 = vpop.f32.mrf.mxu0
    %843 = vdwg.mxu0
    %844 = vmatpush.bf16.msra.mxu0 %v608
    %845 = vmatpush.bf16.msra.mxu0 %v606
    %846 = vmatpush.bf16.msra.mxu0 %v604
    %847 = vmatpush.bf16.msra.mxu0 %v602
    %848 = vmatpush.bf16.msra.mxu0 %v600
    %849 = vmatpush.bf16.msra.mxu0 %v598
    %850 = vmatpush.bf16.msra.mxu0 %v596
    %851 = vmatpush.bf16.msra.mxu0 %v594
    %852 = vmatmul.bf16.gmra.mxu0 %v38
    %v853 = vpop.f32.mrf.mxu0
    %v854 = vadd.f32 %v841, %v853
    %v855 = vpop.f32.mrf.mxu0
    %856 = vdwg.mxu0
    %857 = vmatpush.bf16.msra.mxu0 %v624
    %858 = vmatpush.bf16.msra.mxu0 %v622
    %859 = vmatpush.bf16.msra.mxu0 %v620
    %860 = vmatpush.bf16.msra.mxu0 %v618
    %861 = vmatpush.bf16.msra.mxu0 %v616
    %862 = vmatpush.bf16.msra.mxu0 %v614
    %863 = vmatpush.bf16.msra.mxu0 %v612
    %864 = vmatpush.bf16.msra.mxu0 %v610
    %865 = vmatmul.bf16.gmra.mxu0 %v39
    %v866 = vpop.f32.mrf.mxu0
    %v867 = vadd.f32 %v854, %v866
    %v868 = vpop.f32.mrf.mxu0
    %869 = vdwg.mxu0
    %870 = vmatpush.bf16.msra.mxu0 %v640
    %871 = vmatpush.bf16.msra.mxu0 %v638
    %872 = vmatpush.bf16.msra.mxu0 %v636
    %873 = vmatpush.bf16.msra.mxu0 %v634
    %874 = vmatpush.bf16.msra.mxu0 %v632
    %875 = vmatpush.bf16.msra.mxu0 %v630
    %876 = vmatpush.bf16.msra.mxu0 %v628
    %877 = vmatpush.bf16.msra.mxu0 %v626
    %878 = vmatmul.bf16.gmra.mxu0 %v40
    %v879 = vpop.f32.mrf.mxu0
    %v880 = vadd.f32 %v867, %v879
    %v881 = vpop.f32.mrf.mxu0
    %882 = vdwg.mxu0
    %883 = vmatpush.bf16.msra.mxu0 %v656
    %884 = vmatpush.bf16.msra.mxu0 %v654
    %885 = vmatpush.bf16.msra.mxu0 %v652
    %886 = vmatpush.bf16.msra.mxu0 %v650
    %887 = vmatpush.bf16.msra.mxu0 %v648
    %888 = vmatpush.bf16.msra.mxu0 %v646
    %889 = vmatpush.bf16.msra.mxu0 %v644
    %890 = vmatpush.bf16.msra.mxu0 %v642
    %891 = vmatmul.bf16.gmra.mxu0 %v41
    %v892 = vpop.f32.mrf.mxu0
    %v893 = vadd.f32 %v880, %v892
    %v894 = vpop.f32.mrf.mxu0
    %895 = vdwg.mxu0
    %896 = vmatpush.bf16.msra.mxu0 %v672
    %897 = vmatpush.bf16.msra.mxu0 %v670
    %898 = vmatpush.bf16.msra.mxu0 %v668
    %899 = vmatpush.bf16.msra.mxu0 %v666
    %900 = vmatpush.bf16.msra.mxu0 %v664
    %901 = vmatpush.bf16.msra.mxu0 %v662
    %902 = vmatpush.bf16.msra.mxu0 %v660
    %903 = vmatpush.bf16.msra.mxu0 %v658
    %904 = vmatmul.bf16.gmra.mxu0 %v42
    %v905 = vpop.f32.mrf.mxu0
    %v906 = vadd.f32 %v893, %v905
    %v907 = vpop.f32.mrf.mxu0
    %908 = vdwg.mxu0
    %909 = vmatpush.bf16.msra.mxu0 %v688
    %910 = vmatpush.bf16.msra.mxu0 %v686
    %911 = vmatpush.bf16.msra.mxu0 %v684
    %912 = vmatpush.bf16.msra.mxu0 %v682
    %913 = vmatpush.bf16.msra.mxu0 %v680
    %914 = vmatpush.bf16.msra.mxu0 %v678
    %915 = vmatpush.bf16.msra.mxu0 %v676
    %916 = vmatpush.bf16.msra.mxu0 %v674
    %917 = vmatmul.bf16.gmra.mxu0 %v43
    %v918 = vpop.f32.mrf.mxu0
    %v919 = vadd.f32 %v906, %v918
    %v920 = vpop.f32.mrf.mxu0
    %921 = vdwg.mxu0
    %922 = vmatpush.bf16.msra.mxu0 %v577
    %923 = vmatpush.bf16.msra.mxu0 %v575
    %924 = vmatpush.bf16.msra.mxu0 %v573
    %925 = vmatpush.bf16.msra.mxu0 %v571
    %926 = vmatpush.bf16.msra.mxu0 %v569
    %927 = vmatpush.bf16.msra.mxu0 %v567
    %928 = vmatpush.bf16.msra.mxu0 %v565
    %929 = vmatpush.bf16.msra.mxu0 %v563
    %930 = vmatmul.bf16.gmra.mxu0 %v36
    %v931 = vpop.f32.mrf.mxu0
    %v932 = vadd.f32 %v175, %v931
    %v933 = vpop.f32.mrf.mxu0
    %934 = vdwg.mxu0
    %935 = vmatpush.bf16.msra.mxu0 %v593
    %936 = vmatpush.bf16.msra.mxu0 %v591
    %937 = vmatpush.bf16.msra.mxu0 %v589
    %938 = vmatpush.bf16.msra.mxu0 %v587
    %939 = vmatpush.bf16.msra.mxu0 %v585
    %940 = vmatpush.bf16.msra.mxu0 %v583
    %941 = vmatpush.bf16.msra.mxu0 %v581
    %942 = vmatpush.bf16.msra.mxu0 %v579
    %943 = vmatmul.bf16.gmra.mxu0 %v37
    %v944 = vpop.f32.mrf.mxu0
    %v945 = vadd.f32 %v932, %v944
    %v946 = vpop.f32.mrf.mxu0
    %947 = vdwg.mxu0
    %948 = vmatpush.bf16.msra.mxu0 %v609
    %949 = vmatpush.bf16.msra.mxu0 %v607
    %950 = vmatpush.bf16.msra.mxu0 %v605
    %951 = vmatpush.bf16.msra.mxu0 %v603
    %952 = vmatpush.bf16.msra.mxu0 %v601
    %953 = vmatpush.bf16.msra.mxu0 %v599
    %954 = vmatpush.bf16.msra.mxu0 %v597
    %955 = vmatpush.bf16.msra.mxu0 %v595
    %956 = vmatmul.bf16.gmra.mxu0 %v38
    %v957 = vpop.f32.mrf.mxu0
    %v958 = vadd.f32 %v945, %v957
    %v959 = vpop.f32.mrf.mxu0
    %960 = vdwg.mxu0
    %961 = vmatpush.bf16.msra.mxu0 %v625
    %962 = vmatpush.bf16.msra.mxu0 %v623
    %963 = vmatpush.bf16.msra.mxu0 %v621
    %964 = vmatpush.bf16.msra.mxu0 %v619
    %965 = vmatpush.bf16.msra.mxu0 %v617
    %966 = vmatpush.bf16.msra.mxu0 %v615
    %967 = vmatpush.bf16.msra.mxu0 %v613
    %968 = vmatpush.bf16.msra.mxu0 %v611
    %969 = vmatmul.bf16.gmra.mxu0 %v39
    %v970 = vpop.f32.mrf.mxu0
    %v971 = vadd.f32 %v958, %v970
    %v972 = vpop.f32.mrf.mxu0
    %973 = vdwg.mxu0
    %974 = vmatpush.bf16.msra.mxu0 %v641
    %975 = vmatpush.bf16.msra.mxu0 %v639
    %976 = vmatpush.bf16.msra.mxu0 %v637
    %977 = vmatpush.bf16.msra.mxu0 %v635
    %978 = vmatpush.bf16.msra.mxu0 %v633
    %979 = vmatpush.bf16.msra.mxu0 %v631
    %980 = vmatpush.bf16.msra.mxu0 %v629
    %981 = vmatpush.bf16.msra.mxu0 %v627
    %982 = vmatmul.bf16.gmra.mxu0 %v40
    %v983 = vpop.f32.mrf.mxu0
    %v984 = vadd.f32 %v971, %v983
    %v985 = vpop.f32.mrf.mxu0
    %986 = vdwg.mxu0
    %987 = vmatpush.bf16.msra.mxu0 %v657
    %988 = vmatpush.bf16.msra.mxu0 %v655
    %989 = vmatpush.bf16.msra.mxu0 %v653
    %990 = vmatpush.bf16.msra.mxu0 %v651
    %991 = vmatpush.bf16.msra.mxu0 %v649
    %992 = vmatpush.bf16.msra.mxu0 %v647
    %993 = vmatpush.bf16.msra.mxu0 %v645
    %994 = vmatpush.bf16.msra.mxu0 %v643
    %995 = vmatmul.bf16.gmra.mxu0 %v41
    %v996 = vpop.f32.mrf.mxu0
    %v997 = vadd.f32 %v984, %v996
    %v998 = vpop.f32.mrf.mxu0
    %999 = vdwg.mxu0
    %1000 = vmatpush.bf16.msra.mxu0 %v673
    %1001 = vmatpush.bf16.msra.mxu0 %v671
    %1002 = vmatpush.bf16.msra.mxu0 %v669
    %1003 = vmatpush.bf16.msra.mxu0 %v667
    %1004 = vmatpush.bf16.msra.mxu0 %v665
    %1005 = vmatpush.bf16.msra.mxu0 %v663
    %1006 = vmatpush.bf16.msra.mxu0 %v661
    %1007 = vmatpush.bf16.msra.mxu0 %v659
    %1008 = vmatmul.bf16.gmra.mxu0 %v42
    %v1009 = vpop.f32.mrf.mxu0
    %v1010 = vadd.f32 %v997, %v1009
    %v1011 = vpop.f32.mrf.mxu0
    %1012 = vdwg.mxu0
    %1013 = vmatpush.bf16.msra.mxu0 %v689
    %1014 = vmatpush.bf16.msra.mxu0 %v687
    %1015 = vmatpush.bf16.msra.mxu0 %v685
    %1016 = vmatpush.bf16.msra.mxu0 %v683
    %1017 = vmatpush.bf16.msra.mxu0 %v681
    %1018 = vmatpush.bf16.msra.mxu0 %v679
    %1019 = vmatpush.bf16.msra.mxu0 %v677
    %1020 = vmatpush.bf16.msra.mxu0 %v675
    %1021 = vmatmul.bf16.gmra.mxu0 %v43
    %v1022 = vpop.f32.mrf.mxu0
    %v1023 = vadd.f32 %v1010, %v1022
    %v1024 = vpop.f32.mrf.mxu0
    %1025 = vdwg.mxu0
    %v1026 = vmax.f32 %v919, 0.0
    %v1027 = vmax.f32 %v1023, 0.0
    %v1028 = vpack.c.bf16 %v1026, %v1026
    %v1029 = vpack.c.bf16 %v1027, %v1027
    %v1030 = vld [vmem:[%s3] sm:$0xf]
    %v1031 = vld [vmem:[%s3 + $0x4] sm:$0xf]
    %v1032 = vld [vmem:[%s3 + $0x8] sm:$0xf]
    %v1033 = vld [vmem:[%s3 + $0xc] sm:$0xf]
    %v1034 = vld [vmem:[%s3 + $0x10] sm:$0xf]
    %v1035 = vld [vmem:[%s3 + $0x14] sm:$0xf]
    %v1036 = vld [vmem:[%s3 + $0x18] sm:$0xf]
    %v1037 = vld [vmem:[%s3 + $0x1c] sm:$0xf]
    %v1038 = vld [vmem:[%s3 + $0x20] sm:$0xf]
    %v1039 = vld [vmem:[%s3 + $0x24] sm:$0xf]
    %v1040 = vld [vmem:[%s3 + $0x28] sm:$0xf]
    %v1041 = vld [vmem:[%s3 + $0x2c] sm:$0xf]
    %v1042 = vld [vmem:[%s3 + $0x30] sm:$0xf]
    %v1043 = vld [vmem:[%s3 + $0x34] sm:$0xf]
    %v1044 = vld [vmem:[%s3 + $0x38] sm:$0xf]
    %v1045 = vld [vmem:[%s3 + $0x3c] sm:$0xf]
    %v1046 = vld [vmem:[%s3 + $0x40] sm:$0xf]
    %v1047 = vld [vmem:[%s3 + $0x44] sm:$0xf]
    %v1048 = vld [vmem:[%s3 + $0x48] sm:$0xf]
    %v1049 = vld [vmem:[%s3 + $0x4c] sm:$0xf]
    %v1050 = vld [vmem:[%s3 + $0x50] sm:$0xf]
    %v1051 = vld [vmem:[%s3 + $0x54] sm:$0xf]
    %v1052 = vld [vmem:[%s3 + $0x58] sm:$0xf]
    %v1053 = vld [vmem:[%s3 + $0x5c] sm:$0xf]
    %v1054 = vld [vmem:[%s3 + $0x60] sm:$0xf]
    %v1055 = vld [vmem:[%s3 + $0x64] sm:$0xf]
    %v1056 = vld [vmem:[%s3 + $0x68] sm:$0xf]
    %v1057 = vld [vmem:[%s3 + $0x6c] sm:$0xf]
    %v1058 = vld [vmem:[%s3 + $0x70] sm:$0xf]
    %v1059 = vld [vmem:[%s3 + $0x74] sm:$0xf]
    %v1060 = vld [vmem:[%s3 + $0x78] sm:$0xf]
    %v1061 = vld [vmem:[%s3 + $0x7c] sm:$0xf]
    %v1062 = vld [vmem:[%s4] sm:$0x1]
    %v1064 = vperm.slane %v1062, 0
    %v1098 = vunpack.c.l.b16 %v1030
    %v1099 = vunpack.c.l.b16 %v1031
    %v1100 = vunpack.c.l.b16 %v1032
    %v1101 = vunpack.c.l.b16 %v1033
    %v1102 = vunpack.c.l.b16 %v1034
    %v1103 = vunpack.c.l.b16 %v1035
    %v1104 = vunpack.c.l.b16 %v1036
    %v1105 = vunpack.c.l.b16 %v1037
    %v1106 = vunpack.c.l.b16 %v1038
    %v1107 = vunpack.c.l.b16 %v1039
    %v1108 = vunpack.c.l.b16 %v1040
    %v1109 = vunpack.c.l.b16 %v1041
    %v1110 = vunpack.c.l.b16 %v1042
    %v1111 = vunpack.c.l.b16 %v1043
    %v1112 = vunpack.c.l.b16 %v1044
    %v1113 = vunpack.c.l.b16 %v1045
    %v1114 = vunpack.c.l.b16 %v1046
    %v1115 = vunpack.c.l.b16 %v1047
    %v1116 = vunpack.c.l.b16 %v1048
    %v1117 = vunpack.c.l.b16 %v1049
    %v1118 = vunpack.c.l.b16 %v1050
    %v1119 = vunpack.c.l.b16 %v1051
    %v1120 = vunpack.c.l.b16 %v1052
    %v1121 = vunpack.c.l.b16 %v1053
    %v1122 = vunpack.c.l.b16 %v1054
    %v1123 = vunpack.c.l.b16 %v1055
    %v1124 = vunpack.c.l.b16 %v1056
    %v1125 = vunpack.c.l.b16 %v1057
    %v1126 = vunpack.c.l.b16 %v1058
    %v1127 = vunpack.c.l.b16 %v1059
    %v1128 = vunpack.c.l.b16 %v1060
    %v1129 = vunpack.c.l.b16 %v1061
    %v1130 = vpack.c.b16 %v1099, %v1098
    %v1131 = vpack.c.b16 %v1101, %v1100
    %v1132 = vpack.c.b16 %v1103, %v1102
    %v1133 = vpack.c.b16 %v1105, %v1104
    %v1134 = vpack.c.b16 %v1107, %v1106
    %v1135 = vpack.c.b16 %v1109, %v1108
    %v1136 = vpack.c.b16 %v1111, %v1110
    %v1137 = vpack.c.b16 %v1113, %v1112
    %v1138 = vpack.c.b16 %v1115, %v1114
    %v1139 = vpack.c.b16 %v1117, %v1116
    %v1140 = vpack.c.b16 %v1119, %v1118
    %v1141 = vpack.c.b16 %v1121, %v1120
    %v1142 = vpack.c.b16 %v1123, %v1122
    %v1143 = vpack.c.b16 %v1125, %v1124
    %v1144 = vpack.c.b16 %v1127, %v1126
    %v1145 = vpack.c.b16 %v1129, %v1128
    %1162 = vmatpush.bf16.msra.mxu0 %v1137
    %1163 = vmatpush.bf16.msra.mxu0 %v1136
    %1164 = vmatpush.bf16.msra.mxu0 %v1135
    %1165 = vmatpush.bf16.msra.mxu0 %v1134
    %1166 = vmatpush.bf16.msra.mxu0 %v1133
    %1167 = vmatpush.bf16.msra.mxu0 %v1132
    %1168 = vmatpush.bf16.msra.mxu0 %v1131
    %1169 = vmatpush.bf16.msra.mxu0 %v1130
    %1170 = vmatmul.bf16.gmra.mxu0 %v1028
    %v1171 = vpop.f32.mrf.mxu0
    %v1172 = vadd.f32 %v1064, %v1171
    %v1173 = vpop.f32.mrf.mxu0
    %1174 = vdwg.mxu0
    %1175 = vmatpush.bf16.msra.mxu0 %v1145
    %1176 = vmatpush.bf16.msra.mxu0 %v1144
    %1177 = vmatpush.bf16.msra.mxu0 %v1143
    %1178 = vmatpush.bf16.msra.mxu0 %v1142
    %1179 = vmatpush.bf16.msra.mxu0 %v1141
    %1180 = vmatpush.bf16.msra.mxu0 %v1140
    %1181 = vmatpush.bf16.msra.mxu0 %v1139
    %1182 = vmatpush.bf16.msra.mxu0 %v1138
    %1183 = vmatmul.bf16.gmra.mxu0 %v1029
    %v1184 = vpop.f32.mrf.mxu0
    %v1185 = vadd.f32 %v1172, %v1184
    %v1186 = vpop.f32.mrf.mxu0
    %1187 = vdwg.mxu0
    %v1188 = vmax.f32 %v1185, 0.0
    %v1189 = vpack.c.bf16 %v1188, %v1188
    %v1190 = vld [vmem:[%s5] sm:$0xf]
    %v1191 = vld [vmem:[%s5 + $0x4] sm:$0xf]
    %v1192 = vld [vmem:[%s5 + $0x8] sm:$0xf]
    %v1193 = vld [vmem:[%s5 + $0xc] sm:$0xf]
    %v1194 = vld [vmem:[%s5 + $0x10] sm:$0xf]
    %v1195 = vld [vmem:[%s5 + $0x14] sm:$0xf]
    %v1196 = vld [vmem:[%s5 + $0x18] sm:$0xf]
    %v1197 = vld [vmem:[%s5 + $0x1c] sm:$0xf]
    %v1198 = vld [vmem:[%s6] sm:$0x1]
    %v1200 = vperm.slane %v1198, 0
    %v1210 = vunpack.c.l.b16 %v1190
    %v1211 = vunpack.c.l.b16 %v1191
    %v1212 = vunpack.c.l.b16 %v1192
    %v1213 = vunpack.c.l.b16 %v1193
    %v1214 = vunpack.c.l.b16 %v1194
    %v1215 = vunpack.c.l.b16 %v1195
    %v1216 = vunpack.c.l.b16 %v1196
    %v1217 = vunpack.c.l.b16 %v1197
    %v1218 = vpack.c.b16 %v1211, %v1210
    %v1219 = vpack.c.b16 %v1213, %v1212
    %v1220 = vpack.c.b16 %v1215, %v1214
    %v1221 = vpack.c.b16 %v1217, %v1216
    %vm1226 = vcmask 523264
    %v1228 = vsel %vm1226, %v1189, 0
    %1230 = vmatpush.bf16.msra.mxu0 0
    %1231 = vmatpush.bf16.msra.mxu0 0
    %1232 = vmatpush.bf16.msra.mxu0 0
    %1233 = vmatpush.bf16.msra.mxu0 0
    %1234 = vmatpush.bf16.msra.mxu0 %v1221
    %1235 = vmatpush.bf16.msra.mxu0 %v1220
    %1236 = vmatpush.bf16.msra.mxu0 %v1219
    %1237 = vmatpush.bf16.msra.mxu0 %v1218
    %1238 = vmatmul.bf16.gmra.mxu0 %v1228
    %v1239 = vpop.f32.mrf.mxu0
    %v1240 = vadd.f32 %v1200, %v1239
    %v1241 = vpop.f32.mrf.mxu0
    %1242 = vdwg.mxu0
    %vm1243 = vcmask 56320
    %1244 = vst.msk [vmem:[#allocation2] sm:$0xff] %vm1243, %v1240
    // Predicated region
    $region30: #{classifier_forward.3} parent=1 // pred_check
      _
    $region31: #{classifier_forward.3} parent=1 // pred_check_branch
      %1246 = sbr.rel (0) target = $region33
    $region32: #{classifier_forward.3} parent=1 // pred_region
      %1248 = vsyncadd [#allocation3], 0
      %s1250 = sshll.u32 [#allocation2], 4
      %s1251 = int_to_ptr.vmem [resolvable:$true] %s1250
      %s1252 = sshll.u32 %s7, 4
      %s1253 = int_to_ptr.hbm [resolvable:$true] %s1252
      %1255 = dma.vmem_to_hbm [thread:$0]  %s1251, 128, %s1253, [#allocation3]
    $region33: #{classifier_forward.3} parent=1 // pred_fallthru
      _
    // Predicated region
    $region34: #{classifier_forward.3} parent=1 // pred_check
      _
    $region35: #{classifier_forward.3} parent=1 // pred_check_branch
      %1257 = sbr.rel (0) target = $region37
    $region36: #{classifier_forward.3} parent=1 // pred_region
      %1259 = dma.done [#allocation3], 128
    $region37: #{classifier_forward.3} parent=1 // pred_fallthru
      _
    %1260 = vsyncpa [#allocation3], 1

// kernel: classifier_forward.2
$region0: #{classifier_forward.2}
  #allocation0 [shape = 'u32[]', space=smem, size = 0x4, offset = 0x4, fixed_abs, tag = 'smem constant byte address 0x4 - core index']
  #allocation1 [shape = 'u32[72,128]{1,0:T(1,128)}', space=vmem, size = 0x9000, scoped, tag = 'internal scratch']
  #allocation2 [shape = 'f32[8,512]{1,0:T(8,128)}', space=vmem, size = 0x4000, scoped, tag = 'scratch operand']
  %s0 = inlined_call_operand.hbm [shape: f32[8,4096], index: 0, kind: input, shape index: {}]
  %s1 = inlined_call_operand.hbm [shape: bf16[4096,1024], index: 1, kind: input, shape index: {}]
  %s2 = inlined_call_operand.hbm [shape: f32[1,1024], index: 2, kind: input, shape index: {}]
  %s3 = inlined_call_operand.vmem [shape: f32[8,1024], index: 3, kind: output, shape index: {}]
  %s4 = sld [smem:[#allocation0]]
  $region65: #{classifier_forward.2} parent=0
    _
  %s6 = ssub.s32 1, %s4
  %s7 = scalar_select 0, %s6, %s4
  $region1: #{classifier_forward.2} parent=0
    #allocation3 [shape = 'u8[131072]{0}', space=vmem, size = 0x20000, scoped, tag = 'input window, operand 0']
    #allocation4 [shape = 's32[2]{0}', space=sflag, size = 0x8, scoped, tag = 'scoped memory for classifier_forward.2']
    #allocation5 [shape = 'u8[4194304]{0}', space=vmem, size = 0x400000, scoped, tag = 'input window, operand 1']
    #allocation6 [shape = 's32[2]{0}', space=sflag, size = 0x8, scoped, tag = 'scoped memory for classifier_forward.2']
    #allocation7 [shape = 'u8[4096]{0}', space=vmem, size = 0x1000, scoped, tag = 'input window, operand 2']
    %8 = vsyncpa [#allocation4], 0
    %s9 = scalar_lea.sflag [#allocation4], 1
    %10 = vsyncpa %s9, 0
    %11 = vsyncpa [#allocation6], 0
    %s12 = scalar_lea.sflag [#allocation6], 1
    %13 = vsyncpa %s12, 0
    loop: start=0, step=1, limit=6
    $region2: #{classifier_forward.2} parent=1 // loop_pre_header
      _
    $region3: #{classifier_forward.2} parent=1 // loop_header
      %s15 = sphi 0, %s19
      %p16 = scmp.ge.s32.totalorder %s15, 6
      %s22 = sphi 0, %s41
      %s23 = sphi 0, %s37
      %s24 = sphi 0, %s33
      %s25 = sphi 0, %s22
      %s26 = sphi 0, %s23
      %s27 = sphi 0, %s24
      %s28 = sphi 0, %s25
      %s29 = sphi 0, %s26
      %s30 = sphi 0, %s27
      %s46 = sphi 0, %s48
      %s49 = sphi 0, %s46
      %s50 = sphi 0, %s49
      %s66 = sphi 0, %s50
      %s74 = sphi 0, %s76
      %s77 = sphi 0, %s74
      %s78 = sphi 0, %s77
      %s94 = sphi 0, %s78
      %s100 = sphi 0, %s102
      %s103 = sphi 0, %s100
      %s104 = sphi 0, %s103
      %s120 = sphi 0, %s104
      %s128 = sphi 0, %s130
      %s131 = sphi 0, %s128
      %s132 = sphi 0, %s131
      %s148 = sphi 0, %s132
    $region4: #{classifier_forward.2} parent=1 // loop_header_branch
      %18 = sbr.rel (%p16) target = $region8
    $region5: #{classifier_forward.2} parent=1 // loop_body
      %s20 = ssub.s32 %s15, 1
      %s21 = ssub.s32 %s15, 2
      %s31 = sadd.s32 1, %s24
      %p32 = scmp.ge.s32.totalorder %s31, 2
      %s33 = scalar_select %p32, 0, %s31
      %s34 = sadd.s32 1, %s23
      %s35 = scalar_select %p32, %s34, %s23
      %p36 = scmp.ge.s32.totalorder %s35, 1
      %s37 = scalar_select %p36, 0, %s35
      %s38 = sadd.s32 1, %s22
      %s39 = scalar_select %p36, %s38, %s22
      %p40 = scmp.ge.s32.totalorder %s39, 2
      %s41 = scalar_select %p40, 0, %s39
      %s42 = ssub.s32 %s23, %s37
      %s43 = ssub.s32 %s24, %s33
      %s44 = sor.u32 %s42, %s43
      %p45 = scmp.eq.s32.totalorder %s44, 0
      %s47 = sadd.s32 %s46, 1
      %s48 = scalar_select %p45, %s46, %s47
      %p51 = pneg %p45
      %p52 = scmp.eq.s32.totalorder %s15, 3
      %p53 = por %p51, %p52
      %p54 = scmp.ne.s32.totalorder %s46, %s49
      %p55 = scmp.eq.s32.totalorder %s15, 0
      %p56 = por %p54, %p55
      %p57 = scmp.ne.s32.totalorder %s46, %s49
      %p58 = scmp.eq.s32.totalorder %s20, 3
      %p59 = por %p57, %p58
      %p60 = scmp.ne.s32.totalorder %s49, %s50
      %p61 = scmp.eq.s32.totalorder %s20, 0
      %p62 = por %p60, %p61
      %p63 = scmp.ne.s32.totalorder %s49, %s50
      %p64 = scmp.eq.s32.totalorder %s21, 3
      %p65 = por %p63, %p64
      %p67 = scmp.ne.s32.totalorder %s50, %s66
      %p68 = scmp.eq.s32.totalorder %s21, 0
      %p69 = por %p67, %p68
      %s70 = ssub.s32 %s24, %s33
      %s71 = ssub.s32 %s22, %s41
      %s72 = sor.u32 %s70, %s71
      %p73 = scmp.eq.s32.totalorder %s72, 0
      %s75 = sadd.s32 %s74, 1
      %s76 = scalar_select %p73, %s74, %s75
      %p79 = pneg %p73
      %p80 = scmp.eq.s32.totalorder %s15, 3
      %p81 = por %p79, %p80
      %p82 = scmp.ne.s32.totalorder %s74, %s77
      %p83 = scmp.eq.s32.totalorder %s15, 0
      %p84 = por %p82, %p83
      %p85 = scmp.ne.s32.totalorder %s74, %s77
      %p86 = scmp.eq.s32.totalorder %s20, 3
      %p87 = por %p85, %p86
      %p88 = scmp.ne.s32.totalorder %s77, %s78
      %p89 = scmp.eq.s32.totalorder %s20, 0
      %p90 = por %p88, %p89
      %p91 = scmp.ne.s32.totalorder %s77, %s78
      %p92 = scmp.eq.s32.totalorder %s21, 3
      %p93 = por %p91, %p92
      %p95 = scmp.ne.s32.totalorder %s78, %s94
      %p96 = scmp.eq.s32.totalorder %s21, 0
      %p97 = por %p95, %p96
      %s98 = ssub.s32 %s22, %s41
      %p99 = scmp.eq.s32.totalorder %s98, 0
      %s101 = sadd.s32 %s100, 1
      %s102 = scalar_select %p99, %s100, %s101
      %p105 = pneg %p99
      %p106 = scmp.eq.s32.totalorder %s15, 3
      %p107 = por %p105, %p106
      %p108 = scmp.ne.s32.totalorder %s100, %s103
      %p109 = scmp.eq.s32.totalorder %s15, 0
      %p110 = por %p108, %p109
      %p111 = scmp.ne.s32.totalorder %s100, %s103
      %p112 = scmp.eq.s32.totalorder %s20, 3
      %p113 = por %p111, %p112
      %p114 = scmp.ne.s32.totalorder %s103, %s104
      %p115 = scmp.eq.s32.totalorder %s20, 0
      %p116 = por %p114, %p115
      %p117 = scmp.ne.s32.totalorder %s103, %s104
      %p118 = scmp.eq.s32.totalorder %s21, 3
      %p119 = por %p117, %p118
      %p121 = scmp.ne.s32.totalorder %s104, %s120
      %p122 = scmp.eq.s32.totalorder %s21, 0
      %p123 = por %p121, %p122
      %s124 = ssub.s32 %s23, %s37
      %s125 = ssub.s32 %s22, %s41
      %s126 = sor.u32 %s124, %s125
      %p127 = scmp.eq.s32.totalorder %s126, 0
      %s129 = sadd.s32 %s128, 1
      %s130 = scalar_select %p127, %s128, %s129
      %p133 = pneg %p127
      %p134 = scmp.eq.s32.totalorder %s15, 3
      %p135 = por %p133, %p134
      %p136 = scmp.ne.s32.totalorder %s128, %s131
      %p137 = scmp.eq.s32.totalorder %s15, 0
      %p138 = por %p136, %p137
      %p139 = scmp.ne.s32.totalorder %s128, %s131
      %p140 = scmp.eq.s32.totalorder %s20, 3
      %p141 = por %p139, %p140
      %p142 = scmp.ne.s32.totalorder %s131, %s132
      %p143 = scmp.eq.s32.totalorder %s20, 0
      %p144 = por %p142, %p143
      %p145 = scmp.ne.s32.totalorder %s131, %s132
      %p146 = scmp.eq.s32.totalorder %s21, 3
      %p147 = por %p145, %p146
      %p149 = scmp.ne.s32.totalorder %s132, %s148
      %p150 = scmp.eq.s32.totalorder %s21, 0
      %p151 = por %p149, %p150
      %p152 = scmp.le.s32.totalorder 1, %s15
      %p153 = scmp.lt.s32.totalorder %s15, 5
      %p154 = pnand %p152, %p153
      %p155 = pneg %p154
      // Predicated region
      $region9: #{classifier_forward.2} parent=5 // pred_check
        _
      $region10: #{classifier_forward.2} parent=5 // pred_check_branch
        %157 = sbr.rel (%p154) target = $region12
      $region11: #{classifier_forward.2} parent=5 // pred_region
        %s158 = ssub.s32 %s15, 1
      $region12: #{classifier_forward.2} parent=5 // pred_fallthru
        _
      %p159 = scmp.lt.s32.totalorder %s15, 4
      // Predicated region
      $region13: #{classifier_forward.2} parent=5 // pred_check
        %p160 = pneg %p159
      $region14: #{classifier_forward.2} parent=5 // pred_check_branch
        %162 = sbr.rel (%p160) target = $region16
      $region15: #{classifier_forward.2} parent=5 // pred_region
        // Predicated region
        $region17: #{classifier_forward.2} parent=15 // pred_check
          %p163 = pneg %p56
        $region18: #{classifier_forward.2} parent=15 // pred_check_branch
          %165 = sbr.rel (%p163) target = $region20
        $region19: #{classifier_forward.2} parent=15 // pred_region
          %s166 = sand.u32 %s46, 1
          %s167 = scalar_lea.sflag [#allocation4], %s166
          %s168 = sand.u32 %s46, 1
          %s169 = smul.addr %s168, 128
          %s170 = scalar_lea.vmem [#allocation3], %s169
          %s171 = smul.u32 16, %s24
          %173 = vsyncadd %s167, 0
          %s174 = smul.addr %s23, 32
          %s175 = sadd.s32 %s171, %s174
          %s176 = smul.addr %s175, 8
          %s177 = scalar_lea.hbm %s0, %s176
          %s179 = sshll.u32 %s177, 4
          %s180 = int_to_ptr.hbm [resolvable:$true] %s179
          %s181 = sshll.u32 %s170, 4
          %s182 = int_to_ptr.vmem [resolvable:$true] %s181
          %184 = dma.hbm_to_vmem [thread:$0]  %s180, 2048, %s182, %s167
        $region20: #{classifier_forward.2} parent=15 // pred_fallthru
          _
        // Predicated region
        $region21: #{classifier_forward.2} parent=15 // pred_check
          %p185 = pneg %p84
        $region22: #{classifier_forward.2} parent=15 // pred_check_branch
          %187 = sbr.rel (%p185) target = $region24
        $region23: #{classifier_forward.2} parent=15 // pred_region
          %s188 = sand.u32 %s15, 1
          %s189 = scalar_lea.sflag [#allocation6], %s188
          %s190 = sand.u32 %s74, 1
          %s191 = smul.addr %s190, 4096
          %s192 = scalar_lea.vmem [#allocation5], %s191
          %s193 = smul.u32 256, %s24
          %s194 = smul.u32 4, %s22
          %196 = vsyncadd %s189, 0
          %s197 = smul.addr %s193, 8
          %s198 = sadd.s32 %s194, %s197
          %s199 = smul.addr %s198, 4
          %s200 = scalar_lea.hbm %s1, %s199
          %s201 = sshll.u32 %s200, 4
          %s202 = int_to_ptr.hbm [resolvable:$true] %s201
          %s203 = sshll.u32 %s192, 4
          %s204 = int_to_ptr.vmem [resolvable:$true] %s203
          %209 = dma.hbm_to_vmem [thread:$0]  %s202, 65536, %s204, %s189, 512, 256, 16
        $region24: #{classifier_forward.2} parent=15 // pred_fallthru
          _
        // Predicated region
        $region25: #{classifier_forward.2} parent=15 // pred_check
          %p210 = pneg %p110
        $region26: #{classifier_forward.2} parent=15 // pred_check_branch
          %212 = sbr.rel (%p210) target = $region28
        $region27: #{classifier_forward.2} parent=15 // pred_region
          %s213 = sand.u32 %s15, 1
          %s214 = scalar_lea.sflag [#allocation6], %s213
          %s215 = sand.u32 %s100, 1
          %s216 = smul.addr %s215, 4
          %s217 = scalar_lea.vmem [#allocation7], %s216
          %s218 = smul.u32 4, %s22
          %220 = vsyncadd %s214, 0
          %s221 = scalar_lea.hbm %s2, %s218
          %s223 = sshll.u32 %s221, 4
          %s224 = int_to_ptr.hbm [resolvable:$true] %s223
          %s225 = sshll.u32 %s217, 4
          %s226 = int_to_ptr.vmem [resolvable:$true] %s225
          %228 = dma.hbm_to_vmem [thread:$0]  %s224, 64, %s226, %s214
        $region28: #{classifier_forward.2} parent=15 // pred_fallthru
          _
      $region16: #{classifier_forward.2} parent=5 // pred_fallthru
        _
      %p229 = scmp.le.s32.totalorder 1, %s15
      %p230 = scmp.lt.s32.totalorder %s15, 5
      %p231 = pnand %p229, %p230
      %p232 = pneg %p231
      // Predicated region
      $region29: #{classifier_forward.2} parent=5 // pred_check
        _
      $region30: #{classifier_forward.2} parent=5 // pred_check_branch
        %234 = sbr.rel (%p231) target = $region32
      $region31: #{classifier_forward.2} parent=5 // pred_region
        %s235 = ssub.s32 %s15, 1
        %s236 = sand.u32 %s49, 1
        %s237 = scalar_lea.sflag [#allocation4], %s236
        %s238 = sand.u32 %s49, 1
        %s239 = smul.addr %s238, 128
        %s240 = scalar_lea.vmem [#allocation3], %s239
        // Predicated region
        $region33: #{classifier_forward.2} parent=31 // pred_check
          %p241 = pneg %p62
        $region34: #{classifier_forward.2} parent=31 // pred_check_branch
          %243 = sbr.rel (%p241) target = $region36
        $region35: #{classifier_forward.2} parent=31 // pred_region
          %245 = dma.done %s237, 2048
        $region36: #{classifier_forward.2} parent=31 // pred_fallthru
          _
        %s246 = sand.u32 %s20, 1
        %s247 = scalar_lea.sflag [#allocation6], %s246
        %s248 = sand.u32 %s77, 1
        %s249 = smul.addr %s248, 4096
        %s250 = scalar_lea.vmem [#allocation5], %s249
        // Predicated region
        $region37: #{classifier_forward.2} parent=31 // pred_check
          %p251 = pneg %p90
        $region38: #{classifier_forward.2} parent=31 // pred_check_branch
          %253 = sbr.rel (%p251) target = $region40
        $region39: #{classifier_forward.2} parent=31 // pred_region
          %255 = dma.done %s247, 65536
        $region40: #{classifier_forward.2} parent=31 // pred_fallthru
          _
        %s256 = sand.u32 %s20, 1
        %s257 = scalar_lea.sflag [#allocation6], %s256
        %s258 = sand.u32 %s103, 1
        %s259 = smul.addr %s258, 4
        %s260 = scalar_lea.vmem [#allocation7], %s259
        // Predicated region
        $region41: #{classifier_forward.2} parent=31 // pred_check
          %p261 = pneg %p116
        $region42: #{classifier_forward.2} parent=31 // pred_check_branch
          %263 = sbr.rel (%p261) target = $region44
        $region43: #{classifier_forward.2} parent=31 // pred_region
          %265 = dma.done %s257, 64
        $region44: #{classifier_forward.2} parent=31 // pred_fallthru
          _
        %s266 = sand.u32 %s49, 1
        %s267 = scalar_lea.sflag [#allocation4], %s266
        %s268 = sand.u32 %s49, 1
        %s269 = smul.addr %s268, 128
        %s270 = scalar_lea.vmem [#allocation3], %s269
        %p271 = pneg %p62
        %p272 = pneg %p59
        %s273 = sand.u32 %s20, 1
        %s274 = scalar_lea.sflag [#allocation6], %s273
        %s275 = sand.u32 %s77, 1
        %s276 = smul.addr %s275, 4096
        %s277 = scalar_lea.vmem [#allocation5], %s276
        %p278 = pneg %p90
        %p279 = pneg %p87
        %s280 = sand.u32 %s20, 1
        %s281 = scalar_lea.sflag [#allocation6], %s280
        %s282 = sand.u32 %s103, 1
        %s283 = smul.addr %s282, 4
        %s284 = scalar_lea.vmem [#allocation7], %s283
        %p285 = pneg %p116
        %p286 = pneg %p113
        %p287 = pneg %p144
        %p288 = pneg %p141
        %s289 = smul.u32 4, %s25
        %p290 = scmp.lt.s32.totalorder %s26, 0
        %s291 = scalar_select %p290, %s26, 0
        %p292 = scmp.lt.s32.totalorder %s289, 7
        %s293 = scalar_select %p292, %s289, 7
        %s294 = smul.addr %s291, 8
        %s295 = sadd.s32 %s293, %s294
        %s296 = smul.addr %s295, 8
        %s297 = scalar_lea.vmem %s3, %s296
        %s298 = smul.u32 16, %s27
        %s299 = smul.u32 256, %s27
        %s300 = smul.u32 4, %s25
        %s301 = smul.u32 4, %s25
        %s302 = smul.u32 4, %s25
        %p303 = scmp.lt.s32.totalorder %s26, 0
        %s304 = scalar_select %p303, %s26, 0
        %p305 = scmp.lt.s32.totalorder %s302, 7
        %s306 = scalar_select %p305, %s302, 7
        %s307 = smul.addr %s304, 8
        %s308 = sadd.s32 %s306, %s307
        %s309 = smul.addr %s308, 8
        %s310 = scalar_lea.vmem %s3, %s309
        %s311 = smul.u32 4, %s25
        %p312 = scmp.eq.s32.totalorder %s27, 0
        // Predicated region
        $region45: #{classifier_forward.2} parent=31 // pred_check
          %p313 = pneg %p312
        $region46: #{classifier_forward.2} parent=31 // pred_check_branch
          %315 = sbr.rel (%p313) target = $region48
        $region47: #{classifier_forward.2} parent=31 // pred_region
          %316 = vst [vmem:[#allocation2] sm:$0xff] 0.0
          %317 = vst [vmem:[#allocation2 + $0x8] sm:$0xff] 0.0
          %318 = vst [vmem:[#allocation2 + $0x10] sm:$0xff] 0.0
          %319 = vst [vmem:[#allocation2 + $0x18] sm:$0xff] 0.0
        $region48: #{classifier_forward.2} parent=31 // pred_fallthru
          _
        %v320 = vld [vmem:[#allocation2] sm:$0xff]
        %v321 = vld [vmem:[#allocation2 + $0x8] sm:$0xff]
        %v322 = vld [vmem:[#allocation2 + $0x10] sm:$0xff]
        %v323 = vld [vmem:[#allocation2 + $0x18] sm:$0xff]
        %v324 = vld [vmem:[%s240] sm:$0xff]
        %v325 = vld [vmem:[%s240 + $0x8] sm:$0xff]
        %v326 = vld [vmem:[%s240 + $0x10] sm:$0xff]
        %v327 = vld [vmem:[%s240 + $0x18] sm:$0xff]
        %v328 = vld [vmem:[%s240 + $0x20] sm:$0xff]
        %v329 = vld [vmem:[%s240 + $0x28] sm:$0xff]
        %v330 = vld [vmem:[%s240 + $0x30] sm:$0xff]
        %v331 = vld [vmem:[%s240 + $0x38] sm:$0xff]
        %v332 = vld [vmem:[%s240 + $0x40] sm:$0xff]
        %v333 = vld [vmem:[%s240 + $0x48] sm:$0xff]
        %v334 = vld [vmem:[%s240 + $0x50] sm:$0xff]
        %v335 = vld [vmem:[%s240 + $0x58] sm:$0xff]
        %v336 = vld [vmem:[%s240 + $0x60] sm:$0xff]
        %v337 = vld [vmem:[%s240 + $0x68] sm:$0xff]
        %v338 = vld [vmem:[%s240 + $0x70] sm:$0xff]
        %v339 = vld [vmem:[%s240 + $0x78] sm:$0xff]
        %v340 = vpack.c.bf16 %v324, %v324
        %v341 = vpack.c.bf16 %v325, %v325
        %v342 = vpack.c.bf16 %v326, %v326
        %v343 = vpack.c.bf16 %v327, %v327
        %v344 = vpack.c.bf16 %v328, %v328
        %v345 = vpack.c.bf16 %v329, %v329
        %v346 = vpack.c.bf16 %v330, %v330
        %v347 = vpack.c.bf16 %v331, %v331
        %v348 = vpack.c.bf16 %v332, %v332
        %v349 = vpack.c.bf16 %v333, %v333
        %v350 = vpack.c.bf16 %v334, %v334
        %v351 = vpack.c.bf16 %v335, %v335
        %v352 = vpack.c.bf16 %v336, %v336
        %v353 = vpack.c.bf16 %v337, %v337
        %v354 = vpack.c.bf16 %v338, %v338
        %v355 = vpack.c.bf16 %v339, %v339
        %v356 = vld [vmem:[%s250] sm:$0xff]
        %v357 = vld [vmem:[%s250 + $0x8] sm:$0xff]
        %v358 = vld [vmem:[%s250 + $0x10] sm:$0xff]
        %v359 = vld [vmem:[%s250 + $0x18] sm:$0xff]
        %v360 = vld [vmem:[%s250 + $0x20] sm:$0xff]
        %v361 = vld [vmem:[%s250 + $0x28] sm:$0xff]
        %v362 = vld [vmem:[%s250 + $0x30] sm:$0xff]
        %v363 = vld [vmem:[%s250 + $0x38] sm:$0xff]
        %v364 = vld [vmem:[%s250 + $0x40] sm:$0xff]
        %v365 = vld [vmem:[%s250 + $0x48] sm:$0xff]
        %v366 = vld [vmem:[%s250 + $0x50] sm:$0xff]
        %v367 = vld [vmem:[%s250 + $0x58] sm:$0xff]
        %v368 = vld [vmem:[%s250 + $0x60] sm:$0xff]
        %v369 = vld [vmem:[%s250 + $0x68] sm:$0xff]
        %v370 = vld [vmem:[%s250 + $0x70] sm:$0xff]
        %v371 = vld [vmem:[%s250 + $0x78] sm:$0xff]
        %v372 = vld [vmem:[%s250 + $0x80] sm:$0xff]
        %v373 = vld [vmem:[%s250 + $0x88] sm:$0xff]
        %v374 = vld [vmem:[%s250 + $0x90] sm:$0xff]
        %v375 = vld [vmem:[%s250 + $0x98] sm:$0xff]
        %v376 = vld [vmem:[%s250 + $0xa0] sm:$0xff]
        %v377 = vld [vmem:[%s250 + $0xa8] sm:$0xff]
        %v378 = vld [vmem:[%s250 + $0xb0] sm:$0xff]
        %v379 = vld [vmem:[%s250 + $0xb8] sm:$0xff]
        %v380 = vld [vmem:[%s250 + $0xc0] sm:$0xff]
        %v381 = vld [vmem:[%s250 + $0xc8] sm:$0xff]
        %v382 = vld [vmem:[%s250 + $0xd0] sm:$0xff]
        %v383 = vld [vmem:[%s250 + $0xd8] sm:$0xff]
        %v384 = vld [vmem:[%s250 + $0xe0] sm:$0xff]
        %v385 = vld [vmem:[%s250 + $0xe8] sm:$0xff]
        %v386 = vld [vmem:[%s250 + $0xf0] sm:$0xff]
        %v387 = vld [vmem:[%s250 + $0xf8] sm:$0xff]
        %v388 = vld [vmem:[%s250 + $0x100] sm:$0xff]
        %v389 = vld [vmem:[%s250 + $0x108] sm:$0xff]
        %v390 = vld [vmem:[%s250 + $0x110] sm:$0xff]
        %v391 = vld [vmem:[%s250 + $0x118] sm:$0xff]
        %v392 = vld [vmem:[%s250 + $0x120] sm:$0xff]
        %v393 = vld [vmem:[%s250 + $0x128] sm:$0xff]
        %v394 = vld [vmem:[%s250 + $0x130] sm:$0xff]
        %v395 = vld [vmem:[%s250 + $0x138] sm:$0xff]
        %v396 = vld [vmem:[%s250 + $0x140] sm:$0xff]
        %v397 = vld [vmem:[%s250 + $0x148] sm:$0xff]
        %v398 = vld [vmem:[%s250 + $0x150] sm:$0xff]
        %v399 = vld [vmem:[%s250 + $0x158] sm:$0xff]
        %v400 = vld [vmem:[%s250 + $0x160] sm:$0xff]
        %v401 = vld [vmem:[%s250 + $0x168] sm:$0xff]
        %v402 = vld [vmem:[%s250 + $0x170] sm:$0xff]
        %v403 = vld [vmem:[%s250 + $0x178] sm:$0xff]
        %v404 = vld [vmem:[%s250 + $0x180] sm:$0xff]
        %v405 = vld [vmem:[%s250 + $0x188] sm:$0xff]
        %v406 = vld [vmem:[%s250 + $0x190] sm:$0xff]
        %v407 = vld [vmem:[%s250 + $0x198] sm:$0xff]
        %v408 = vld [vmem:[%s250 + $0x1a0] sm:$0xff]
        %v409 = vld [vmem:[%s250 + $0x1a8] sm:$0xff]
        %v410 = vld [vmem:[%s250 + $0x1b0] sm:$0xff]
        %v411 = vld [vmem:[%s250 + $0x1b8] sm:$0xff]
        %v412 = vld [vmem:[%s250 + $0x1c0] sm:$0xff]
        %v413 = vld [vmem:[%s250 + $0x1c8] sm:$0xff]
        %v414 = vld [vmem:[%s250 + $0x1d0] sm:$0xff]
        %v415 = vld [vmem:[%s250 + $0x1d8] sm:$0xff]
        %v416 = vld [vmem:[%s250 + $0x1e0] sm:$0xff]
        %v417 = vld [vmem:[%s250 + $0x1e8] sm:$0xff]
        %v418 = vld [vmem:[%s250 + $0x1f0] sm:$0xff]
        %v419 = vld [vmem:[%s250 + $0x1f8] sm:$0xff]
        %v420 = vld [vmem:[%s250 + $0x200] sm:$0xff]
        %v421 = vld [vmem:[%s250 + $0x208] sm:$0xff]
        %v422 = vld [vmem:[%s250 + $0x210] sm:$0xff]
        %v423 = vld [vmem:[%s250 + $0x218] sm:$0xff]
        %v424 = vld [vmem:[%s250 + $0x220] sm:$0xff]
        %v425 = vld [vmem:[%s250 + $0x228] sm:$0xff]
        %v426 = vld [vmem:[%s250 + $0x230] sm:$0xff]
        %v427 = vld [vmem:[%s250 + $0x238] sm:$0xff]
        %v428 = vld [vmem:[%s250 + $0x240] sm:$0xff]
        %v429 = vld [vmem:[%s250 + $0x248] sm:$0xff]
        %v430 = vld [vmem:[%s250 + $0x250] sm:$0xff]
        %v431 = vld [vmem:[%s250 + $0x258] sm:$0xff]
        %v432 = vld [vmem:[%s250 + $0x260] sm:$0xff]
        %v433 = vld [vmem:[%s250 + $0x268] sm:$0xff]
        %v434 = vld [vmem:[%s250 + $0x270] sm:$0xff]
        %v435 = vld [vmem:[%s250 + $0x278] sm:$0xff]
        %v436 = vld [vmem:[%s250 + $0x280] sm:$0xff]
        %v437 = vld [vmem:[%s250 + $0x288] sm:$0xff]
        %v438 = vld [vmem:[%s250 + $0x290] sm:$0xff]
        %v439 = vld [vmem:[%s250 + $0x298] sm:$0xff]
        %v440 = vld [vmem:[%s250 + $0x2a0] sm:$0xff]
        %v441 = vld [vmem:[%s250 + $0x2a8] sm:$0xff]
        %v442 = vld [vmem:[%s250 + $0x2b0] sm:$0xff]
        %v443 = vld [vmem:[%s250 + $0x2b8] sm:$0xff]
        %v444 = vld [vmem:[%s250 + $0x2c0] sm:$0xff]
        %v445 = vld [vmem:[%s250 + $0x2c8] sm:$0xff]
        %v446 = vld [vmem:[%s250 + $0x2d0] sm:$0xff]
        %v447 = vld [vmem:[%s250 + $0x2d8] sm:$0xff]
        %v448 = vld [vmem:[%s250 + $0x2e0] sm:$0xff]
        %v449 = vld [vmem:[%s250 + $0x2e8] sm:$0xff]
        %v450 = vld [vmem:[%s250 + $0x2f0] sm:$0xff]
        %v451 = vld [vmem:[%s250 + $0x2f8] sm:$0xff]
        %v452 = vld [vmem:[%s250 + $0x300] sm:$0xff]
        %v453 = vld [vmem:[%s250 + $0x308] sm:$0xff]
        %v454 = vld [vmem:[%s250 + $0x310] sm:$0xff]
        %v455 = vld [vmem:[%s250 + $0x318] sm:$0xff]
        %v456 = vld [vmem:[%s250 + $0x320] sm:$0xff]
        %v457 = vld [vmem:[%s250 + $0x328] sm:$0xff]
        %v458 = vld [vmem:[%s250 + $0x330] sm:$0xff]
        %v459 = vld [vmem:[%s250 + $0x338] sm:$0xff]
        %v460 = vld [vmem:[%s250 + $0x340] sm:$0xff]
        %v461 = vld [vmem:[%s250 + $0x348] sm:$0xff]
        %v462 = vld [vmem:[%s250 + $0x350] sm:$0xff]
        %v463 = vld [vmem:[%s250 + $0x358] sm:$0xff]
        %v464 = vld [vmem:[%s250 + $0x360] sm:$0xff]
        %v465 = vld [vmem:[%s250 + $0x368] sm:$0xff]
        %v466 = vld [vmem:[%s250 + $0x370] sm:$0xff]
        %v467 = vld [vmem:[%s250 + $0x378] sm:$0xff]
        %v468 = vld [vmem:[%s250 + $0x380] sm:$0xff]
        %v469 = vld [vmem:[%s250 + $0x388] sm:$0xff]
        %v470 = vld [vmem:[%s250 + $0x390] sm:$0xff]
        %v471 = vld [vmem:[%s250 + $0x398] sm:$0xff]
        %v472 = vld [vmem:[%s250 + $0x3a0] sm:$0xff]
        %v473 = vld [vmem:[%s250 + $0x3a8] sm:$0xff]
        %v474 = vld [vmem:[%s250 + $0x3b0] sm:$0xff]
        %v475 = vld [vmem:[%s250 + $0x3b8] sm:$0xff]
        %v476 = vld [vmem:[%s250 + $0x3c0] sm:$0xff]
        %v477 = vld [vmem:[%s250 + $0x3c8] sm:$0xff]
        %v478 = vld [vmem:[%s250 + $0x3d0] sm:$0xff]
        %v479 = vld [vmem:[%s250 + $0x3d8] sm:$0xff]
        %v480 = vld [vmem:[%s250 + $0x3e0] sm:$0xff]
        %v481 = vld [vmem:[%s250 + $0x3e8] sm:$0xff]
        %v482 = vld [vmem:[%s250 + $0x3f0] sm:$0xff]
        %v483 = vld [vmem:[%s250 + $0x3f8] sm:$0xff]
        %v484 = vld [vmem:[%s250 + $0x400] sm:$0xff]
        %v485 = vld [vmem:[%s250 + $0x408] sm:$0xff]
        %v486 = vld [vmem:[%s250 + $0x410] sm:$0xff]
        %v487 = vld [vmem:[%s250 + $0x418] sm:$0xff]
        %v488 = vld [vmem:[%s250 + $0x420] sm:$0xff]
        %v489 = vld [vmem:[%s250 + $0x428] sm:$0xff]
        %v490 = vld [vmem:[%s250 + $0x430] sm:$0xff]
        %v491 = vld [vmem:[%s250 + $0x438] sm:$0xff]
        %v492 = vld [vmem:[%s250 + $0x440] sm:$0xff]
        %v493 = vld [vmem:[%s250 + $0x448] sm:$0xff]
        %v494 = vld [vmem:[%s250 + $0x450] sm:$0xff]
        %v495 = vld [vmem:[%s250 + $0x458] sm:$0xff]
        %v496 = vld [vmem:[%s250 + $0x460] sm:$0xff]
        %v497 = vld [vmem:[%s250 + $0x468] sm:$0xff]
        %v498 = vld [vmem:[%s250 + $0x470] sm:$0xff]
        %v499 = vld [vmem:[%s250 + $0x478] sm:$0xff]
        %v500 = vld [vmem:[%s250 + $0x480] sm:$0xff]
        %v501 = vld [vmem:[%s250 + $0x488] sm:$0xff]
        %v502 = vld [vmem:[%s250 + $0x490] sm:$0xff]
        %v503 = vld [vmem:[%s250 + $0x498] sm:$0xff]
        %v504 = vld [vmem:[%s250 + $0x4a0] sm:$0xff]
        %v505 = vld [vmem:[%s250 + $0x4a8] sm:$0xff]
        %v506 = vld [vmem:[%s250 + $0x4b0] sm:$0xff]
        %v507 = vld [vmem:[%s250 + $0x4b8] sm:$0xff]
        %v508 = vld [vmem:[%s250 + $0x4c0] sm:$0xff]
        %v509 = vld [vmem:[%s250 + $0x4c8] sm:$0xff]
        %v510 = vld [vmem:[%s250 + $0x4d0] sm:$0xff]
        %v511 = vld [vmem:[%s250 + $0x4d8] sm:$0xff]
        %v512 = vld [vmem:[%s250 + $0x4e0] sm:$0xff]
        %v513 = vld [vmem:[%s250 + $0x4e8] sm:$0xff]
        %v514 = vld [vmem:[%s250 + $0x4f0] sm:$0xff]
        %v515 = vld [vmem:[%s250 + $0x4f8] sm:$0xff]
        %v516 = vld [vmem:[%s250 + $0x500] sm:$0xff]
        %v517 = vld [vmem:[%s250 + $0x508] sm:$0xff]
        %v518 = vld [vmem:[%s250 + $0x510] sm:$0xff]
        %v519 = vld [vmem:[%s250 + $0x518] sm:$0xff]
        %v520 = vld [vmem:[%s250 + $0x520] sm:$0xff]
        %v521 = vld [vmem:[%s250 + $0x528] sm:$0xff]
        %v522 = vld [vmem:[%s250 + $0x530] sm:$0xff]
        %v523 = vld [vmem:[%s250 + $0x538] sm:$0xff]
        %v524 = vld [vmem:[%s250 + $0x540] sm:$0xff]
        %v525 = vld [vmem:[%s250 + $0x548] sm:$0xff]
        %v526 = vld [vmem:[%s250 + $0x550] sm:$0xff]
        %v527 = vld [vmem:[%s250 + $0x558] sm:$0xff]
        %v528 = vld [vmem:[%s250 + $0x560] sm:$0xff]
        %v529 = vld [vmem:[%s250 + $0x568] sm:$0xff]
        %v530 = vld [vmem:[%s250 + $0x570] sm:$0xff]
        %v531 = vld [vmem:[%s250 + $0x578] sm:$0xff]
        %v532 = vld [vmem:[%s250 + $0x580] sm:$0xff]
        %v533 = vld [vmem:[%s250 + $0x588] sm:$0xff]
        %v534 = vld [vmem:[%s250 + $0x590] sm:$0xff]
        %v535 = vld [vmem:[%s250 + $0x598] sm:$0xff]
        %v536 = vld [vmem:[%s250 + $0x5a0] sm:$0xff]
        %v537 = vld [vmem:[%s250 + $0x5a8] sm:$0xff]
        %v538 = vld [vmem:[%s250 + $0x5b0] sm:$0xff]
        %v539 = vld [vmem:[%s250 + $0x5b8] sm:$0xff]
        %v540 = vld [vmem:[%s250 + $0x5c0] sm:$0xff]
        %v541 = vld [vmem:[%s250 + $0x5c8] sm:$0xff]
        %v542 = vld [vmem:[%s250 + $0x5d0] sm:$0xff]
        %v543 = vld [vmem:[%s250 + $0x5d8] sm:$0xff]
        %v544 = vld [vmem:[%s250 + $0x5e0] sm:$0xff]
        %v545 = vld [vmem:[%s250 + $0x5e8] sm:$0xff]
        %v546 = vld [vmem:[%s250 + $0x5f0] sm:$0xff]
        %v547 = vld [vmem:[%s250 + $0x5f8] sm:$0xff]
        %v548 = vld [vmem:[%s250 + $0x600] sm:$0xff]
        %v549 = vld [vmem:[%s250 + $0x608] sm:$0xff]
        %v550 = vld [vmem:[%s250 + $0x610] sm:$0xff]
        %v551 = vld [vmem:[%s250 + $0x618] sm:$0xff]
        %v552 = vld [vmem:[%s250 + $0x620] sm:$0xff]
        %v553 = vld [vmem:[%s250 + $0x628] sm:$0xff]
        %v554 = vld [vmem:[%s250 + $0x630] sm:$0xff]
        %v555 = vld [vmem:[%s250 + $0x638] sm:$0xff]
        %v556 = vld [vmem:[%s250 + $0x640] sm:$0xff]
        %v557 = vld [vmem:[%s250 + $0x648] sm:$0xff]
        %v558 = vld [vmem:[%s250 + $0x650] sm:$0xff]
        %v559 = vld [vmem:[%s250 + $0x658] sm:$0xff]
        %v560 = vld [vmem:[%s250 + $0x660] sm:$0xff]
        %v561 = vld [vmem:[%s250 + $0x668] sm:$0xff]
        %v562 = vld [vmem:[%s250 + $0x670] sm:$0xff]
        %v563 = vld [vmem:[%s250 + $0x678] sm:$0xff]
        %v564 = vld [vmem:[%s250 + $0x680] sm:$0xff]
        %v565 = vld [vmem:[%s250 + $0x688] sm:$0xff]
        %v566 = vld [vmem:[%s250 + $0x690] sm:$0xff]
        %v567 = vld [vmem:[%s250 + $0x698] sm:$0xff]
        %v568 = vld [vmem:[%s250 + $0x6a0] sm:$0xff]
        %v569 = vld [vmem:[%s250 + $0x6a8] sm:$0xff]
        %v570 = vld [vmem:[%s250 + $0x6b0] sm:$0xff]
        %v571 = vld [vmem:[%s250 + $0x6b8] sm:$0xff]
        %v572 = vld [vmem:[%s250 + $0x6c0] sm:$0xff]
        %v573 = vld [vmem:[%s250 + $0x6c8] sm:$0xff]
        %v574 = vld [vmem:[%s250 + $0x6d0] sm:$0xff]
        %v575 = vld [vmem:[%s250 + $0x6d8] sm:$0xff]
        %v576 = vld [vmem:[%s250 + $0x6e0] sm:$0xff]
        %v577 = vld [vmem:[%s250 + $0x6e8] sm:$0xff]
        %v578 = vld [vmem:[%s250 + $0x6f0] sm:$0xff]
        %v579 = vld [vmem:[%s250 + $0x6f8] sm:$0xff]
        %v580 = vld [vmem:[%s250 + $0x700] sm:$0xff]
        %v581 = vld [vmem:[%s250 + $0x708] sm:$0xff]
        %v582 = vld [vmem:[%s250 + $0x710] sm:$0xff]
        %v583 = vld [vmem:[%s250 + $0x718] sm:$0xff]
        %v584 = vld [vmem:[%s250 + $0x720] sm:$0xff]
        %v585 = vld [vmem:[%s250 + $0x728] sm:$0xff]
        %v586 = vld [vmem:[%s250 + $0x730] sm:$0xff]
        %v587 = vld [vmem:[%s250 + $0x738] sm:$0xff]
        %v588 = vld [vmem:[%s250 + $0x740] sm:$0xff]
        %v589 = vld [vmem:[%s250 + $0x748] sm:$0xff]
        %v590 = vld [vmem:[%s250 + $0x750] sm:$0xff]
        %v591 = vld [vmem:[%s250 + $0x758] sm:$0xff]
        %v592 = vld [vmem:[%s250 + $0x760] sm:$0xff]
        %v593 = vld [vmem:[%s250 + $0x768] sm:$0xff]
        %v594 = vld [vmem:[%s250 + $0x770] sm:$0xff]
        %v595 = vld [vmem:[%s250 + $0x778] sm:$0xff]
        %v596 = vld [vmem:[%s250 + $0x780] sm:$0xff]
        %v597 = vld [vmem:[%s250 + $0x788] sm:$0xff]
        %v598 = vld [vmem:[%s250 + $0x790] sm:$0xff]
        %v599 = vld [vmem:[%s250 + $0x798] sm:$0xff]
        %v600 = vld [vmem:[%s250 + $0x7a0] sm:$0xff]
        %v601 = vld [vmem:[%s250 + $0x7a8] sm:$0xff]
        %v602 = vld [vmem:[%s250 + $0x7b0] sm:$0xff]
        %v603 = vld [vmem:[%s250 + $0x7b8] sm:$0xff]
        %v604 = vld [vmem:[%s250 + $0x7c0] sm:$0xff]
        %v605 = vld [vmem:[%s250 + $0x7c8] sm:$0xff]
        %v606 = vld [vmem:[%s250 + $0x7d0] sm:$0xff]
        %v607 = vld [vmem:[%s250 + $0x7d8] sm:$0xff]
        %v608 = vld [vmem:[%s250 + $0x7e0] sm:$0xff]
        %v609 = vld [vmem:[%s250 + $0x7e8] sm:$0xff]
        %v610 = vld [vmem:[%s250 + $0x7f0] sm:$0xff]
        %v611 = vld [vmem:[%s250 + $0x7f8] sm:$0xff]
        %v612 = vld [vmem:[%s250 + $0x800] sm:$0xff]
        %v613 = vld [vmem:[%s250 + $0x808] sm:$0xff]
        %v614 = vld [vmem:[%s250 + $0x810] sm:$0xff]
        %v615 = vld [vmem:[%s250 + $0x818] sm:$0xff]
        %v616 = vld [vmem:[%s250 + $0x820] sm:$0xff]
        %v617 = vld [vmem:[%s250 + $0x828] sm:$0xff]
        %v618 = vld [vmem:[%s250 + $0x830] sm:$0xff]
        %v619 = vld [vmem:[%s250 + $0x838] sm:$0xff]
        %v620 = vld [vmem:[%s250 + $0x840] sm:$0xff]
        %v621 = vld [vmem:[%s250 + $0x848] sm:$0xff]
        %v622 = vld [vmem:[%s250 + $0x850] sm:$0xff]
        %v623 = vld [vmem:[%s250 + $0x858] sm:$0xff]
        %v624 = vld [vmem:[%s250 + $0x860] sm:$0xff]
        %v625 = vld [vmem:[%s250 + $0x868] sm:$0xff]
        %v626 = vld [vmem:[%s250 + $0x870] sm:$0xff]
        %v627 = vld [vmem:[%s250 + $0x878] sm:$0xff]
        %v628 = vld [vmem:[%s250 + $0x880] sm:$0xff]
        %v629 = vld [vmem:[%s250 + $0x888] sm:$0xff]
        %v630 = vld [vmem:[%s250 + $0x890] sm:$0xff]
        %v631 = vld [vmem:[%s250 + $0x898] sm:$0xff]
        %v632 = vld [vmem:[%s250 + $0x8a0] sm:$0xff]
        %v633 = vld [vmem:[%s250 + $0x8a8] sm:$0xff]
        %v634 = vld [vmem:[%s250 + $0x8b0] sm:$0xff]
        %v635 = vld [vmem:[%s250 + $0x8b8] sm:$0xff]
        %v636 = vld [vmem:[%s250 + $0x8c0] sm:$0xff]
        %v637 = vld [vmem:[%s250 + $0x8c8] sm:$0xff]
        %v638 = vld [vmem:[%s250 + $0x8d0] sm:$0xff]
        %v639 = vld [vmem:[%s250 + $0x8d8] sm:$0xff]
        %v640 = vld [vmem:[%s250 + $0x8e0] sm:$0xff]
        %v641 = vld [vmem:[%s250 + $0x8e8] sm:$0xff]
        %v642 = vld [vmem:[%s250 + $0x8f0] sm:$0xff]
        %v643 = vld [vmem:[%s250 + $0x8f8] sm:$0xff]
        %v644 = vld [vmem:[%s250 + $0x900] sm:$0xff]
        %v645 = vld [vmem:[%s250 + $0x908] sm:$0xff]
        %v646 = vld [vmem:[%s250 + $0x910] sm:$0xff]
        %v647 = vld [vmem:[%s250 + $0x918] sm:$0xff]
        %v648 = vld [vmem:[%s250 + $0x920] sm:$0xff]
        %v649 = vld [vmem:[%s250 + $0x928] sm:$0xff]
        %v650 = vld [vmem:[%s250 + $0x930] sm:$0xff]
        %v651 = vld [vmem:[%s250 + $0x938] sm:$0xff]
        %v652 = vld [vmem:[%s250 + $0x940] sm:$0xff]
        %v653 = vld [vmem:[%s250 + $0x948] sm:$0xff]
        %v654 = vld [vmem:[%s250 + $0x950] sm:$0xff]
        %v655 = vld [vmem:[%s250 + $0x958] sm:$0xff]
        %v656 = vld [vmem:[%s250 + $0x960] sm:$0xff]
        %v657 = vld [vmem:[%s250 + $0x968] sm:$0xff]
        %v658 = vld [vmem:[%s250 + $0x970] sm:$0xff]
        %v659 = vld [vmem:[%s250 + $0x978] sm:$0xff]
        %v660 = vld [vmem:[%s250 + $0x980] sm:$0xff]
        %v661 = vld [vmem:[%s250 + $0x988] sm:$0xff]
        %v662 = vld [vmem:[%s250 + $0x990] sm:$0xff]
        %v663 = vld [vmem:[%s250 + $0x998] sm:$0xff]
        %v664 = vld [vmem:[%s250 + $0x9a0] sm:$0xff]
        %v665 = vld [vmem:[%s250 + $0x9a8] sm:$0xff]
        %v666 = vld [vmem:[%s250 + $0x9b0] sm:$0xff]
        %v667 = vld [vmem:[%s250 + $0x9b8] sm:$0xff]
        %v668 = vld [vmem:[%s250 + $0x9c0] sm:$0xff]
        %v669 = vld [vmem:[%s250 + $0x9c8] sm:$0xff]
        %v670 = vld [vmem:[%s250 + $0x9d0] sm:$0xff]
        %v671 = vld [vmem:[%s250 + $0x9d8] sm:$0xff]
        %v672 = vld [vmem:[%s250 + $0x9e0] sm:$0xff]
        %v673 = vld [vmem:[%s250 + $0x9e8] sm:$0xff]
        %v674 = vld [vmem:[%s250 + $0x9f0] sm:$0xff]
        %v675 = vld [vmem:[%s250 + $0x9f8] sm:$0xff]
        %v676 = vld [vmem:[%s250 + $0xa00] sm:$0xff]
        %v677 = vld [vmem:[%s250 + $0xa08] sm:$0xff]
        %v678 = vld [vmem:[%s250 + $0xa10] sm:$0xff]
        %v679 = vld [vmem:[%s250 + $0xa18] sm:$0xff]
        %v680 = vld [vmem:[%s250 + $0xa20] sm:$0xff]
        %v681 = vld [vmem:[%s250 + $0xa28] sm:$0xff]
        %v682 = vld [vmem:[%s250 + $0xa30] sm:$0xff]
        %v683 = vld [vmem:[%s250 + $0xa38] sm:$0xff]
        %v684 = vld [vmem:[%s250 + $0xa40] sm:$0xff]
        %v685 = vld [vmem:[%s250 + $0xa48] sm:$0xff]
        %v686 = vld [vmem:[%s250 + $0xa50] sm:$0xff]
        %v687 = vld [vmem:[%s250 + $0xa58] sm:$0xff]
        %v688 = vld [vmem:[%s250 + $0xa60] sm:$0xff]
        %v689 = vld [vmem:[%s250 + $0xa68] sm:$0xff]
        %v690 = vld [vmem:[%s250 + $0xa70] sm:$0xff]
        %v691 = vld [vmem:[%s250 + $0xa78] sm:$0xff]
        %v692 = vld [vmem:[%s250 + $0xa80] sm:$0xff]
        %v693 = vld [vmem:[%s250 + $0xa88] sm:$0xff]
        %v694 = vld [vmem:[%s250 + $0xa90] sm:$0xff]
        %v695 = vld [vmem:[%s250 + $0xa98] sm:$0xff]
        %v696 = vld [vmem:[%s250 + $0xaa0] sm:$0xff]
        %v697 = vld [vmem:[%s250 + $0xaa8] sm:$0xff]
        %v698 = vld [vmem:[%s250 + $0xab0] sm:$0xff]
        %v699 = vld [vmem:[%s250 + $0xab8] sm:$0xff]
        %v700 = vld [vmem:[%s250 + $0xac0] sm:$0xff]
        %v701 = vld [vmem:[%s250 + $0xac8] sm:$0xff]
        %v702 = vld [vmem:[%s250 + $0xad0] sm:$0xff]
        %v703 = vld [vmem:[%s250 + $0xad8] sm:$0xff]
        %v704 = vld [vmem:[%s250 + $0xae0] sm:$0xff]
        %v705 = vld [vmem:[%s250 + $0xae8] sm:$0xff]
        %v706 = vld [vmem:[%s250 + $0xaf0] sm:$0xff]
        %v707 = vld [vmem:[%s250 + $0xaf8] sm:$0xff]
        %v708 = vld [vmem:[%s250 + $0xb00] sm:$0xff]
        %v709 = vld [vmem:[%s250 + $0xb08] sm:$0xff]
        %v710 = vld [vmem:[%s250 + $0xb10] sm:$0xff]
        %v711 = vld [vmem:[%s250 + $0xb18] sm:$0xff]
        %v712 = vld [vmem:[%s250 + $0xb20] sm:$0xff]
        %v713 = vld [vmem:[%s250 + $0xb28] sm:$0xff]
        %v714 = vld [vmem:[%s250 + $0xb30] sm:$0xff]
        %v715 = vld [vmem:[%s250 + $0xb38] sm:$0xff]
        %v716 = vld [vmem:[%s250 + $0xb40] sm:$0xff]
        %v717 = vld [vmem:[%s250 + $0xb48] sm:$0xff]
        %v718 = vld [vmem:[%s250 + $0xb50] sm:$0xff]
        %v719 = vld [vmem:[%s250 + $0xb58] sm:$0xff]
        %v720 = vld [vmem:[%s250 + $0xb60] sm:$0xff]
        %v721 = vld [vmem:[%s250 + $0xb68] sm:$0xff]
        %v722 = vld [vmem:[%s250 + $0xb70] sm:$0xff]
        %v723 = vld [vmem:[%s250 + $0xb78] sm:$0xff]
        %v724 = vld [vmem:[%s250 + $0xb80] sm:$0xff]
        %v725 = vld [vmem:[%s250 + $0xb88] sm:$0xff]
        %v726 = vld [vmem:[%s250 + $0xb90] sm:$0xff]
        %v727 = vld [vmem:[%s250 + $0xb98] sm:$0xff]
        %v728 = vld [vmem:[%s250 + $0xba0] sm:$0xff]
        %v729 = vld [vmem:[%s250 + $0xba8] sm:$0xff]
        %v730 = vld [vmem:[%s250 + $0xbb0] sm:$0xff]
        %v731 = vld [vmem:[%s250 + $0xbb8] sm:$0xff]
        %v732 = vld [vmem:[%s250 + $0xbc0] sm:$0xff]
        %v733 = vld [vmem:[%s250 + $0xbc8] sm:$0xff]
        %v734 = vld [vmem:[%s250 + $0xbd0] sm:$0xff]
        %v735 = vld [vmem:[%s250 + $0xbd8] sm:$0xff]
        %v736 = vld [vmem:[%s250 + $0xbe0] sm:$0xff]
        %v737 = vld [vmem:[%s250 + $0xbe8] sm:$0xff]
        %v738 = vld [vmem:[%s250 + $0xbf0] sm:$0xff]
        %v739 = vld [vmem:[%s250 + $0xbf8] sm:$0xff]
        %v740 = vld [vmem:[%s250 + $0xc00] sm:$0xff]
        %v741 = vld [vmem:[%s250 + $0xc08] sm:$0xff]
        %v742 = vld [vmem:[%s250 + $0xc10] sm:$0xff]
        %v743 = vld [vmem:[%s250 + $0xc18] sm:$0xff]
        %v744 = vld [vmem:[%s250 + $0xc20] sm:$0xff]
        %v745 = vld [vmem:[%s250 + $0xc28] sm:$0xff]
        %v746 = vld [vmem:[%s250 + $0xc30] sm:$0xff]
        %v747 = vld [vmem:[%s250 + $0xc38] sm:$0xff]
        %v748 = vld [vmem:[%s250 + $0xc40] sm:$0xff]
        %v749 = vld [vmem:[%s250 + $0xc48] sm:$0xff]
        %v750 = vld [vmem:[%s250 + $0xc50] sm:$0xff]
        %v751 = vld [vmem:[%s250 + $0xc58] sm:$0xff]
        %v752 = vld [vmem:[%s250 + $0xc60] sm:$0xff]
        %v753 = vld [vmem:[%s250 + $0xc68] sm:$0xff]
        %v754 = vld [vmem:[%s250 + $0xc70] sm:$0xff]
        %v755 = vld [vmem:[%s250 + $0xc78] sm:$0xff]
        %v756 = vld [vmem:[%s250 + $0xc80] sm:$0xff]
        %v757 = vld [vmem:[%s250 + $0xc88] sm:$0xff]
        %v758 = vld [vmem:[%s250 + $0xc90] sm:$0xff]
        %v759 = vld [vmem:[%s250 + $0xc98] sm:$0xff]
        %v760 = vld [vmem:[%s250 + $0xca0] sm:$0xff]
        %v761 = vld [vmem:[%s250 + $0xca8] sm:$0xff]
        %v762 = vld [vmem:[%s250 + $0xcb0] sm:$0xff]
        %v763 = vld [vmem:[%s250 + $0xcb8] sm:$0xff]
        %v764 = vld [vmem:[%s250 + $0xcc0] sm:$0xff]
        %v765 = vld [vmem:[%s250 + $0xcc8] sm:$0xff]
        %v766 = vld [vmem:[%s250 + $0xcd0] sm:$0xff]
        %v767 = vld [vmem:[%s250 + $0xcd8] sm:$0xff]
        %v768 = vld [vmem:[%s250 + $0xce0] sm:$0xff]
        %v769 = vld [vmem:[%s250 + $0xce8] sm:$0xff]
        %v770 = vld [vmem:[%s250 + $0xcf0] sm:$0xff]
        %v771 = vld [vmem:[%s250 + $0xcf8] sm:$0xff]
        %v772 = vld [vmem:[%s250 + $0xd00] sm:$0xff]
        %v773 = vld [vmem:[%s250 + $0xd08] sm:$0xff]
        %v774 = vld [vmem:[%s250 + $0xd10] sm:$0xff]
        %v775 = vld [vmem:[%s250 + $0xd18] sm:$0xff]
        %v776 = vld [vmem:[%s250 + $0xd20] sm:$0xff]
        %v777 = vld [vmem:[%s250 + $0xd28] sm:$0xff]
        %v778 = vld [vmem:[%s250 + $0xd30] sm:$0xff]
        %v779 = vld [vmem:[%s250 + $0xd38] sm:$0xff]
        %v780 = vld [vmem:[%s250 + $0xd40] sm:$0xff]
        %v781 = vld [vmem:[%s250 + $0xd48] sm:$0xff]
        %v782 = vld [vmem:[%s250 + $0xd50] sm:$0xff]
        %v783 = vld [vmem:[%s250 + $0xd58] sm:$0xff]
        %v784 = vld [vmem:[%s250 + $0xd60] sm:$0xff]
        %v785 = vld [vmem:[%s250 + $0xd68] sm:$0xff]
        %v786 = vld [vmem:[%s250 + $0xd70] sm:$0xff]
        %v787 = vld [vmem:[%s250 + $0xd78] sm:$0xff]
        %v788 = vld [vmem:[%s250 + $0xd80] sm:$0xff]
        %v789 = vld [vmem:[%s250 + $0xd88] sm:$0xff]
        %v790 = vld [vmem:[%s250 + $0xd90] sm:$0xff]
        %v791 = vld [vmem:[%s250 + $0xd98] sm:$0xff]
        %v792 = vld [vmem:[%s250 + $0xda0] sm:$0xff]
        %v793 = vld [vmem:[%s250 + $0xda8] sm:$0xff]
        %v794 = vld [vmem:[%s250 + $0xdb0] sm:$0xff]
        %v795 = vld [vmem:[%s250 + $0xdb8] sm:$0xff]
        %v796 = vld [vmem:[%s250 + $0xdc0] sm:$0xff]
        %v797 = vld [vmem:[%s250 + $0xdc8] sm:$0xff]
        %v798 = vld [vmem:[%s250 + $0xdd0] sm:$0xff]
        %v799 = vld [vmem:[%s250 + $0xdd8] sm:$0xff]
        %v800 = vld [vmem:[%s250 + $0xde0] sm:$0xff]
        %v801 = vld [vmem:[%s250 + $0xde8] sm:$0xff]
        %v802 = vld [vmem:[%s250 + $0xdf0] sm:$0xff]
        %v803 = vld [vmem:[%s250 + $0xdf8] sm:$0xff]
        %v804 = vld [vmem:[%s250 + $0xe00] sm:$0xff]
        %v805 = vld [vmem:[%s250 + $0xe08] sm:$0xff]
        %v806 = vld [vmem:[%s250 + $0xe10] sm:$0xff]
        %v807 = vld [vmem:[%s250 + $0xe18] sm:$0xff]
        %v808 = vld [vmem:[%s250 + $0xe20] sm:$0xff]
        %v809 = vld [vmem:[%s250 + $0xe28] sm:$0xff]
        %v810 = vld [vmem:[%s250 + $0xe30] sm:$0xff]
        %v811 = vld [vmem:[%s250 + $0xe38] sm:$0xff]
        %v812 = vld [vmem:[%s250 + $0xe40] sm:$0xff]
        %v813 = vld [vmem:[%s250 + $0xe48] sm:$0xff]
        %v814 = vld [vmem:[%s250 + $0xe50] sm:$0xff]
        %v815 = vld [vmem:[%s250 + $0xe58] sm:$0xff]
        %v816 = vld [vmem:[%s250 + $0xe60] sm:$0xff]
        %v817 = vld [vmem:[%s250 + $0xe68] sm:$0xff]
        %v818 = vld [vmem:[%s250 + $0xe70] sm:$0xff]
        %v819 = vld [vmem:[%s250 + $0xe78] sm:$0xff]
        %v820 = vld [vmem:[%s250 + $0xe80] sm:$0xff]
        %v821 = vld [vmem:[%s250 + $0xe88] sm:$0xff]
        %v822 = vld [vmem:[%s250 + $0xe90] sm:$0xff]
        %v823 = vld [vmem:[%s250 + $0xe98] sm:$0xff]
        %v824 = vld [vmem:[%s250 + $0xea0] sm:$0xff]
        %v825 = vld [vmem:[%s250 + $0xea8] sm:$0xff]
        %v826 = vld [vmem:[%s250 + $0xeb0] sm:$0xff]
        %v827 = vld [vmem:[%s250 + $0xeb8] sm:$0xff]
        %v828 = vld [vmem:[%s250 + $0xec0] sm:$0xff]
        %v829 = vld [vmem:[%s250 + $0xec8] sm:$0xff]
        %v830 = vld [vmem:[%s250 + $0xed0] sm:$0xff]
        %v831 = vld [vmem:[%s250 + $0xed8] sm:$0xff]
        %v832 = vld [vmem:[%s250 + $0xee0] sm:$0xff]
        %v833 = vld [vmem:[%s250 + $0xee8] sm:$0xff]
        %v834 = vld [vmem:[%s250 + $0xef0] sm:$0xff]
        %v835 = vld [vmem:[%s250 + $0xef8] sm:$0xff]
        %v836 = vld [vmem:[%s250 + $0xf00] sm:$0xff]
        %v837 = vld [vmem:[%s250 + $0xf08] sm:$0xff]
        %v838 = vld [vmem:[%s250 + $0xf10] sm:$0xff]
        %v839 = vld [vmem:[%s250 + $0xf18] sm:$0xff]
        %v840 = vld [vmem:[%s250 + $0xf20] sm:$0xff]
        %v841 = vld [vmem:[%s250 + $0xf28] sm:$0xff]
        %v842 = vld [vmem:[%s250 + $0xf30] sm:$0xff]
        %v843 = vld [vmem:[%s250 + $0xf38] sm:$0xff]
        %v844 = vld [vmem:[%s250 + $0xf40] sm:$0xff]
        %v845 = vld [vmem:[%s250 + $0xf48] sm:$0xff]
        %v846 = vld [vmem:[%s250 + $0xf50] sm:$0xff]
        %v847 = vld [vmem:[%s250 + $0xf58] sm:$0xff]
        %v848 = vld [vmem:[%s250 + $0xf60] sm:$0xff]
        %v849 = vld [vmem:[%s250 + $0xf68] sm:$0xff]
        %v850 = vld [vmem:[%s250 + $0xf70] sm:$0xff]
        %v851 = vld [vmem:[%s250 + $0xf78] sm:$0xff]
        %v852 = vld [vmem:[%s250 + $0xf80] sm:$0xff]
        %v853 = vld [vmem:[%s250 + $0xf88] sm:$0xff]
        %v854 = vld [vmem:[%s250 + $0xf90] sm:$0xff]
        %v855 = vld [vmem:[%s250 + $0xf98] sm:$0xff]
        %v856 = vld [vmem:[%s250 + $0xfa0] sm:$0xff]
        %v857 = vld [vmem:[%s250 + $0xfa8] sm:$0xff]
        %v858 = vld [vmem:[%s250 + $0xfb0] sm:$0xff]
        %v859 = vld [vmem:[%s250 + $0xfb8] sm:$0xff]
        %v860 = vld [vmem:[%s250 + $0xfc0] sm:$0xff]
        %v861 = vld [vmem:[%s250 + $0xfc8] sm:$0xff]
        %v862 = vld [vmem:[%s250 + $0xfd0] sm:$0xff]
        %v863 = vld [vmem:[%s250 + $0xfd8] sm:$0xff]
        %v864 = vld [vmem:[%s250 + $0xfe0] sm:$0xff]
        %v865 = vld [vmem:[%s250 + $0xfe8] sm:$0xff]
        %v866 = vld [vmem:[%s250 + $0xff0] sm:$0xff]
        %v867 = vld [vmem:[%s250 + $0xff8] sm:$0xff]
        %v1380 = vunpack.c.l.b16 %v356
        %v1381 = vunpack.c.h.b16 %v356
        %v1382 = vunpack.c.l.b16 %v357
        %v1383 = vunpack.c.h.b16 %v357
        %v1384 = vunpack.c.l.b16 %v358
        %v1385 = vunpack.c.h.b16 %v358
        %v1386 = vunpack.c.l.b16 %v359
        %v1387 = vunpack.c.h.b16 %v359
        %v1388 = vunpack.c.l.b16 %v360
        %v1389 = vunpack.c.h.b16 %v360
        %v1390 = vunpack.c.l.b16 %v361
        %v1391 = vunpack.c.h.b16 %v361
        %v1392 = vunpack.c.l.b16 %v362
        %v1393 = vunpack.c.h.b16 %v362
        %v1394 = vunpack.c.l.b16 %v363
        %v1395 = vunpack.c.h.b16 %v363
        %v1396 = vunpack.c.l.b16 %v364
        %v1397 = vunpack.c.h.b16 %v364
        %v1398 = vunpack.c.l.b16 %v365
        %v1399 = vunpack.c.h.b16 %v365
        %v1400 = vunpack.c.l.b16 %v366
        %v1401 = vunpack.c.h.b16 %v366
        %v1402 = vunpack.c.l.b16 %v367
        %v1403 = vunpack.c.h.b16 %v367
        %v1404 = vunpack.c.l.b16 %v368
        %v1405 = vunpack.c.h.b16 %v368
        %v1406 = vunpack.c.l.b16 %v369
        %v1407 = vunpack.c.h.b16 %v369
        %v1408 = vunpack.c.l.b16 %v370
        %v1409 = vunpack.c.h.b16 %v370
        %v1410 = vunpack.c.l.b16 %v371
        %v1411 = vunpack.c.h.b16 %v371
        %v1412 = vunpack.c.l.b16 %v372
        %v1413 = vunpack.c.h.b16 %v372
        %v1414 = vunpack.c.l.b16 %v373
        %v1415 = vunpack.c.h.b16 %v373
        %v1416 = vunpack.c.l.b16 %v374
        %v1417 = vunpack.c.h.b16 %v374
        %v1418 = vunpack.c.l.b16 %v375
        %v1419 = vunpack.c.h.b16 %v375
        %v1420 = vunpack.c.l.b16 %v376
        %v1421 = vunpack.c.h.b16 %v376
        %v1422 = vunpack.c.l.b16 %v377
        %v1423 = vunpack.c.h.b16 %v377
        %v1424 = vunpack.c.l.b16 %v378
        %v1425 = vunpack.c.h.b16 %v378
        %v1426 = vunpack.c.l.b16 %v379
        %v1427 = vunpack.c.h.b16 %v379
        %v1428 = vunpack.c.l.b16 %v380
        %v1429 = vunpack.c.h.b16 %v380
        %v1430 = vunpack.c.l.b16 %v381
        %v1431 = vunpack.c.h.b16 %v381
        %v1432 = vunpack.c.l.b16 %v382
        %v1433 = vunpack.c.h.b16 %v382
        %v1434 = vunpack.c.l.b16 %v383
        %v1435 = vunpack.c.h.b16 %v383
        %v1436 = vunpack.c.l.b16 %v384
        %v1437 = vunpack.c.h.b16 %v384
        %v1438 = vunpack.c.l.b16 %v385
        %v1439 = vunpack.c.h.b16 %v385
        %v1440 = vunpack.c.l.b16 %v386
        %v1441 = vunpack.c.h.b16 %v386
        %v1442 = vunpack.c.l.b16 %v387
        %v1443 = vunpack.c.h.b16 %v387
        %v1444 = vunpack.c.l.b16 %v388
        %v1445 = vunpack.c.h.b16 %v388
        %v1446 = vunpack.c.l.b16 %v389
        %v1447 = vunpack.c.h.b16 %v389
        %v1448 = vunpack.c.l.b16 %v390
        %v1449 = vunpack.c.h.b16 %v390
        %v1450 = vunpack.c.l.b16 %v391
        %v1451 = vunpack.c.h.b16 %v391
        %v1452 = vunpack.c.l.b16 %v392
        %v1453 = vunpack.c.h.b16 %v392
        %v1454 = vunpack.c.l.b16 %v393
        %v1455 = vunpack.c.h.b16 %v393
        %v1456 = vunpack.c.l.b16 %v394
        %v1457 = vunpack.c.h.b16 %v394
        %v1458 = vunpack.c.l.b16 %v395
        %v1459 = vunpack.c.h.b16 %v395
        %v1460 = vunpack.c.l.b16 %v396
        %v1461 = vunpack.c.h.b16 %v396
        %v1462 = vunpack.c.l.b16 %v397
        %v1463 = vunpack.c.h.b16 %v397
        %v1464 = vunpack.c.l.b16 %v398
        %v1465 = vunpack.c.h.b16 %v398
        %v1466 = vunpack.c.l.b16 %v399
        %v1467 = vunpack.c.h.b16 %v399
        %v1468 = vunpack.c.l.b16 %v400
        %v1469 = vunpack.c.h.b16 %v400
        %v1470 = vunpack.c.l.b16 %v401
        %v1471 = vunpack.c.h.b16 %v401
        %v1472 = vunpack.c.l.b16 %v402
        %v1473 = vunpack.c.h.b16 %v402
        %v1474 = vunpack.c.l.b16 %v403
        %v1475 = vunpack.c.h.b16 %v403
        %v1476 = vunpack.c.l.b16 %v404
        %v1477 = vunpack.c.h.b16 %v404
        %v1478 = vunpack.c.l.b16 %v405
        %v1479 = vunpack.c.h.b16 %v405
        %v1480 = vunpack.c.l.b16 %v406
        %v1481 = vunpack.c.h.b16 %v406
        %v1482 = vunpack.c.l.b16 %v407
        %v1483 = vunpack.c.h.b16 %v407
        %v1484 = vunpack.c.l.b16 %v408
        %v1485 = vunpack.c.h.b16 %v408
        %v1486 = vunpack.c.l.b16 %v409
        %v1487 = vunpack.c.h.b16 %v409
        %v1488 = vunpack.c.l.b16 %v410
        %v1489 = vunpack.c.h.b16 %v410
        %v1490 = vunpack.c.l.b16 %v411
        %v1491 = vunpack.c.h.b16 %v411
        %v1492 = vunpack.c.l.b16 %v412
        %v1493 = vunpack.c.h.b16 %v412
        %v1494 = vunpack.c.l.b16 %v413
        %v1495 = vunpack.c.h.b16 %v413
        %v1496 = vunpack.c.l.b16 %v414
        %v1497 = vunpack.c.h.b16 %v414
        %v1498 = vunpack.c.l.b16 %v415
        %v1499 = vunpack.c.h.b16 %v415
        %v1500 = vunpack.c.l.b16 %v416
        %v1501 = vunpack.c.h.b16 %v416
        %v1502 = vunpack.c.l.b16 %v417
        %v1503 = vunpack.c.h.b16 %v417
        %v1504 = vunpack.c.l.b16 %v418
        %v1505 = vunpack.c.h.b16 %v418
        %v1506 = vunpack.c.l.b16 %v419
        %v1507 = vunpack.c.h.b16 %v419
        %v1508 = vunpack.c.l.b16 %v420
        %v1509 = vunpack.c.h.b16 %v420
        %v1510 = vunpack.c.l.b16 %v421
        %v1511 = vunpack.c.h.b16 %v421
        %v1512 = vunpack.c.l.b16 %v422
        %v1513 = vunpack.c.h.b16 %v422
        %v1514 = vunpack.c.l.b16 %v423
        %v1515 = vunpack.c.h.b16 %v423
        %v1516 = vunpack.c.l.b16 %v424
        %v1517 = vunpack.c.h.b16 %v424
        %v1518 = vunpack.c.l.b16 %v425
        %v1519 = vunpack.c.h.b16 %v425
        %v1520 = vunpack.c.l.b16 %v426
        %v1521 = vunpack.c.h.b16 %v426
        %v1522 = vunpack.c.l.b16 %v427
        %v1523 = vunpack.c.h.b16 %v427
        %v1524 = vunpack.c.l.b16 %v428
        %v1525 = vunpack.c.h.b16 %v428
        %v1526 = vunpack.c.l.b16 %v429
        %v1527 = vunpack.c.h.b16 %v429
        %v1528 = vunpack.c.l.b16 %v430
        %v1529 = vunpack.c.h.b16 %v430
        %v1530 = vunpack.c.l.b16 %v431
        %v1531 = vunpack.c.h.b16 %v431
        %v1532 = vunpack.c.l.b16 %v432
        %v1533 = vunpack.c.h.b16 %v432
        %v1534 = vunpack.c.l.b16 %v433
        %v1535 = vunpack.c.h.b16 %v433
        %v1536 = vunpack.c.l.b16 %v434
        %v1537 = vunpack.c.h.b16 %v434
        %v1538 = vunpack.c.l.b16 %v435
        %v1539 = vunpack.c.h.b16 %v435
        %v1540 = vunpack.c.l.b16 %v436
        %v1541 = vunpack.c.h.b16 %v436
        %v1542 = vunpack.c.l.b16 %v437
        %v1543 = vunpack.c.h.b16 %v437
        %v1544 = vunpack.c.l.b16 %v438
        %v1545 = vunpack.c.h.b16 %v438
        %v1546 = vunpack.c.l.b16 %v439
        %v1547 = vunpack.c.h.b16 %v439
        %v1548 = vunpack.c.l.b16 %v440
        %v1549 = vunpack.c.h.b16 %v440
        %v1550 = vunpack.c.l.b16 %v441
        %v1551 = vunpack.c.h.b16 %v441
        %v1552 = vunpack.c.l.b16 %v442
        %v1553 = vunpack.c.h.b16 %v442
        %v1554 = vunpack.c.l.b16 %v443
        %v1555 = vunpack.c.h.b16 %v443
        %v1556 = vunpack.c.l.b16 %v444
        %v1557 = vunpack.c.h.b16 %v444
        %v1558 = vunpack.c.l.b16 %v445
        %v1559 = vunpack.c.h.b16 %v445
        %v1560 = vunpack.c.l.b16 %v446
        %v1561 = vunpack.c.h.b16 %v446
        %v1562 = vunpack.c.l.b16 %v447
        %v1563 = vunpack.c.h.b16 %v447
        %v1564 = vunpack.c.l.b16 %v448
        %v1565 = vunpack.c.h.b16 %v448
        %v1566 = vunpack.c.l.b16 %v449
        %v1567 = vunpack.c.h.b16 %v449
        %v1568 = vunpack.c.l.b16 %v450
        %v1569 = vunpack.c.h.b16 %v450
        %v1570 = vunpack.c.l.b16 %v451
        %v1571 = vunpack.c.h.b16 %v451
        %v1572 = vunpack.c.l.b16 %v452
        %v1573 = vunpack.c.h.b16 %v452
        %v1574 = vunpack.c.l.b16 %v453
        %v1575 = vunpack.c.h.b16 %v453
        %v1576 = vunpack.c.l.b16 %v454
        %v1577 = vunpack.c.h.b16 %v454
        %v1578 = vunpack.c.l.b16 %v455
        %v1579 = vunpack.c.h.b16 %v455
        %v1580 = vunpack.c.l.b16 %v456
        %v1581 = vunpack.c.h.b16 %v456
        %v1582 = vunpack.c.l.b16 %v457
        %v1583 = vunpack.c.h.b16 %v457
        %v1584 = vunpack.c.l.b16 %v458
        %v1585 = vunpack.c.h.b16 %v458
        %v1586 = vunpack.c.l.b16 %v459
        %v1587 = vunpack.c.h.b16 %v459
        %v1588 = vunpack.c.l.b16 %v460
        %v1589 = vunpack.c.h.b16 %v460
        %v1590 = vunpack.c.l.b16 %v461
        %v1591 = vunpack.c.h.b16 %v461
        %v1592 = vunpack.c.l.b16 %v462
        %v1593 = vunpack.c.h.b16 %v462
        %v1594 = vunpack.c.l.b16 %v463
        %v1595 = vunpack.c.h.b16 %v463
        %v1596 = vunpack.c.l.b16 %v464
        %v1597 = vunpack.c.h.b16 %v464
        %v1598 = vunpack.c.l.b16 %v465
        %v1599 = vunpack.c.h.b16 %v465
        %v1600 = vunpack.c.l.b16 %v466
        %v1601 = vunpack.c.h.b16 %v466
        %v1602 = vunpack.c.l.b16 %v467
        %v1603 = vunpack.c.h.b16 %v467
        %v1604 = vunpack.c.l.b16 %v468
        %v1605 = vunpack.c.h.b16 %v468
        %v1606 = vunpack.c.l.b16 %v469
        %v1607 = vunpack.c.h.b16 %v469
        %v1608 = vunpack.c.l.b16 %v470
        %v1609 = vunpack.c.h.b16 %v470
        %v1610 = vunpack.c.l.b16 %v471
        %v1611 = vunpack.c.h.b16 %v471
        %v1612 = vunpack.c.l.b16 %v472
        %v1613 = vunpack.c.h.b16 %v472
        %v1614 = vunpack.c.l.b16 %v473
        %v1615 = vunpack.c.h.b16 %v473
        %v1616 = vunpack.c.l.b16 %v474
        %v1617 = vunpack.c.h.b16 %v474
        %v1618 = vunpack.c.l.b16 %v475
        %v1619 = vunpack.c.h.b16 %v475
        %v1620 = vunpack.c.l.b16 %v476
        %v1621 = vunpack.c.h.b16 %v476
        %v1622 = vunpack.c.l.b16 %v477
        %v1623 = vunpack.c.h.b16 %v477
        %v1624 = vunpack.c.l.b16 %v478
        %v1625 = vunpack.c.h.b16 %v478
        %v1626 = vunpack.c.l.b16 %v479
        %v1627 = vunpack.c.h.b16 %v479
        %v1628 = vunpack.c.l.b16 %v480
        %v1629 = vunpack.c.h.b16 %v480
        %v1630 = vunpack.c.l.b16 %v481
        %v1631 = vunpack.c.h.b16 %v481
        %v1632 = vunpack.c.l.b16 %v482
        %v1633 = vunpack.c.h.b16 %v482
        %v1634 = vunpack.c.l.b16 %v483
        %v1635 = vunpack.c.h.b16 %v483
        %v1636 = vunpack.c.l.b16 %v484
        %v1637 = vunpack.c.h.b16 %v484
        %v1638 = vunpack.c.l.b16 %v485
        %v1639 = vunpack.c.h.b16 %v485
        %v1640 = vunpack.c.l.b16 %v486
        %v1641 = vunpack.c.h.b16 %v486
        %v1642 = vunpack.c.l.b16 %v487
        %v1643 = vunpack.c.h.b16 %v487
        %v1644 = vunpack.c.l.b16 %v488
        %v1645 = vunpack.c.h.b16 %v488
        %v1646 = vunpack.c.l.b16 %v489
        %v1647 = vunpack.c.h.b16 %v489
        %v1648 = vunpack.c.l.b16 %v490
        %v1649 = vunpack.c.h.b16 %v490
        %v1650 = vunpack.c.l.b16 %v491
        %v1651 = vunpack.c.h.b16 %v491
        %v1652 = vunpack.c.l.b16 %v492
        %v1653 = vunpack.c.h.b16 %v492
        %v1654 = vunpack.c.l.b16 %v493
        %v1655 = vunpack.c.h.b16 %v493
        %v1656 = vunpack.c.l.b16 %v494
        %v1657 = vunpack.c.h.b16 %v494
        %v1658 = vunpack.c.l.b16 %v495
        %v1659 = vunpack.c.h.b16 %v495
        %v1660 = vunpack.c.l.b16 %v496
        %v1661 = vunpack.c.h.b16 %v496
        %v1662 = vunpack.c.l.b16 %v497
        %v1663 = vunpack.c.h.b16 %v497
        %v1664 = vunpack.c.l.b16 %v498
        %v1665 = vunpack.c.h.b16 %v498
        %v1666 = vunpack.c.l.b16 %v499
        %v1667 = vunpack.c.h.b16 %v499
        %v1668 = vunpack.c.l.b16 %v500
        %v1669 = vunpack.c.h.b16 %v500
        %v1670 = vunpack.c.l.b16 %v501
        %v1671 = vunpack.c.h.b16 %v501
        %v1672 = vunpack.c.l.b16 %v502
        %v1673 = vunpack.c.h.b16 %v502
        %v1674 = vunpack.c.l.b16 %v503
        %v1675 = vunpack.c.h.b16 %v503
        %v1676 = vunpack.c.l.b16 %v504
        %v1677 = vunpack.c.h.b16 %v504
        %v1678 = vunpack.c.l.b16 %v505
        %v1679 = vunpack.c.h.b16 %v505
        %v1680 = vunpack.c.l.b16 %v506
        %v1681 = vunpack.c.h.b16 %v506
        %v1682 = vunpack.c.l.b16 %v507
        %v1683 = vunpack.c.h.b16 %v507
        %v1684 = vunpack.c.l.b16 %v508
        %v1685 = vunpack.c.h.b16 %v508
        %v1686 = vunpack.c.l.b16 %v509
        %v1687 = vunpack.c.h.b16 %v509
        %v1688 = vunpack.c.l.b16 %v510
        %v1689 = vunpack.c.h.b16 %v510
        %v1690 = vunpack.c.l.b16 %v511
        %v1691 = vunpack.c.h.b16 %v511
        %v1692 = vunpack.c.l.b16 %v512
        %v1693 = vunpack.c.h.b16 %v512
        %v1694 = vunpack.c.l.b16 %v513
        %v1695 = vunpack.c.h.b16 %v513
        %v1696 = vunpack.c.l.b16 %v514
        %v1697 = vunpack.c.h.b16 %v514
        %v1698 = vunpack.c.l.b16 %v515
        %v1699 = vunpack.c.h.b16 %v515
        %v1700 = vunpack.c.l.b16 %v516
        %v1701 = vunpack.c.h.b16 %v516
        %v1702 = vunpack.c.l.b16 %v517
        %v1703 = vunpack.c.h.b16 %v517
        %v1704 = vunpack.c.l.b16 %v518
        %v1705 = vunpack.c.h.b16 %v518
        %v1706 = vunpack.c.l.b16 %v519
        %v1707 = vunpack.c.h.b16 %v519
        %v1708 = vunpack.c.l.b16 %v520
        %v1709 = vunpack.c.h.b16 %v520
        %v1710 = vunpack.c.l.b16 %v521
        %v1711 = vunpack.c.h.b16 %v521
        %v1712 = vunpack.c.l.b16 %v522
        %v1713 = vunpack.c.h.b16 %v522
        %v1714 = vunpack.c.l.b16 %v523
        %v1715 = vunpack.c.h.b16 %v523
        %v1716 = vunpack.c.l.b16 %v524
        %v1717 = vunpack.c.h.b16 %v524
        %v1718 = vunpack.c.l.b16 %v525
        %v1719 = vunpack.c.h.b16 %v525
        %v1720 = vunpack.c.l.b16 %v526
        %v1721 = vunpack.c.h.b16 %v526
        %v1722 = vunpack.c.l.b16 %v527
        %v1723 = vunpack.c.h.b16 %v527
        %v1724 = vunpack.c.l.b16 %v528
        %v1725 = vunpack.c.h.b16 %v528
        %v1726 = vunpack.c.l.b16 %v529
        %v1727 = vunpack.c.h.b16 %v529
        %v1728 = vunpack.c.l.b16 %v530
        %v1729 = vunpack.c.h.b16 %v530
        %v1730 = vunpack.c.l.b16 %v531
        %v1731 = vunpack.c.h.b16 %v531
        %v1732 = vunpack.c.l.b16 %v532
        %v1733 = vunpack.c.h.b16 %v532
        %v1734 = vunpack.c.l.b16 %v533
        %v1735 = vunpack.c.h.b16 %v533
        %v1736 = vunpack.c.l.b16 %v534
        %v1737 = vunpack.c.h.b16 %v534
        %v1738 = vunpack.c.l.b16 %v535
        %v1739 = vunpack.c.h.b16 %v535
        %v1740 = vunpack.c.l.b16 %v536
        %v1741 = vunpack.c.h.b16 %v536
        %v1742 = vunpack.c.l.b16 %v537
        %v1743 = vunpack.c.h.b16 %v537
        %v1744 = vunpack.c.l.b16 %v538
        %v1745 = vunpack.c.h.b16 %v538
        %v1746 = vunpack.c.l.b16 %v539
        %v1747 = vunpack.c.h.b16 %v539
        %v1748 = vunpack.c.l.b16 %v540
        %v1749 = vunpack.c.h.b16 %v540
        %v1750 = vunpack.c.l.b16 %v541
        %v1751 = vunpack.c.h.b16 %v541
        %v1752 = vunpack.c.l.b16 %v542
        %v1753 = vunpack.c.h.b16 %v542
        %v1754 = vunpack.c.l.b16 %v543
        %v1755 = vunpack.c.h.b16 %v543
        %v1756 = vunpack.c.l.b16 %v544
        %v1757 = vunpack.c.h.b16 %v544
        %v1758 = vunpack.c.l.b16 %v545
        %v1759 = vunpack.c.h.b16 %v545
        %v1760 = vunpack.c.l.b16 %v546
        %v1761 = vunpack.c.h.b16 %v546
        %v1762 = vunpack.c.l.b16 %v547
        %v1763 = vunpack.c.h.b16 %v547
        %v1764 = vunpack.c.l.b16 %v548
        %v1765 = vunpack.c.h.b16 %v548
        %v1766 = vunpack.c.l.b16 %v549
        %v1767 = vunpack.c.h.b16 %v549
        %v1768 = vunpack.c.l.b16 %v550
        %v1769 = vunpack.c.h.b16 %v550
        %v1770 = vunpack.c.l.b16 %v551
        %v1771 = vunpack.c.h.b16 %v551
        %v1772 = vunpack.c.l.b16 %v552
        %v1773 = vunpack.c.h.b16 %v552
        %v1774 = vunpack.c.l.b16 %v553
        %v1775 = vunpack.c.h.b16 %v553
        %v1776 = vunpack.c.l.b16 %v554
        %v1777 = vunpack.c.h.b16 %v554
        %v1778 = vunpack.c.l.b16 %v555
        %v1779 = vunpack.c.h.b16 %v555
        %v1780 = vunpack.c.l.b16 %v556
        %v1781 = vunpack.c.h.b16 %v556
        %v1782 = vunpack.c.l.b16 %v557
        %v1783 = vunpack.c.h.b16 %v557
        %v1784 = vunpack.c.l.b16 %v558
        %v1785 = vunpack.c.h.b16 %v558
        %v1786 = vunpack.c.l.b16 %v559
        %v1787 = vunpack.c.h.b16 %v559
        %v1788 = vunpack.c.l.b16 %v560
        %v1789 = vunpack.c.h.b16 %v560
        %v1790 = vunpack.c.l.b16 %v561
        %v1791 = vunpack.c.h.b16 %v561
        %v1792 = vunpack.c.l.b16 %v562
        %v1793 = vunpack.c.h.b16 %v562
        %v1794 = vunpack.c.l.b16 %v563
        %v1795 = vunpack.c.h.b16 %v563
        %v1796 = vunpack.c.l.b16 %v564
        %v1797 = vunpack.c.h.b16 %v564
        %v1798 = vunpack.c.l.b16 %v565
        %v1799 = vunpack.c.h.b16 %v565
        %v1800 = vunpack.c.l.b16 %v566
        %v1801 = vunpack.c.h.b16 %v566
        %v1802 = vunpack.c.l.b16 %v567
        %v1803 = vunpack.c.h.b16 %v567
        %v1804 = vunpack.c.l.b16 %v568
        %v1805 = vunpack.c.h.b16 %v568
        %v1806 = vunpack.c.l.b16 %v569
        %v1807 = vunpack.c.h.b16 %v569
        %v1808 = vunpack.c.l.b16 %v570
        %v1809 = vunpack.c.h.b16 %v570
        %v1810 = vunpack.c.l.b16 %v571
        %v1811 = vunpack.c.h.b16 %v571
        %v1812 = vunpack.c.l.b16 %v572
        %v1813 = vunpack.c.h.b16 %v572
        %v1814 = vunpack.c.l.b16 %v573
        %v1815 = vunpack.c.h.b16 %v573
        %v1816 = vunpack.c.l.b16 %v574
        %v1817 = vunpack.c.h.b16 %v574
        %v1818 = vunpack.c.l.b16 %v575
        %v1819 = vunpack.c.h.b16 %v575
        %v1820 = vunpack.c.l.b16 %v576
        %v1821 = vunpack.c.h.b16 %v576
        %v1822 = vunpack.c.l.b16 %v577
        %v1823 = vunpack.c.h.b16 %v577
        %v1824 = vunpack.c.l.b16 %v578
        %v1825 = vunpack.c.h.b16 %v578
        %v1826 = vunpack.c.l.b16 %v579
        %v1827 = vunpack.c.h.b16 %v579
        %v1828 = vunpack.c.l.b16 %v580
        %v1829 = vunpack.c.h.b16 %v580
        %v1830 = vunpack.c.l.b16 %v581
        %v1831 = vunpack.c.h.b16 %v581
        %v1832 = vunpack.c.l.b16 %v582
        %v1833 = vunpack.c.h.b16 %v582
        %v1834 = vunpack.c.l.b16 %v583
        %v1835 = vunpack.c.h.b16 %v583
        %v1836 = vunpack.c.l.b16 %v584
        %v1837 = vunpack.c.h.b16 %v584
        %v1838 = vunpack.c.l.b16 %v585
        %v1839 = vunpack.c.h.b16 %v585
        %v1840 = vunpack.c.l.b16 %v586
        %v1841 = vunpack.c.h.b16 %v586
        %v1842 = vunpack.c.l.b16 %v587
        %v1843 = vunpack.c.h.b16 %v587
        %v1844 = vunpack.c.l.b16 %v588
        %v1845 = vunpack.c.h.b16 %v588
        %v1846 = vunpack.c.l.b16 %v589
        %v1847 = vunpack.c.h.b16 %v589
        %v1848 = vunpack.c.l.b16 %v590
        %v1849 = vunpack.c.h.b16 %v590
        %v1850 = vunpack.c.l.b16 %v591
        %v1851 = vunpack.c.h.b16 %v591
        %v1852 = vunpack.c.l.b16 %v592
        %v1853 = vunpack.c.h.b16 %v592
        %v1854 = vunpack.c.l.b16 %v593
        %v1855 = vunpack.c.h.b16 %v593
        %v1856 = vunpack.c.l.b16 %v594
        %v1857 = vunpack.c.h.b16 %v594
        %v1858 = vunpack.c.l.b16 %v595
        %v1859 = vunpack.c.h.b16 %v595
        %v1860 = vunpack.c.l.b16 %v596
        %v1861 = vunpack.c.h.b16 %v596
        %v1862 = vunpack.c.l.b16 %v597
        %v1863 = vunpack.c.h.b16 %v597
        %v1864 = vunpack.c.l.b16 %v598
        %v1865 = vunpack.c.h.b16 %v598
        %v1866 = vunpack.c.l.b16 %v599
        %v1867 = vunpack.c.h.b16 %v599
        %v1868 = vunpack.c.l.b16 %v600
        %v1869 = vunpack.c.h.b16 %v600
        %v1870 = vunpack.c.l.b16 %v601
        %v1871 = vunpack.c.h.b16 %v601
        %v1872 = vunpack.c.l.b16 %v602
        %v1873 = vunpack.c.h.b16 %v602
        %v1874 = vunpack.c.l.b16 %v603
        %v1875 = vunpack.c.h.b16 %v603
        %v1876 = vunpack.c.l.b16 %v604
        %v1877 = vunpack.c.h.b16 %v604
        %v1878 = vunpack.c.l.b16 %v605
        %v1879 = vunpack.c.h.b16 %v605
        %v1880 = vunpack.c.l.b16 %v606
        %v1881 = vunpack.c.h.b16 %v606
        %v1882 = vunpack.c.l.b16 %v607
        %v1883 = vunpack.c.h.b16 %v607
        %v1884 = vunpack.c.l.b16 %v608
        %v1885 = vunpack.c.h.b16 %v608
        %v1886 = vunpack.c.l.b16 %v609
        %v1887 = vunpack.c.h.b16 %v609
        %v1888 = vunpack.c.l.b16 %v610
        %v1889 = vunpack.c.h.b16 %v610
        %v1890 = vunpack.c.l.b16 %v611
        %v1891 = vunpack.c.h.b16 %v611
        %v1892 = vunpack.c.l.b16 %v612
        %v1893 = vunpack.c.h.b16 %v612
        %v1894 = vunpack.c.l.b16 %v613
        %v1895 = vunpack.c.h.b16 %v613
        %v1896 = vunpack.c.l.b16 %v614
        %v1897 = vunpack.c.h.b16 %v614
        %v1898 = vunpack.c.l.b16 %v615
        %v1899 = vunpack.c.h.b16 %v615
        %v1900 = vunpack.c.l.b16 %v616
        %v1901 = vunpack.c.h.b16 %v616
        %v1902 = vunpack.c.l.b16 %v617
        %v1903 = vunpack.c.h.b16 %v617
        %v1904 = vunpack.c.l.b16 %v618
        %v1905 = vunpack.c.h.b16 %v618
        %v1906 = vunpack.c.l.b16 %v619
        %v1907 = vunpack.c.h.b16 %v619
        %v1908 = vunpack.c.l.b16 %v620
        %v1909 = vunpack.c.h.b16 %v620
        %v1910 = vunpack.c.l.b16 %v621
        %v1911 = vunpack.c.h.b16 %v621
        %v1912 = vunpack.c.l.b16 %v622
        %v1913 = vunpack.c.h.b16 %v622
        %v1914 = vunpack.c.l.b16 %v623
        %v1915 = vunpack.c.h.b16 %v623
        %v1916 = vunpack.c.l.b16 %v624
        %v1917 = vunpack.c.h.b16 %v624
        %v1918 = vunpack.c.l.b16 %v625
        %v1919 = vunpack.c.h.b16 %v625
        %v1920 = vunpack.c.l.b16 %v626
        %v1921 = vunpack.c.h.b16 %v626
        %v1922 = vunpack.c.l.b16 %v627
        %v1923 = vunpack.c.h.b16 %v627
        %v1924 = vunpack.c.l.b16 %v628
        %v1925 = vunpack.c.h.b16 %v628
        %v1926 = vunpack.c.l.b16 %v629
        %v1927 = vunpack.c.h.b16 %v629
        %v1928 = vunpack.c.l.b16 %v630
        %v1929 = vunpack.c.h.b16 %v630
        %v1930 = vunpack.c.l.b16 %v631
        %v1931 = vunpack.c.h.b16 %v631
        %v1932 = vunpack.c.l.b16 %v632
        %v1933 = vunpack.c.h.b16 %v632
        %v1934 = vunpack.c.l.b16 %v633
        %v1935 = vunpack.c.h.b16 %v633
        %v1936 = vunpack.c.l.b16 %v634
        %v1937 = vunpack.c.h.b16 %v634
        %v1938 = vunpack.c.l.b16 %v635
        %v1939 = vunpack.c.h.b16 %v635
        %v1940 = vunpack.c.l.b16 %v636
        %v1941 = vunpack.c.h.b16 %v636
        %v1942 = vunpack.c.l.b16 %v637
        %v1943 = vunpack.c.h.b16 %v637
        %v1944 = vunpack.c.l.b16 %v638
        %v1945 = vunpack.c.h.b16 %v638
        %v1946 = vunpack.c.l.b16 %v639
        %v1947 = vunpack.c.h.b16 %v639
        %v1948 = vunpack.c.l.b16 %v640
        %v1949 = vunpack.c.h.b16 %v640
        %v1950 = vunpack.c.l.b16 %v641
        %v1951 = vunpack.c.h.b16 %v641
        %v1952 = vunpack.c.l.b16 %v642
        %v1953 = vunpack.c.h.b16 %v642
        %v1954 = vunpack.c.l.b16 %v643
        %v1955 = vunpack.c.h.b16 %v643
        %v1956 = vunpack.c.l.b16 %v644
        %v1957 = vunpack.c.h.b16 %v644
        %v1958 = vunpack.c.l.b16 %v645
        %v1959 = vunpack.c.h.b16 %v645
        %v1960 = vunpack.c.l.b16 %v646
        %v1961 = vunpack.c.h.b16 %v646
        %v1962 = vunpack.c.l.b16 %v647
        %v1963 = vunpack.c.h.b16 %v647
        %v1964 = vunpack.c.l.b16 %v648
        %v1965 = vunpack.c.h.b16 %v648
        %v1966 = vunpack.c.l.b16 %v649
        %v1967 = vunpack.c.h.b16 %v649
        %v1968 = vunpack.c.l.b16 %v650
        %v1969 = vunpack.c.h.b16 %v650
        %v1970 = vunpack.c.l.b16 %v651
        %v1971 = vunpack.c.h.b16 %v651
        %v1972 = vunpack.c.l.b16 %v652
        %v1973 = vunpack.c.h.b16 %v652
        %v1974 = vunpack.c.l.b16 %v653
        %v1975 = vunpack.c.h.b16 %v653
        %v1976 = vunpack.c.l.b16 %v654
        %v1977 = vunpack.c.h.b16 %v654
        %v1978 = vunpack.c.l.b16 %v655
        %v1979 = vunpack.c.h.b16 %v655
        %v1980 = vunpack.c.l.b16 %v656
        %v1981 = vunpack.c.h.b16 %v656
        %v1982 = vunpack.c.l.b16 %v657
        %v1983 = vunpack.c.h.b16 %v657
        %v1984 = vunpack.c.l.b16 %v658
        %v1985 = vunpack.c.h.b16 %v658
        %v1986 = vunpack.c.l.b16 %v659
        %v1987 = vunpack.c.h.b16 %v659
        %v1988 = vunpack.c.l.b16 %v660
        %v1989 = vunpack.c.h.b16 %v660
        %v1990 = vunpack.c.l.b16 %v661
        %v1991 = vunpack.c.h.b16 %v661
        %v1992 = vunpack.c.l.b16 %v662
        %v1993 = vunpack.c.h.b16 %v662
        %v1994 = vunpack.c.l.b16 %v663
        %v1995 = vunpack.c.h.b16 %v663
        %v1996 = vunpack.c.l.b16 %v664
        %v1997 = vunpack.c.h.b16 %v664
        %v1998 = vunpack.c.l.b16 %v665
        %v1999 = vunpack.c.h.b16 %v665
        %v2000 = vunpack.c.l.b16 %v666
        %v2001 = vunpack.c.h.b16 %v666
        %v2002 = vunpack.c.l.b16 %v667
        %v2003 = vunpack.c.h.b16 %v667
        %v2004 = vunpack.c.l.b16 %v668
        %v2005 = vunpack.c.h.b16 %v668
        %v2006 = vunpack.c.l.b16 %v669
        %v2007 = vunpack.c.h.b16 %v669
        %v2008 = vunpack.c.l.b16 %v670
        %v2009 = vunpack.c.h.b16 %v670
        %v2010 = vunpack.c.l.b16 %v671
        %v2011 = vunpack.c.h.b16 %v671
        %v2012 = vunpack.c.l.b16 %v672
        %v2013 = vunpack.c.h.b16 %v672
        %v2014 = vunpack.c.l.b16 %v673
        %v2015 = vunpack.c.h.b16 %v673
        %v2016 = vunpack.c.l.b16 %v674
        %v2017 = vunpack.c.h.b16 %v674
        %v2018 = vunpack.c.l.b16 %v675
        %v2019 = vunpack.c.h.b16 %v675
        %v2020 = vunpack.c.l.b16 %v676
        %v2021 = vunpack.c.h.b16 %v676
        %v2022 = vunpack.c.l.b16 %v677
        %v2023 = vunpack.c.h.b16 %v677
        %v2024 = vunpack.c.l.b16 %v678
        %v2025 = vunpack.c.h.b16 %v678
        %v2026 = vunpack.c.l.b16 %v679
        %v2027 = vunpack.c.h.b16 %v679
        %v2028 = vunpack.c.l.b16 %v680
        %v2029 = vunpack.c.h.b16 %v680
        %v2030 = vunpack.c.l.b16 %v681
        %v2031 = vunpack.c.h.b16 %v681
        %v2032 = vunpack.c.l.b16 %v682
        %v2033 = vunpack.c.h.b16 %v682
        %v2034 = vunpack.c.l.b16 %v683
        %v2035 = vunpack.c.h.b16 %v683
        %v2036 = vunpack.c.l.b16 %v684
        %v2037 = vunpack.c.h.b16 %v684
        %v2038 = vunpack.c.l.b16 %v685
        %v2039 = vunpack.c.h.b16 %v685
        %v2040 = vunpack.c.l.b16 %v686
        %v2041 = vunpack.c.h.b16 %v686
        %v2042 = vunpack.c.l.b16 %v687
        %v2043 = vunpack.c.h.b16 %v687
        %v2044 = vunpack.c.l.b16 %v688
        %v2045 = vunpack.c.h.b16 %v688
        %v2046 = vunpack.c.l.b16 %v689
        %v2047 = vunpack.c.h.b16 %v689
        %v2048 = vunpack.c.l.b16 %v690
        %v2049 = vunpack.c.h.b16 %v690
        %v2050 = vunpack.c.l.b16 %v691
        %v2051 = vunpack.c.h.b16 %v691
        %v2052 = vunpack.c.l.b16 %v692
        %v2053 = vunpack.c.h.b16 %v692
        %v2054 = vunpack.c.l.b16 %v693
        %v2055 = vunpack.c.h.b16 %v693
        %v2056 = vunpack.c.l.b16 %v694
        %v2057 = vunpack.c.h.b16 %v694
        %v2058 = vunpack.c.l.b16 %v695
        %v2059 = vunpack.c.h.b16 %v695
        %v2060 = vunpack.c.l.b16 %v696
        %v2061 = vunpack.c.h.b16 %v696
        %v2062 = vunpack.c.l.b16 %v697
        %v2063 = vunpack.c.h.b16 %v697
        %v2064 = vunpack.c.l.b16 %v698
        %v2065 = vunpack.c.h.b16 %v698
        %v2066 = vunpack.c.l.b16 %v699
        %v2067 = vunpack.c.h.b16 %v699
        %v2068 = vunpack.c.l.b16 %v700
        %v2069 = vunpack.c.h.b16 %v700
        %v2070 = vunpack.c.l.b16 %v701
        %v2071 = vunpack.c.h.b16 %v701
        %v2072 = vunpack.c.l.b16 %v702
        %v2073 = vunpack.c.h.b16 %v702
        %v2074 = vunpack.c.l.b16 %v703
        %v2075 = vunpack.c.h.b16 %v703
        %v2076 = vunpack.c.l.b16 %v704
        %v2077 = vunpack.c.h.b16 %v704
        %v2078 = vunpack.c.l.b16 %v705
        %v2079 = vunpack.c.h.b16 %v705
        %v2080 = vunpack.c.l.b16 %v706
        %v2081 = vunpack.c.h.b16 %v706
        %v2082 = vunpack.c.l.b16 %v707
        %v2083 = vunpack.c.h.b16 %v707
        %v2084 = vunpack.c.l.b16 %v708
        %v2085 = vunpack.c.h.b16 %v708
        %v2086 = vunpack.c.l.b16 %v709
        %v2087 = vunpack.c.h.b16 %v709
        %v2088 = vunpack.c.l.b16 %v710
        %v2089 = vunpack.c.h.b16 %v710
        %v2090 = vunpack.c.l.b16 %v711
        %v2091 = vunpack.c.h.b16 %v711
        %v2092 = vunpack.c.l.b16 %v712
        %v2093 = vunpack.c.h.b16 %v712
        %v2094 = vunpack.c.l.b16 %v713
        %v2095 = vunpack.c.h.b16 %v713
        %v2096 = vunpack.c.l.b16 %v714
        %v2097 = vunpack.c.h.b16 %v714
        %v2098 = vunpack.c.l.b16 %v715
        %v2099 = vunpack.c.h.b16 %v715
        %v2100 = vunpack.c.l.b16 %v716
        %v2101 = vunpack.c.h.b16 %v716
        %v2102 = vunpack.c.l.b16 %v717
        %v2103 = vunpack.c.h.b16 %v717
        %v2104 = vunpack.c.l.b16 %v718
        %v2105 = vunpack.c.h.b16 %v718
        %v2106 = vunpack.c.l.b16 %v719
        %v2107 = vunpack.c.h.b16 %v719
        %v2108 = vunpack.c.l.b16 %v720
        %v2109 = vunpack.c.h.b16 %v720
        %v2110 = vunpack.c.l.b16 %v721
        %v2111 = vunpack.c.h.b16 %v721
        %v2112 = vunpack.c.l.b16 %v722
        %v2113 = vunpack.c.h.b16 %v722
        %v2114 = vunpack.c.l.b16 %v723
        %v2115 = vunpack.c.h.b16 %v723
        %v2116 = vunpack.c.l.b16 %v724
        %v2117 = vunpack.c.h.b16 %v724
        %v2118 = vunpack.c.l.b16 %v725
        %v2119 = vunpack.c.h.b16 %v725
        %v2120 = vunpack.c.l.b16 %v726
        %v2121 = vunpack.c.h.b16 %v726
        %v2122 = vunpack.c.l.b16 %v727
        %v2123 = vunpack.c.h.b16 %v727
        %v2124 = vunpack.c.l.b16 %v728
        %v2125 = vunpack.c.h.b16 %v728
        %v2126 = vunpack.c.l.b16 %v729
        %v2127 = vunpack.c.h.b16 %v729
        %v2128 = vunpack.c.l.b16 %v730
        %v2129 = vunpack.c.h.b16 %v730
        %v2130 = vunpack.c.l.b16 %v731
        %v2131 = vunpack.c.h.b16 %v731
        %v2132 = vunpack.c.l.b16 %v732
        %v2133 = vunpack.c.h.b16 %v732
        %v2134 = vunpack.c.l.b16 %v733
        %v2135 = vunpack.c.h.b16 %v733
        %v2136 = vunpack.c.l.b16 %v734
        %v2137 = vunpack.c.h.b16 %v734
        %v2138 = vunpack.c.l.b16 %v735
        %v2139 = vunpack.c.h.b16 %v735
        %v2140 = vunpack.c.l.b16 %v736
        %v2141 = vunpack.c.h.b16 %v736
        %v2142 = vunpack.c.l.b16 %v737
        %v2143 = vunpack.c.h.b16 %v737
        %v2144 = vunpack.c.l.b16 %v738
        %v2145 = vunpack.c.h.b16 %v738
        %v2146 = vunpack.c.l.b16 %v739
        %v2147 = vunpack.c.h.b16 %v739
        %v2148 = vunpack.c.l.b16 %v740
        %v2149 = vunpack.c.h.b16 %v740
        %v2150 = vunpack.c.l.b16 %v741
        %v2151 = vunpack.c.h.b16 %v741
        %v2152 = vunpack.c.l.b16 %v742
        %v2153 = vunpack.c.h.b16 %v742
        %v2154 = vunpack.c.l.b16 %v743
        %v2155 = vunpack.c.h.b16 %v743
        %v2156 = vunpack.c.l.b16 %v744
        %v2157 = vunpack.c.h.b16 %v744
        %v2158 = vunpack.c.l.b16 %v745
        %v2159 = vunpack.c.h.b16 %v745
        %v2160 = vunpack.c.l.b16 %v746
        %v2161 = vunpack.c.h.b16 %v746
        %v2162 = vunpack.c.l.b16 %v747
        %v2163 = vunpack.c.h.b16 %v747
        %v2164 = vunpack.c.l.b16 %v748
        %v2165 = vunpack.c.h.b16 %v748
        %v2166 = vunpack.c.l.b16 %v749
        %v2167 = vunpack.c.h.b16 %v749
        %v2168 = vunpack.c.l.b16 %v750
        %v2169 = vunpack.c.h.b16 %v750
        %v2170 = vunpack.c.l.b16 %v751
        %v2171 = vunpack.c.h.b16 %v751
        %v2172 = vunpack.c.l.b16 %v752
        %v2173 = vunpack.c.h.b16 %v752
        %v2174 = vunpack.c.l.b16 %v753
        %v2175 = vunpack.c.h.b16 %v753
        %v2176 = vunpack.c.l.b16 %v754
        %v2177 = vunpack.c.h.b16 %v754
        %v2178 = vunpack.c.l.b16 %v755
        %v2179 = vunpack.c.h.b16 %v755
        %v2180 = vunpack.c.l.b16 %v756
        %v2181 = vunpack.c.h.b16 %v756
        %v2182 = vunpack.c.l.b16 %v757
        %v2183 = vunpack.c.h.b16 %v757
        %v2184 = vunpack.c.l.b16 %v758
        %v2185 = vunpack.c.h.b16 %v758
        %v2186 = vunpack.c.l.b16 %v759
        %v2187 = vunpack.c.h.b16 %v759
        %v2188 = vunpack.c.l.b16 %v760
        %v2189 = vunpack.c.h.b16 %v760
        %v2190 = vunpack.c.l.b16 %v761
        %v2191 = vunpack.c.h.b16 %v761
        %v2192 = vunpack.c.l.b16 %v762
        %v2193 = vunpack.c.h.b16 %v762
        %v2194 = vunpack.c.l.b16 %v763
        %v2195 = vunpack.c.h.b16 %v763
        %v2196 = vunpack.c.l.b16 %v764
        %v2197 = vunpack.c.h.b16 %v764
        %v2198 = vunpack.c.l.b16 %v765
        %v2199 = vunpack.c.h.b16 %v765
        %v2200 = vunpack.c.l.b16 %v766
        %v2201 = vunpack.c.h.b16 %v766
        %v2202 = vunpack.c.l.b16 %v767
        %v2203 = vunpack.c.h.b16 %v767
        %v2204 = vunpack.c.l.b16 %v768
        %v2205 = vunpack.c.h.b16 %v768
        %v2206 = vunpack.c.l.b16 %v769
        %v2207 = vunpack.c.h.b16 %v769
        %v2208 = vunpack.c.l.b16 %v770
        %v2209 = vunpack.c.h.b16 %v770
        %v2210 = vunpack.c.l.b16 %v771
        %v2211 = vunpack.c.h.b16 %v771
        %v2212 = vunpack.c.l.b16 %v772
        %v2213 = vunpack.c.h.b16 %v772
        %v2214 = vunpack.c.l.b16 %v773
        %v2215 = vunpack.c.h.b16 %v773
        %v2216 = vunpack.c.l.b16 %v774
        %v2217 = vunpack.c.h.b16 %v774
        %v2218 = vunpack.c.l.b16 %v775
        %v2219 = vunpack.c.h.b16 %v775
        %v2220 = vunpack.c.l.b16 %v776
        %v2221 = vunpack.c.h.b16 %v776
        %v2222 = vunpack.c.l.b16 %v777
        %v2223 = vunpack.c.h.b16 %v777
        %v2224 = vunpack.c.l.b16 %v778
        %v2225 = vunpack.c.h.b16 %v778
        %v2226 = vunpack.c.l.b16 %v779
        %v2227 = vunpack.c.h.b16 %v779
        %v2228 = vunpack.c.l.b16 %v780
        %v2229 = vunpack.c.h.b16 %v780
        %v2230 = vunpack.c.l.b16 %v781
        %v2231 = vunpack.c.h.b16 %v781
        %v2232 = vunpack.c.l.b16 %v782
        %v2233 = vunpack.c.h.b16 %v782
        %v2234 = vunpack.c.l.b16 %v783
        %v2235 = vunpack.c.h.b16 %v783
        %v2236 = vunpack.c.l.b16 %v784
        %v2237 = vunpack.c.h.b16 %v784
        %v2238 = vunpack.c.l.b16 %v785
        %v2239 = vunpack.c.h.b16 %v785
        %v2240 = vunpack.c.l.b16 %v786
        %v2241 = vunpack.c.h.b16 %v786
        %v2242 = vunpack.c.l.b16 %v787
        %v2243 = vunpack.c.h.b16 %v787
        %v2244 = vunpack.c.l.b16 %v788
        %v2245 = vunpack.c.h.b16 %v788
        %v2246 = vunpack.c.l.b16 %v789
        %v2247 = vunpack.c.h.b16 %v789
        %v2248 = vunpack.c.l.b16 %v790
        %v2249 = vunpack.c.h.b16 %v790
        %v2250 = vunpack.c.l.b16 %v791
        %v2251 = vunpack.c.h.b16 %v791
        %v2252 = vunpack.c.l.b16 %v792
        %v2253 = vunpack.c.h.b16 %v792
        %v2254 = vunpack.c.l.b16 %v793
        %v2255 = vunpack.c.h.b16 %v793
        %v2256 = vunpack.c.l.b16 %v794
        %v2257 = vunpack.c.h.b16 %v794
        %v2258 = vunpack.c.l.b16 %v795
        %v2259 = vunpack.c.h.b16 %v795
        %v2260 = vunpack.c.l.b16 %v796
        %v2261 = vunpack.c.h.b16 %v796
        %v2262 = vunpack.c.l.b16 %v797
        %v2263 = vunpack.c.h.b16 %v797
        %v2264 = vunpack.c.l.b16 %v798
        %v2265 = vunpack.c.h.b16 %v798
        %v2266 = vunpack.c.l.b16 %v799
        %v2267 = vunpack.c.h.b16 %v799
        %v2268 = vunpack.c.l.b16 %v800
        %v2269 = vunpack.c.h.b16 %v800
        %v2270 = vunpack.c.l.b16 %v801
        %v2271 = vunpack.c.h.b16 %v801
        %v2272 = vunpack.c.l.b16 %v802
        %v2273 = vunpack.c.h.b16 %v802
        %v2274 = vunpack.c.l.b16 %v803
        %v2275 = vunpack.c.h.b16 %v803
        %v2276 = vunpack.c.l.b16 %v804
        %v2277 = vunpack.c.h.b16 %v804
        %v2278 = vunpack.c.l.b16 %v805
        %v2279 = vunpack.c.h.b16 %v805
        %v2280 = vunpack.c.l.b16 %v806
        %v2281 = vunpack.c.h.b16 %v806
        %v2282 = vunpack.c.l.b16 %v807
        %v2283 = vunpack.c.h.b16 %v807
        %v2284 = vunpack.c.l.b16 %v808
        %v2285 = vunpack.c.h.b16 %v808
        %v2286 = vunpack.c.l.b16 %v809
        %v2287 = vunpack.c.h.b16 %v809
        %v2288 = vunpack.c.l.b16 %v810
        %v2289 = vunpack.c.h.b16 %v810
        %v2290 = vunpack.c.l.b16 %v811
        %v2291 = vunpack.c.h.b16 %v811
        %v2292 = vunpack.c.l.b16 %v812
        %v2293 = vunpack.c.h.b16 %v812
        %v2294 = vunpack.c.l.b16 %v813
        %v2295 = vunpack.c.h.b16 %v813
        %v2296 = vunpack.c.l.b16 %v814
        %v2297 = vunpack.c.h.b16 %v814
        %v2298 = vunpack.c.l.b16 %v815
        %v2299 = vunpack.c.h.b16 %v815
        %v2300 = vunpack.c.l.b16 %v816
        %v2301 = vunpack.c.h.b16 %v816
        %v2302 = vunpack.c.l.b16 %v817
        %v2303 = vunpack.c.h.b16 %v817
        %v2304 = vunpack.c.l.b16 %v818
        %v2305 = vunpack.c.h.b16 %v818
        %v2306 = vunpack.c.l.b16 %v819
        %v2307 = vunpack.c.h.b16 %v819
        %v2308 = vunpack.c.l.b16 %v820
        %v2309 = vunpack.c.h.b16 %v820
        %v2310 = vunpack.c.l.b16 %v821
        %v2311 = vunpack.c.h.b16 %v821
        %v2312 = vunpack.c.l.b16 %v822
        %v2313 = vunpack.c.h.b16 %v822
        %v2314 = vunpack.c.l.b16 %v823
        %v2315 = vunpack.c.h.b16 %v823
        %v2316 = vunpack.c.l.b16 %v824
        %v2317 = vunpack.c.h.b16 %v824
        %v2318 = vunpack.c.l.b16 %v825
        %v2319 = vunpack.c.h.b16 %v825
        %v2320 = vunpack.c.l.b16 %v826
        %v2321 = vunpack.c.h.b16 %v826
        %v2322 = vunpack.c.l.b16 %v827
        %v2323 = vunpack.c.h.b16 %v827
        %v2324 = vunpack.c.l.b16 %v828
        %v2325 = vunpack.c.h.b16 %v828
        %v2326 = vunpack.c.l.b16 %v829
        %v2327 = vunpack.c.h.b16 %v829
        %v2328 = vunpack.c.l.b16 %v830
        %v2329 = vunpack.c.h.b16 %v830
        %v2330 = vunpack.c.l.b16 %v831
        %v2331 = vunpack.c.h.b16 %v831
        %v2332 = vunpack.c.l.b16 %v832
        %v2333 = vunpack.c.h.b16 %v832
        %v2334 = vunpack.c.l.b16 %v833
        %v2335 = vunpack.c.h.b16 %v833
        %v2336 = vunpack.c.l.b16 %v834
        %v2337 = vunpack.c.h.b16 %v834
        %v2338 = vunpack.c.l.b16 %v835
        %v2339 = vunpack.c.h.b16 %v835
        %v2340 = vunpack.c.l.b16 %v836
        %v2341 = vunpack.c.h.b16 %v836
        %v2342 = vunpack.c.l.b16 %v837
        %v2343 = vunpack.c.h.b16 %v837
        %v2344 = vunpack.c.l.b16 %v838
        %v2345 = vunpack.c.h.b16 %v838
        %v2346 = vunpack.c.l.b16 %v839
        %v2347 = vunpack.c.h.b16 %v839
        %v2348 = vunpack.c.l.b16 %v840
        %v2349 = vunpack.c.h.b16 %v840
        %v2350 = vunpack.c.l.b16 %v841
        %v2351 = vunpack.c.h.b16 %v841
        %v2352 = vunpack.c.l.b16 %v842
        %v2353 = vunpack.c.h.b16 %v842
        %v2354 = vunpack.c.l.b16 %v843
        %v2355 = vunpack.c.h.b16 %v843
        %v2356 = vunpack.c.l.b16 %v844
        %v2357 = vunpack.c.h.b16 %v844
        %v2358 = vunpack.c.l.b16 %v845
        %v2359 = vunpack.c.h.b16 %v845
        %v2360 = vunpack.c.l.b16 %v846
        %v2361 = vunpack.c.h.b16 %v846
        %v2362 = vunpack.c.l.b16 %v847
        %v2363 = vunpack.c.h.b16 %v847
        %v2364 = vunpack.c.l.b16 %v848
        %v2365 = vunpack.c.h.b16 %v848
        %v2366 = vunpack.c.l.b16 %v849
        %v2367 = vunpack.c.h.b16 %v849
        %v2368 = vunpack.c.l.b16 %v850
        %v2369 = vunpack.c.h.b16 %v850
        %v2370 = vunpack.c.l.b16 %v851
        %v2371 = vunpack.c.h.b16 %v851
        %v2372 = vunpack.c.l.b16 %v852
        %v2373 = vunpack.c.h.b16 %v852
        %v2374 = vunpack.c.l.b16 %v853
        %v2375 = vunpack.c.h.b16 %v853
        %v2376 = vunpack.c.l.b16 %v854
        %v2377 = vunpack.c.h.b16 %v854
        %v2378 = vunpack.c.l.b16 %v855
        %v2379 = vunpack.c.h.b16 %v855
        %v2380 = vunpack.c.l.b16 %v856
        %v2381 = vunpack.c.h.b16 %v856
        %v2382 = vunpack.c.l.b16 %v857
        %v2383 = vunpack.c.h.b16 %v857
        %v2384 = vunpack.c.l.b16 %v858
        %v2385 = vunpack.c.h.b16 %v858
        %v2386 = vunpack.c.l.b16 %v859
        %v2387 = vunpack.c.h.b16 %v859
        %v2388 = vunpack.c.l.b16 %v860
        %v2389 = vunpack.c.h.b16 %v860
        %v2390 = vunpack.c.l.b16 %v861
        %v2391 = vunpack.c.h.b16 %v861
        %v2392 = vunpack.c.l.b16 %v862
        %v2393 = vunpack.c.h.b16 %v862
        %v2394 = vunpack.c.l.b16 %v863
        %v2395 = vunpack.c.h.b16 %v863
        %v2396 = vunpack.c.l.b16 %v864
        %v2397 = vunpack.c.h.b16 %v864
        %v2398 = vunpack.c.l.b16 %v865
        %v2399 = vunpack.c.h.b16 %v865
        %v2400 = vunpack.c.l.b16 %v866
        %v2401 = vunpack.c.h.b16 %v866
        %v2402 = vunpack.c.l.b16 %v867
        %v2403 = vunpack.c.h.b16 %v867
        %v2404 = vpack.c.b16 %v1384, %v1380
        %v2405 = vpack.c.b16 %v1385, %v1381
        %v2406 = vpack.c.b16 %v1386, %v1382
        %v2407 = vpack.c.b16 %v1387, %v1383
        %v2408 = vpack.c.b16 %v1392, %v1388
        %v2409 = vpack.c.b16 %v1393, %v1389
        %v2410 = vpack.c.b16 %v1394, %v1390
        %v2411 = vpack.c.b16 %v1395, %v1391
        %v2412 = vpack.c.b16 %v1400, %v1396
        %v2413 = vpack.c.b16 %v1401, %v1397
        %v2414 = vpack.c.b16 %v1402, %v1398
        %v2415 = vpack.c.b16 %v1403, %v1399
        %v2416 = vpack.c.b16 %v1408, %v1404
        %v2417 = vpack.c.b16 %v1409, %v1405
        %v2418 = vpack.c.b16 %v1410, %v1406
        %v2419 = vpack.c.b16 %v1411, %v1407
        %v2420 = vpack.c.b16 %v1416, %v1412
        %v2421 = vpack.c.b16 %v1417, %v1413
        %v2422 = vpack.c.b16 %v1418, %v1414
        %v2423 = vpack.c.b16 %v1419, %v1415
        %v2424 = vpack.c.b16 %v1424, %v1420
        %v2425 = vpack.c.b16 %v1425, %v1421
        %v2426 = vpack.c.b16 %v1426, %v1422
        %v2427 = vpack.c.b16 %v1427, %v1423
        %v2428 = vpack.c.b16 %v1432, %v1428
        %v2429 = vpack.c.b16 %v1433, %v1429
        %v2430 = vpack.c.b16 %v1434, %v1430
        %v2431 = vpack.c.b16 %v1435, %v1431
        %v2432 = vpack.c.b16 %v1440, %v1436
        %v2433 = vpack.c.b16 %v1441, %v1437
        %v2434 = vpack.c.b16 %v1442, %v1438
        %v2435 = vpack.c.b16 %v1443, %v1439
        %v2436 = vpack.c.b16 %v1448, %v1444
        %v2437 = vpack.c.b16 %v1449, %v1445
        %v2438 = vpack.c.b16 %v1450, %v1446
        %v2439 = vpack.c.b16 %v1451, %v1447
        %v2440 = vpack.c.b16 %v1456, %v1452
        %v2441 = vpack.c.b16 %v1457, %v1453
        %v2442 = vpack.c.b16 %v1458, %v1454
        %v2443 = vpack.c.b16 %v1459, %v1455
        %v2444 = vpack.c.b16 %v1464, %v1460
        %v2445 = vpack.c.b16 %v1465, %v1461
        %v2446 = vpack.c.b16 %v1466, %v1462
        %v2447 = vpack.c.b16 %v1467, %v1463
        %v2448 = vpack.c.b16 %v1472, %v1468
        %v2449 = vpack.c.b16 %v1473, %v1469
        %v2450 = vpack.c.b16 %v1474, %v1470
        %v2451 = vpack.c.b16 %v1475, %v1471
        %v2452 = vpack.c.b16 %v1480, %v1476
        %v2453 = vpack.c.b16 %v1481, %v1477
        %v2454 = vpack.c.b16 %v1482, %v1478
        %v2455 = vpack.c.b16 %v1483, %v1479
        %v2456 = vpack.c.b16 %v1488, %v1484
        %v2457 = vpack.c.b16 %v1489, %v1485
        %v2458 = vpack.c.b16 %v1490, %v1486
        %v2459 = vpack.c.b16 %v1491, %v1487
        %v2460 = vpack.c.b16 %v1496, %v1492
        %v2461 = vpack.c.b16 %v1497, %v1493
        %v2462 = vpack.c.b16 %v1498, %v1494
        %v2463 = vpack.c.b16 %v1499, %v1495
        %v2464 = vpack.c.b16 %v1504, %v1500
        %v2465 = vpack.c.b16 %v1505, %v1501
        %v2466 = vpack.c.b16 %v1506, %v1502
        %v2467 = vpack.c.b16 %v1507, %v1503
        %v2468 = vpack.c.b16 %v1512, %v1508
        %v2469 = vpack.c.b16 %v1513, %v1509
        %v2470 = vpack.c.b16 %v1514, %v1510
        %v2471 = vpack.c.b16 %v1515, %v1511
        %v2472 = vpack.c.b16 %v1520, %v1516
        %v2473 = vpack.c.b16 %v1521, %v1517
        %v2474 = vpack.c.b16 %v1522, %v1518
        %v2475 = vpack.c.b16 %v1523, %v1519
        %v2476 = vpack.c.b16 %v1528, %v1524
        %v2477 = vpack.c.b16 %v1529, %v1525
        %v2478 = vpack.c.b16 %v1530, %v1526
        %v2479 = vpack.c.b16 %v1531, %v1527
        %v2480 = vpack.c.b16 %v1536, %v1532
        %v2481 = vpack.c.b16 %v1537, %v1533
        %v2482 = vpack.c.b16 %v1538, %v1534
        %v2483 = vpack.c.b16 %v1539, %v1535
        %v2484 = vpack.c.b16 %v1544, %v1540
        %v2485 = vpack.c.b16 %v1545, %v1541
        %v2486 = vpack.c.b16 %v1546, %v1542
        %v2487 = vpack.c.b16 %v1547, %v1543
        %v2488 = vpack.c.b16 %v1552, %v1548
        %v2489 = vpack.c.b16 %v1553, %v1549
        %v2490 = vpack.c.b16 %v1554, %v1550
        %v2491 = vpack.c.b16 %v1555, %v1551
        %v2492 = vpack.c.b16 %v1560, %v1556
        %v2493 = vpack.c.b16 %v1561, %v1557
        %v2494 = vpack.c.b16 %v1562, %v1558
        %v2495 = vpack.c.b16 %v1563, %v1559
        %v2496 = vpack.c.b16 %v1568, %v1564
        %v2497 = vpack.c.b16 %v1569, %v1565
        %v2498 = vpack.c.b16 %v1570, %v1566
        %v2499 = vpack.c.b16 %v1571, %v1567
        %v2500 = vpack.c.b16 %v1576, %v1572
        %v2501 = vpack.c.b16 %v1577, %v1573
        %v2502 = vpack.c.b16 %v1578, %v1574
        %v2503 = vpack.c.b16 %v1579, %v1575
        %v2504 = vpack.c.b16 %v1584, %v1580
        %v2505 = vpack.c.b16 %v1585, %v1581
        %v2506 = vpack.c.b16 %v1586, %v1582
        %v2507 = vpack.c.b16 %v1587, %v1583
        %v2508 = vpack.c.b16 %v1592, %v1588
        %v2509 = vpack.c.b16 %v1593, %v1589
        %v2510 = vpack.c.b16 %v1594, %v1590
        %v2511 = vpack.c.b16 %v1595, %v1591
        %v2512 = vpack.c.b16 %v1600, %v1596
        %v2513 = vpack.c.b16 %v1601, %v1597
        %v2514 = vpack.c.b16 %v1602, %v1598
        %v2515 = vpack.c.b16 %v1603, %v1599
        %v2516 = vpack.c.b16 %v1608, %v1604
        %v2517 = vpack.c.b16 %v1609, %v1605
        %v2518 = vpack.c.b16 %v1610, %v1606
        %v2519 = vpack.c.b16 %v1611, %v1607
        %v2520 = vpack.c.b16 %v1616, %v1612
        %v2521 = vpack.c.b16 %v1617, %v1613
        %v2522 = vpack.c.b16 %v1618, %v1614
        %v2523 = vpack.c.b16 %v1619, %v1615
        %v2524 = vpack.c.b16 %v1624, %v1620
        %v2525 = vpack.c.b16 %v1625, %v1621
        %v2526 = vpack.c.b16 %v1626, %v1622
        %v2527 = vpack.c.b16 %v1627, %v1623
        %v2528 = vpack.c.b16 %v1632, %v1628
        %v2529 = vpack.c.b16 %v1633, %v1629
        %v2530 = vpack.c.b16 %v1634, %v1630
        %v2531 = vpack.c.b16 %v1635, %v1631
        %v2532 = vpack.c.b16 %v1640, %v1636
        %v2533 = vpack.c.b16 %v1641, %v1637
        %v2534 = vpack.c.b16 %v1642, %v1638
        %v2535 = vpack.c.b16 %v1643, %v1639
        %v2536 = vpack.c.b16 %v1648, %v1644
        %v2537 = vpack.c.b16 %v1649, %v1645
        %v2538 = vpack.c.b16 %v1650, %v1646
        %v2539 = vpack.c.b16 %v1651, %v1647
        %v2540 = vpack.c.b16 %v1656, %v1652
        %v2541 = vpack.c.b16 %v1657, %v1653
        %v2542 = vpack.c.b16 %v1658, %v1654
        %v2543 = vpack.c.b16 %v1659, %v1655
        %v2544 = vpack.c.b16 %v1664, %v1660
        %v2545 = vpack.c.b16 %v1665, %v1661
        %v2546 = vpack.c.b16 %v1666, %v1662
        %v2547 = vpack.c.b16 %v1667, %v1663
        %v2548 = vpack.c.b16 %v1672, %v1668
        %v2549 = vpack.c.b16 %v1673, %v1669
        %v2550 = vpack.c.b16 %v1674, %v1670
        %v2551 = vpack.c.b16 %v1675, %v1671
        %v2552 = vpack.c.b16 %v1680, %v1676
        %v2553 = vpack.c.b16 %v1681, %v1677
        %v2554 = vpack.c.b16 %v1682, %v1678
        %v2555 = vpack.c.b16 %v1683, %v1679
        %v2556 = vpack.c.b16 %v1688, %v1684
        %v2557 = vpack.c.b16 %v1689, %v1685
        %v2558 = vpack.c.b16 %v1690, %v1686
        %v2559 = vpack.c.b16 %v1691, %v1687
        %v2560 = vpack.c.b16 %v1696, %v1692
        %v2561 = vpack.c.b16 %v1697, %v1693
        %v2562 = vpack.c.b16 %v1698, %v1694
        %v2563 = vpack.c.b16 %v1699, %v1695
        %v2564 = vpack.c.b16 %v1704, %v1700
        %v2565 = vpack.c.b16 %v1705, %v1701
        %v2566 = vpack.c.b16 %v1706, %v1702
        %v2567 = vpack.c.b16 %v1707, %v1703
        %v2568 = vpack.c.b16 %v1712, %v1708
        %v2569 = vpack.c.b16 %v1713, %v1709
        %v2570 = vpack.c.b16 %v1714, %v1710
        %v2571 = vpack.c.b16 %v1715, %v1711
        %v2572 = vpack.c.b16 %v1720, %v1716
        %v2573 = vpack.c.b16 %v1721, %v1717
        %v2574 = vpack.c.b16 %v1722, %v1718
        %v2575 = vpack.c.b16 %v1723, %v1719
        %v2576 = vpack.c.b16 %v1728, %v1724
        %v2577 = vpack.c.b16 %v1729, %v1725
        %v2578 = vpack.c.b16 %v1730, %v1726
        %v2579 = vpack.c.b16 %v1731, %v1727
        %v2580 = vpack.c.b16 %v1736, %v1732
        %v2581 = vpack.c.b16 %v1737, %v1733
        %v2582 = vpack.c.b16 %v1738, %v1734
        %v2583 = vpack.c.b16 %v1739, %v1735
        %v2584 = vpack.c.b16 %v1744, %v1740
        %v2585 = vpack.c.b16 %v1745, %v1741
        %v2586 = vpack.c.b16 %v1746, %v1742
        %v2587 = vpack.c.b16 %v1747, %v1743
        %v2588 = vpack.c.b16 %v1752, %v1748
        %v2589 = vpack.c.b16 %v1753, %v1749
        %v2590 = vpack.c.b16 %v1754, %v1750
        %v2591 = vpack.c.b16 %v1755, %v1751
        %v2592 = vpack.c.b16 %v1760, %v1756
        %v2593 = vpack.c.b16 %v1761, %v1757
        %v2594 = vpack.c.b16 %v1762, %v1758
        %v2595 = vpack.c.b16 %v1763, %v1759
        %v2596 = vpack.c.b16 %v1768, %v1764
        %v2597 = vpack.c.b16 %v1769, %v1765
        %v2598 = vpack.c.b16 %v1770, %v1766
        %v2599 = vpack.c.b16 %v1771, %v1767
        %v2600 = vpack.c.b16 %v1776, %v1772
        %v2601 = vpack.c.b16 %v1777, %v1773
        %v2602 = vpack.c.b16 %v1778, %v1774
        %v2603 = vpack.c.b16 %v1779, %v1775
        %v2604 = vpack.c.b16 %v1784, %v1780
        %v2605 = vpack.c.b16 %v1785, %v1781
        %v2606 = vpack.c.b16 %v1786, %v1782
        %v2607 = vpack.c.b16 %v1787, %v1783
        %v2608 = vpack.c.b16 %v1792, %v1788
        %v2609 = vpack.c.b16 %v1793, %v1789
        %v2610 = vpack.c.b16 %v1794, %v1790
        %v2611 = vpack.c.b16 %v1795, %v1791
        %v2612 = vpack.c.b16 %v1800, %v1796
        %v2613 = vpack.c.b16 %v1801, %v1797
        %v2614 = vpack.c.b16 %v1802, %v1798
        %v2615 = vpack.c.b16 %v1803, %v1799
        %v2616 = vpack.c.b16 %v1808, %v1804
        %v2617 = vpack.c.b16 %v1809, %v1805
        %v2618 = vpack.c.b16 %v1810, %v1806
        %v2619 = vpack.c.b16 %v1811, %v1807
        %v2620 = vpack.c.b16 %v1816, %v1812
        %v2621 = vpack.c.b16 %v1817, %v1813
        %v2622 = vpack.c.b16 %v1818, %v1814
        %v2623 = vpack.c.b16 %v1819, %v1815
        %v2624 = vpack.c.b16 %v1824, %v1820
        %v2625 = vpack.c.b16 %v1825, %v1821
        %v2626 = vpack.c.b16 %v1826, %v1822
        %v2627 = vpack.c.b16 %v1827, %v1823
        %v2628 = vpack.c.b16 %v1832, %v1828
        %v2629 = vpack.c.b16 %v1833, %v1829
        %v2630 = vpack.c.b16 %v1834, %v1830
        %v2631 = vpack.c.b16 %v1835, %v1831
        %v2632 = vpack.c.b16 %v1840, %v1836
        %v2633 = vpack.c.b16 %v1841, %v1837
        %v2634 = vpack.c.b16 %v1842, %v1838
        %v2635 = vpack.c.b16 %v1843, %v1839
        %v2636 = vpack.c.b16 %v1848, %v1844
        %v2637 = vpack.c.b16 %v1849, %v1845
        %v2638 = vpack.c.b16 %v1850, %v1846
        %v2639 = vpack.c.b16 %v1851, %v1847
        %v2640 = vpack.c.b16 %v1856, %v1852
        %v2641 = vpack.c.b16 %v1857, %v1853
        %v2642 = vpack.c.b16 %v1858, %v1854
        %v2643 = vpack.c.b16 %v1859, %v1855
        %v2644 = vpack.c.b16 %v1864, %v1860
        %v2645 = vpack.c.b16 %v1865, %v1861
        %v2646 = vpack.c.b16 %v1866, %v1862
        %v2647 = vpack.c.b16 %v1867, %v1863
        %v2648 = vpack.c.b16 %v1872, %v1868
        %v2649 = vpack.c.b16 %v1873, %v1869
        %v2650 = vpack.c.b16 %v1874, %v1870
        %v2651 = vpack.c.b16 %v1875, %v1871
        %v2652 = vpack.c.b16 %v1880, %v1876
        %v2653 = vpack.c.b16 %v1881, %v1877
        %v2654 = vpack.c.b16 %v1882, %v1878
        %v2655 = vpack.c.b16 %v1883, %v1879
        %v2656 = vpack.c.b16 %v1888, %v1884
        %v2657 = vpack.c.b16 %v1889, %v1885
        %v2658 = vpack.c.b16 %v1890, %v1886
        %v2659 = vpack.c.b16 %v1891, %v1887
        %v2660 = vpack.c.b16 %v1896, %v1892
        %v2661 = vpack.c.b16 %v1897, %v1893
        %v2662 = vpack.c.b16 %v1898, %v1894
        %v2663 = vpack.c.b16 %v1899, %v1895
        %v2664 = vpack.c.b16 %v1904, %v1900
        %v2665 = vpack.c.b16 %v1905, %v1901
        %v2666 = vpack.c.b16 %v1906, %v1902
        %v2667 = vpack.c.b16 %v1907, %v1903
        %v2668 = vpack.c.b16 %v1912, %v1908
        %v2669 = vpack.c.b16 %v1913, %v1909
        %v2670 = vpack.c.b16 %v1914, %v1910
        %v2671 = vpack.c.b16 %v1915, %v1911
        %v2672 = vpack.c.b16 %v1920, %v1916
        %v2673 = vpack.c.b16 %v1921, %v1917
        %v2674 = vpack.c.b16 %v1922, %v1918
        %v2675 = vpack.c.b16 %v1923, %v1919
        %v2676 = vpack.c.b16 %v1928, %v1924
        %v2677 = vpack.c.b16 %v1929, %v1925
        %v2678 = vpack.c.b16 %v1930, %v1926
        %v2679 = vpack.c.b16 %v1931, %v1927
        %v2680 = vpack.c.b16 %v1936, %v1932
        %v2681 = vpack.c.b16 %v1937, %v1933
        %v2682 = vpack.c.b16 %v1938, %v1934
        %v2683 = vpack.c.b16 %v1939, %v1935
        %v2684 = vpack.c.b16 %v1944, %v1940
        %v2685 = vpack.c.b16 %v1945, %v1941
        %v2686 = vpack.c.b16 %v1946, %v1942
        %v2687 = vpack.c.b16 %v1947, %v1943
        %v2688 = vpack.c.b16 %v1952, %v1948
        %v2689 = vpack.c.b16 %v1953, %v1949
        %v2690 = vpack.c.b16 %v1954, %v1950
        %v2691 = vpack.c.b16 %v1955, %v1951
        %v2692 = vpack.c.b16 %v1960, %v1956
        %v2693 = vpack.c.b16 %v1961, %v1957
        %v2694 = vpack.c.b16 %v1962, %v1958
        %v2695 = vpack.c.b16 %v1963, %v1959
        %v2696 = vpack.c.b16 %v1968, %v1964
        %v2697 = vpack.c.b16 %v1969, %v1965
        %v2698 = vpack.c.b16 %v1970, %v1966
        %v2699 = vpack.c.b16 %v1971, %v1967
        %v2700 = vpack.c.b16 %v1976, %v1972
        %v2701 = vpack.c.b16 %v1977, %v1973
        %v2702 = vpack.c.b16 %v1978, %v1974
        %v2703 = vpack.c.b16 %v1979, %v1975
        %v2704 = vpack.c.b16 %v1984, %v1980
        %v2705 = vpack.c.b16 %v1985, %v1981
        %v2706 = vpack.c.b16 %v1986, %v1982
        %v2707 = vpack.c.b16 %v1987, %v1983
        %v2708 = vpack.c.b16 %v1992, %v1988
        %v2709 = vpack.c.b16 %v1993, %v1989
        %v2710 = vpack.c.b16 %v1994, %v1990
        %v2711 = vpack.c.b16 %v1995, %v1991
        %v2712 = vpack.c.b16 %v2000, %v1996
        %v2713 = vpack.c.b16 %v2001, %v1997
        %v2714 = vpack.c.b16 %v2002, %v1998
        %v2715 = vpack.c.b16 %v2003, %v1999
        %v2716 = vpack.c.b16 %v2008, %v2004
        %v2717 = vpack.c.b16 %v2009, %v2005
        %v2718 = vpack.c.b16 %v2010, %v2006
        %v2719 = vpack.c.b16 %v2011, %v2007
        %v2720 = vpack.c.b16 %v2016, %v2012
        %v2721 = vpack.c.b16 %v2017, %v2013
        %v2722 = vpack.c.b16 %v2018, %v2014
        %v2723 = vpack.c.b16 %v2019, %v2015
        %v2724 = vpack.c.b16 %v2024, %v2020
        %v2725 = vpack.c.b16 %v2025, %v2021
        %v2726 = vpack.c.b16 %v2026, %v2022
        %v2727 = vpack.c.b16 %v2027, %v2023
        %v2728 = vpack.c.b16 %v2032, %v2028
        %v2729 = vpack.c.b16 %v2033, %v2029
        %v2730 = vpack.c.b16 %v2034, %v2030
        %v2731 = vpack.c.b16 %v2035, %v2031
        %v2732 = vpack.c.b16 %v2040, %v2036
        %v2733 = vpack.c.b16 %v2041, %v2037
        %v2734 = vpack.c.b16 %v2042, %v2038
        %v2735 = vpack.c.b16 %v2043, %v2039
        %v2736 = vpack.c.b16 %v2048, %v2044
        %v2737 = vpack.c.b16 %v2049, %v2045
        %v2738 = vpack.c.b16 %v2050, %v2046
        %v2739 = vpack.c.b16 %v2051, %v2047
        %v2740 = vpack.c.b16 %v2056, %v2052
        %v2741 = vpack.c.b16 %v2057, %v2053
        %v2742 = vpack.c.b16 %v2058, %v2054
        %v2743 = vpack.c.b16 %v2059, %v2055
        %v2744 = vpack.c.b16 %v2064, %v2060
        %v2745 = vpack.c.b16 %v2065, %v2061
        %v2746 = vpack.c.b16 %v2066, %v2062
        %v2747 = vpack.c.b16 %v2067, %v2063
        %v2748 = vpack.c.b16 %v2072, %v2068
        %v2749 = vpack.c.b16 %v2073, %v2069
        %v2750 = vpack.c.b16 %v2074, %v2070
        %v2751 = vpack.c.b16 %v2075, %v2071
        %v2752 = vpack.c.b16 %v2080, %v2076
        %v2753 = vpack.c.b16 %v2081, %v2077
        %v2754 = vpack.c.b16 %v2082, %v2078
        %v2755 = vpack.c.b16 %v2083, %v2079
        %v2756 = vpack.c.b16 %v2088, %v2084
        %v2757 = vpack.c.b16 %v2089, %v2085
        %v2758 = vpack.c.b16 %v2090, %v2086
        %v2759 = vpack.c.b16 %v2091, %v2087
        %v2760 = vpack.c.b16 %v2096, %v2092
        %v2761 = vpack.c.b16 %v2097, %v2093
        %v2762 = vpack.c.b16 %v2098, %v2094
        %v2763 = vpack.c.b16 %v2099, %v2095
        %v2764 = vpack.c.b16 %v2104, %v2100
        %v2765 = vpack.c.b16 %v2105, %v2101
        %v2766 = vpack.c.b16 %v2106, %v2102
        %v2767 = vpack.c.b16 %v2107, %v2103
        %v2768 = vpack.c.b16 %v2112, %v2108
        %v2769 = vpack.c.b16 %v2113, %v2109
        %v2770 = vpack.c.b16 %v2114, %v2110
        %v2771 = vpack.c.b16 %v2115, %v2111
        %v2772 = vpack.c.b16 %v2120, %v2116
        %v2773 = vpack.c.b16 %v2121, %v2117
        %v2774 = vpack.c.b16 %v2122, %v2118
        %v2775 = vpack.c.b16 %v2123, %v2119
        %v2776 = vpack.c.b16 %v2128, %v2124
        %v2777 = vpack.c.b16 %v2129, %v2125
        %v2778 = vpack.c.b16 %v2130, %v2126
        %v2779 = vpack.c.b16 %v2131, %v2127
        %v2780 = vpack.c.b16 %v2136, %v2132
        %v2781 = vpack.c.b16 %v2137, %v2133
        %v2782 = vpack.c.b16 %v2138, %v2134
        %v2783 = vpack.c.b16 %v2139, %v2135
        %v2784 = vpack.c.b16 %v2144, %v2140
        %v2785 = vpack.c.b16 %v2145, %v2141
        %v2786 = vpack.c.b16 %v2146, %v2142
        %v2787 = vpack.c.b16 %v2147, %v2143
        %v2788 = vpack.c.b16 %v2152, %v2148
        %v2789 = vpack.c.b16 %v2153, %v2149
        %v2790 = vpack.c.b16 %v2154, %v2150
        %v2791 = vpack.c.b16 %v2155, %v2151
        %v2792 = vpack.c.b16 %v2160, %v2156
        %v2793 = vpack.c.b16 %v2161, %v2157
        %v2794 = vpack.c.b16 %v2162, %v2158
        %v2795 = vpack.c.b16 %v2163, %v2159
        %v2796 = vpack.c.b16 %v2168, %v2164
        %v2797 = vpack.c.b16 %v2169, %v2165
        %v2798 = vpack.c.b16 %v2170, %v2166
        %v2799 = vpack.c.b16 %v2171, %v2167
        %v2800 = vpack.c.b16 %v2176, %v2172
        %v2801 = vpack.c.b16 %v2177, %v2173
        %v2802 = vpack.c.b16 %v2178, %v2174
        %v2803 = vpack.c.b16 %v2179, %v2175
        %v2804 = vpack.c.b16 %v2184, %v2180
        %v2805 = vpack.c.b16 %v2185, %v2181
        %v2806 = vpack.c.b16 %v2186, %v2182
        %v2807 = vpack.c.b16 %v2187, %v2183
        %v2808 = vpack.c.b16 %v2192, %v2188
        %v2809 = vpack.c.b16 %v2193, %v2189
        %v2810 = vpack.c.b16 %v2194, %v2190
        %v2811 = vpack.c.b16 %v2195, %v2191
        %v2812 = vpack.c.b16 %v2200, %v2196
        %v2813 = vpack.c.b16 %v2201, %v2197
        %v2814 = vpack.c.b16 %v2202, %v2198
        %v2815 = vpack.c.b16 %v2203, %v2199
        %v2816 = vpack.c.b16 %v2208, %v2204
        %v2817 = vpack.c.b16 %v2209, %v2205
        %v2818 = vpack.c.b16 %v2210, %v2206
        %v2819 = vpack.c.b16 %v2211, %v2207
        %v2820 = vpack.c.b16 %v2216, %v2212
        %v2821 = vpack.c.b16 %v2217, %v2213
        %v2822 = vpack.c.b16 %v2218, %v2214
        %v2823 = vpack.c.b16 %v2219, %v2215
        %v2824 = vpack.c.b16 %v2224, %v2220
        %v2825 = vpack.c.b16 %v2225, %v2221
        %v2826 = vpack.c.b16 %v2226, %v2222
        %v2827 = vpack.c.b16 %v2227, %v2223
        %v2828 = vpack.c.b16 %v2232, %v2228
        %v2829 = vpack.c.b16 %v2233, %v2229
        %v2830 = vpack.c.b16 %v2234, %v2230
        %v2831 = vpack.c.b16 %v2235, %v2231
        %v2832 = vpack.c.b16 %v2240, %v2236
        %v2833 = vpack.c.b16 %v2241, %v2237
        %v2834 = vpack.c.b16 %v2242, %v2238
        %v2835 = vpack.c.b16 %v2243, %v2239
        %v2836 = vpack.c.b16 %v2248, %v2244
        %v2837 = vpack.c.b16 %v2249, %v2245
        %v2838 = vpack.c.b16 %v2250, %v2246
        %v2839 = vpack.c.b16 %v2251, %v2247
        %v2840 = vpack.c.b16 %v2256, %v2252
        %v2841 = vpack.c.b16 %v2257, %v2253
        %v2842 = vpack.c.b16 %v2258, %v2254
        %v2843 = vpack.c.b16 %v2259, %v2255
        %v2844 = vpack.c.b16 %v2264, %v2260
        %v2845 = vpack.c.b16 %v2265, %v2261
        %v2846 = vpack.c.b16 %v2266, %v2262
        %v2847 = vpack.c.b16 %v2267, %v2263
        %v2848 = vpack.c.b16 %v2272, %v2268
        %v2849 = vpack.c.b16 %v2273, %v2269
        %v2850 = vpack.c.b16 %v2274, %v2270
        %v2851 = vpack.c.b16 %v2275, %v2271
        %v2852 = vpack.c.b16 %v2280, %v2276
        %v2853 = vpack.c.b16 %v2281, %v2277
        %v2854 = vpack.c.b16 %v2282, %v2278
        %v2855 = vpack.c.b16 %v2283, %v2279
        %v2856 = vpack.c.b16 %v2288, %v2284
        %v2857 = vpack.c.b16 %v2289, %v2285
        %v2858 = vpack.c.b16 %v2290, %v2286
        %v2859 = vpack.c.b16 %v2291, %v2287
        %v2860 = vpack.c.b16 %v2296, %v2292
        %v2861 = vpack.c.b16 %v2297, %v2293
        %v2862 = vpack.c.b16 %v2298, %v2294
        %v2863 = vpack.c.b16 %v2299, %v2295
        %v2864 = vpack.c.b16 %v2304, %v2300
        %v2865 = vpack.c.b16 %v2305, %v2301
        %v2866 = vpack.c.b16 %v2306, %v2302
        %v2867 = vpack.c.b16 %v2307, %v2303
        %v2868 = vpack.c.b16 %v2312, %v2308
        %v2869 = vpack.c.b16 %v2313, %v2309
        %v2870 = vpack.c.b16 %v2314, %v2310
        %v2871 = vpack.c.b16 %v2315, %v2311
        %v2872 = vpack.c.b16 %v2320, %v2316
        %v2873 = vpack.c.b16 %v2321, %v2317
        %v2874 = vpack.c.b16 %v2322, %v2318
        %v2875 = vpack.c.b16 %v2323, %v2319
        %v2876 = vpack.c.b16 %v2328, %v2324
        %v2877 = vpack.c.b16 %v2329, %v2325
        %v2878 = vpack.c.b16 %v2330, %v2326
        %v2879 = vpack.c.b16 %v2331, %v2327
        %v2880 = vpack.c.b16 %v2336, %v2332
        %v2881 = vpack.c.b16 %v2337, %v2333
        %v2882 = vpack.c.b16 %v2338, %v2334
        %v2883 = vpack.c.b16 %v2339, %v2335
        %v2884 = vpack.c.b16 %v2344, %v2340
        %v2885 = vpack.c.b16 %v2345, %v2341
        %v2886 = vpack.c.b16 %v2346, %v2342
        %v2887 = vpack.c.b16 %v2347, %v2343
        %v2888 = vpack.c.b16 %v2352, %v2348
        %v2889 = vpack.c.b16 %v2353, %v2349
        %v2890 = vpack.c.b16 %v2354, %v2350
        %v2891 = vpack.c.b16 %v2355, %v2351
        %v2892 = vpack.c.b16 %v2360, %v2356
        %v2893 = vpack.c.b16 %v2361, %v2357
        %v2894 = vpack.c.b16 %v2362, %v2358
        %v2895 = vpack.c.b16 %v2363, %v2359
        %v2896 = vpack.c.b16 %v2368, %v2364
        %v2897 = vpack.c.b16 %v2369, %v2365
        %v2898 = vpack.c.b16 %v2370, %v2366
        %v2899 = vpack.c.b16 %v2371, %v2367
        %v2900 = vpack.c.b16 %v2376, %v2372
        %v2901 = vpack.c.b16 %v2377, %v2373
        %v2902 = vpack.c.b16 %v2378, %v2374
        %v2903 = vpack.c.b16 %v2379, %v2375
        %v2904 = vpack.c.b16 %v2384, %v2380
        %v2905 = vpack.c.b16 %v2385, %v2381
        %v2906 = vpack.c.b16 %v2386, %v2382
        %v2907 = vpack.c.b16 %v2387, %v2383
        %v2908 = vpack.c.b16 %v2392, %v2388
        %v2909 = vpack.c.b16 %v2393, %v2389
        %v2910 = vpack.c.b16 %v2394, %v2390
        %v2911 = vpack.c.b16 %v2395, %v2391
        %v2912 = vpack.c.b16 %v2400, %v2396
        %v2913 = vpack.c.b16 %v2401, %v2397
        %v2914 = vpack.c.b16 %v2402, %v2398
        %v2915 = vpack.c.b16 %v2403, %v2399
        %3428 = vmatpush.bf16.msra.mxu0 %v2432
        %3429 = vmatpush.bf16.msra.mxu0 %v2428
        %3430 = vmatpush.bf16.msra.mxu0 %v2424
        %3431 = vmatpush.bf16.msra.mxu0 %v2420
        %3432 = vmatpush.bf16.msra.mxu0 %v2416
        %3433 = vmatpush.bf16.msra.mxu0 %v2412
        %3434 = vmatpush.bf16.msra.mxu0 %v2408
        %3435 = vmatpush.bf16.msra.mxu0 %v2404
        %3436 = vmatmul.bf16.gmra.mxu0 %v340
        %v3437 = vpop.f32.mrf.mxu0
        %v3438 = vadd.f32 0.0, %v3437
        %v3439 = vpop.f32.mrf.mxu0
        %3440 = vdwg.mxu0
        %3441 = vmatpush.bf16.msra.mxu0 %v2464
        %3442 = vmatpush.bf16.msra.mxu0 %v2460
        %3443 = vmatpush.bf16.msra.mxu0 %v2456
        %3444 = vmatpush.bf16.msra.mxu0 %v2452
        %3445 = vmatpush.bf16.msra.mxu0 %v2448
        %3446 = vmatpush.bf16.msra.mxu0 %v2444
        %3447 = vmatpush.bf16.msra.mxu0 %v2440
        %3448 = vmatpush.bf16.msra.mxu0 %v2436
        %3449 = vmatmul.bf16.gmra.mxu0 %v341
        %v3450 = vpop.f32.mrf.mxu0
        %v3451 = vadd.f32 %v3438, %v3450
        %v3452 = vpop.f32.mrf.mxu0
        %3453 = vdwg.mxu0
        %3454 = vmatpush.bf16.msra.mxu0 %v2496
        %3455 = vmatpush.bf16.msra.mxu0 %v2492
        %3456 = vmatpush.bf16.msra.mxu0 %v2488
        %3457 = vmatpush.bf16.msra.mxu0 %v2484
        %3458 = vmatpush.bf16.msra.mxu0 %v2480
        %3459 = vmatpush.bf16.msra.mxu0 %v2476
        %3460 = vmatpush.bf16.msra.mxu0 %v2472
        %3461 = vmatpush.bf16.msra.mxu0 %v2468
        %3462 = vmatmul.bf16.gmra.mxu0 %v342
        %v3463 = vpop.f32.mrf.mxu0
        %v3464 = vadd.f32 %v3451, %v3463
        %v3465 = vpop.f32.mrf.mxu0
        %3466 = vdwg.mxu0
        %3467 = vmatpush.bf16.msra.mxu0 %v2528
        %3468 = vmatpush.bf16.msra.mxu0 %v2524
        %3469 = vmatpush.bf16.msra.mxu0 %v2520
        %3470 = vmatpush.bf16.msra.mxu0 %v2516
        %3471 = vmatpush.bf16.msra.mxu0 %v2512
        %3472 = vmatpush.bf16.msra.mxu0 %v2508
        %3473 = vmatpush.bf16.msra.mxu0 %v2504
        %3474 = vmatpush.bf16.msra.mxu0 %v2500
        %3475 = vmatmul.bf16.gmra.mxu0 %v343
        %v3476 = vpop.f32.mrf.mxu0
        %v3477 = vadd.f32 %v3464, %v3476
        %v3478 = vpop.f32.mrf.mxu0
        %3479 = vdwg.mxu0
        %3480 = vmatpush.bf16.msra.mxu0 %v2560
        %3481 = vmatpush.bf16.msra.mxu0 %v2556
        %3482 = vmatpush.bf16.msra.mxu0 %v2552
        %3483 = vmatpush.bf16.msra.mxu0 %v2548
        %3484 = vmatpush.bf16.msra.mxu0 %v2544
        %3485 = vmatpush.bf16.msra.mxu0 %v2540
        %3486 = vmatpush.bf16.msra.mxu0 %v2536
        %3487 = vmatpush.bf16.msra.mxu0 %v2532
        %3488 = vmatmul.bf16.gmra.mxu0 %v344
        %v3489 = vpop.f32.mrf.mxu0
        %v3490 = vadd.f32 %v3477, %v3489
        %v3491 = vpop.f32.mrf.mxu0
        %3492 = vdwg.mxu0
        %3493 = vmatpush.bf16.msra.mxu0 %v2592
        %3494 = vmatpush.bf16.msra.mxu0 %v2588
        %3495 = vmatpush.bf16.msra.mxu0 %v2584
        %3496 = vmatpush.bf16.msra.mxu0 %v2580
        %3497 = vmatpush.bf16.msra.mxu0 %v2576
        %3498 = vmatpush.bf16.msra.mxu0 %v2572
        %3499 = vmatpush.bf16.msra.mxu0 %v2568
        %3500 = vmatpush.bf16.msra.mxu0 %v2564
        %3501 = vmatmul.bf16.gmra.mxu0 %v345
        %v3502 = vpop.f32.mrf.mxu0
        %v3503 = vadd.f32 %v3490, %v3502
        %v3504 = vpop.f32.mrf.mxu0
        %3505 = vdwg.mxu0
        %3506 = vmatpush.bf16.msra.mxu0 %v2624
        %3507 = vmatpush.bf16.msra.mxu0 %v2620
        %3508 = vmatpush.bf16.msra.mxu0 %v2616
        %3509 = vmatpush.bf16.msra.mxu0 %v2612
        %3510 = vmatpush.bf16.msra.mxu0 %v2608
        %3511 = vmatpush.bf16.msra.mxu0 %v2604
        %3512 = vmatpush.bf16.msra.mxu0 %v2600
        %3513 = vmatpush.bf16.msra.mxu0 %v2596
        %3514 = vmatmul.bf16.gmra.mxu0 %v346
        %v3515 = vpop.f32.mrf.mxu0
        %v3516 = vadd.f32 %v3503, %v3515
        %v3517 = vpop.f32.mrf.mxu0
        %3518 = vdwg.mxu0
        %3519 = vmatpush.bf16.msra.mxu0 %v2656
        %3520 = vmatpush.bf16.msra.mxu0 %v2652
        %3521 = vmatpush.bf16.msra.mxu0 %v2648
        %3522 = vmatpush.bf16.msra.mxu0 %v2644
        %3523 = vmatpush.bf16.msra.mxu0 %v2640
        %3524 = vmatpush.bf16.msra.mxu0 %v2636
        %3525 = vmatpush.bf16.msra.mxu0 %v2632
        %3526 = vmatpush.bf16.msra.mxu0 %v2628
        %3527 = vmatmul.bf16.gmra.mxu0 %v347
        %v3528 = vpop.f32.mrf.mxu0
        %v3529 = vadd.f32 %v3516, %v3528
        %v3530 = vpop.f32.mrf.mxu0
        %3531 = vdwg.mxu0
        %3532 = vmatpush.bf16.msra.mxu0 %v2688
        %3533 = vmatpush.bf16.msra.mxu0 %v2684
        %3534 = vmatpush.bf16.msra.mxu0 %v2680
        %3535 = vmatpush.bf16.msra.mxu0 %v2676
        %3536 = vmatpush.bf16.msra.mxu0 %v2672
        %3537 = vmatpush.bf16.msra.mxu0 %v2668
        %3538 = vmatpush.bf16.msra.mxu0 %v2664
        %3539 = vmatpush.bf16.msra.mxu0 %v2660
        %3540 = vmatmul.bf16.gmra.mxu0 %v348
        %v3541 = vpop.f32.mrf.mxu0
        %v3542 = vadd.f32 %v3529, %v3541
        %v3543 = vpop.f32.mrf.mxu0
        %3544 = vdwg.mxu0
        %3545 = vmatpush.bf16.msra.mxu0 %v2720
        %3546 = vmatpush.bf16.msra.mxu0 %v2716
        %3547 = vmatpush.bf16.msra.mxu0 %v2712
        %3548 = vmatpush.bf16.msra.mxu0 %v2708
        %3549 = vmatpush.bf16.msra.mxu0 %v2704
        %3550 = vmatpush.bf16.msra.mxu0 %v2700
        %3551 = vmatpush.bf16.msra.mxu0 %v2696
        %3552 = vmatpush.bf16.msra.mxu0 %v2692
        %3553 = vmatmul.bf16.gmra.mxu0 %v349
        %v3554 = vpop.f32.mrf.mxu0
        %v3555 = vadd.f32 %v3542, %v3554
        %v3556 = vpop.f32.mrf.mxu0
        %3557 = vdwg.mxu0
        %3558 = vmatpush.bf16.msra.mxu0 %v2752
        %3559 = vmatpush.bf16.msra.mxu0 %v2748
        %3560 = vmatpush.bf16.msra.mxu0 %v2744
        %3561 = vmatpush.bf16.msra.mxu0 %v2740
        %3562 = vmatpush.bf16.msra.mxu0 %v2736
        %3563 = vmatpush.bf16.msra.mxu0 %v2732
        %3564 = vmatpush.bf16.msra.mxu0 %v2728
        %3565 = vmatpush.bf16.msra.mxu0 %v2724
        %3566 = vmatmul.bf16.gmra.mxu0 %v350
        %v3567 = vpop.f32.mrf.mxu0
        %v3568 = vadd.f32 %v3555, %v3567
        %v3569 = vpop.f32.mrf.mxu0
        %3570 = vdwg.mxu0
        %3571 = vmatpush.bf16.msra.mxu0 %v2784
        %3572 = vmatpush.bf16.msra.mxu0 %v2780
        %3573 = vmatpush.bf16.msra.mxu0 %v2776
        %3574 = vmatpush.bf16.msra.mxu0 %v2772
        %3575 = vmatpush.bf16.msra.mxu0 %v2768
        %3576 = vmatpush.bf16.msra.mxu0 %v2764
        %3577 = vmatpush.bf16.msra.mxu0 %v2760
        %3578 = vmatpush.bf16.msra.mxu0 %v2756
        %3579 = vmatmul.bf16.gmra.mxu0 %v351
        %v3580 = vpop.f32.mrf.mxu0
        %v3581 = vadd.f32 %v3568, %v3580
        %v3582 = vpop.f32.mrf.mxu0
        %3583 = vdwg.mxu0
        %3584 = vmatpush.bf16.msra.mxu0 %v2816
        %3585 = vmatpush.bf16.msra.mxu0 %v2812
        %3586 = vmatpush.bf16.msra.mxu0 %v2808
        %3587 = vmatpush.bf16.msra.mxu0 %v2804
        %3588 = vmatpush.bf16.msra.mxu0 %v2800
        %3589 = vmatpush.bf16.msra.mxu0 %v2796
        %3590 = vmatpush.bf16.msra.mxu0 %v2792
        %3591 = vmatpush.bf16.msra.mxu0 %v2788
        %3592 = vmatmul.bf16.gmra.mxu0 %v352
        %v3593 = vpop.f32.mrf.mxu0
        %v3594 = vadd.f32 %v3581, %v3593
        %v3595 = vpop.f32.mrf.mxu0
        %3596 = vdwg.mxu0
        %3597 = vmatpush.bf16.msra.mxu0 %v2848
        %3598 = vmatpush.bf16.msra.mxu0 %v2844
        %3599 = vmatpush.bf16.msra.mxu0 %v2840
        %3600 = vmatpush.bf16.msra.mxu0 %v2836
        %3601 = vmatpush.bf16.msra.mxu0 %v2832
        %3602 = vmatpush.bf16.msra.mxu0 %v2828
        %3603 = vmatpush.bf16.msra.mxu0 %v2824
        %3604 = vmatpush.bf16.msra.mxu0 %v2820
        %3605 = vmatmul.bf16.gmra.mxu0 %v353
        %v3606 = vpop.f32.mrf.mxu0
        %v3607 = vadd.f32 %v3594, %v3606
        %v3608 = vpop.f32.mrf.mxu0
        %3609 = vdwg.mxu0
        %3610 = vmatpush.bf16.msra.mxu0 %v2880
        %3611 = vmatpush.bf16.msra.mxu0 %v2876
        %3612 = vmatpush.bf16.msra.mxu0 %v2872
        %3613 = vmatpush.bf16.msra.mxu0 %v2868
        %3614 = vmatpush.bf16.msra.mxu0 %v2864
        %3615 = vmatpush.bf16.msra.mxu0 %v2860
        %3616 = vmatpush.bf16.msra.mxu0 %v2856
        %3617 = vmatpush.bf16.msra.mxu0 %v2852
        %3618 = vmatmul.bf16.gmra.mxu0 %v354
        %v3619 = vpop.f32.mrf.mxu0
        %v3620 = vadd.f32 %v3607, %v3619
        %v3621 = vpop.f32.mrf.mxu0
        %3622 = vdwg.mxu0
        %3623 = vmatpush.bf16.msra.mxu0 %v2912
        %3624 = vmatpush.bf16.msra.mxu0 %v2908
        %3625 = vmatpush.bf16.msra.mxu0 %v2904
        %3626 = vmatpush.bf16.msra.mxu0 %v2900
        %3627 = vmatpush.bf16.msra.mxu0 %v2896
        %3628 = vmatpush.bf16.msra.mxu0 %v2892
        %3629 = vmatpush.bf16.msra.mxu0 %v2888
        %3630 = vmatpush.bf16.msra.mxu0 %v2884
        %3631 = vmatmul.bf16.gmra.mxu0 %v355
        %v3632 = vpop.f32.mrf.mxu0
        %v3633 = vadd.f32 %v3620, %v3632
        %v3634 = vpop.f32.mrf.mxu0
        %3635 = vdwg.mxu0
        %3636 = vmatpush.bf16.msra.mxu0 %v2433
        %3637 = vmatpush.bf16.msra.mxu0 %v2429
        %3638 = vmatpush.bf16.msra.mxu0 %v2425
        %3639 = vmatpush.bf16.msra.mxu0 %v2421
        %3640 = vmatpush.bf16.msra.mxu0 %v2417
        %3641 = vmatpush.bf16.msra.mxu0 %v2413
        %3642 = vmatpush.bf16.msra.mxu0 %v2409
        %3643 = vmatpush.bf16.msra.mxu0 %v2405
        %3644 = vmatmul.bf16.gmra.mxu0 %v340
        %v3645 = vpop.f32.mrf.mxu0
        %v3646 = vadd.f32 0.0, %v3645
        %v3647 = vpop.f32.mrf.mxu0
        %3648 = vdwg.mxu0
        %3649 = vmatpush.bf16.msra.mxu0 %v2465
        %3650 = vmatpush.bf16.msra.mxu0 %v2461
        %3651 = vmatpush.bf16.msra.mxu0 %v2457
        %3652 = vmatpush.bf16.msra.mxu0 %v2453
        %3653 = vmatpush.bf16.msra.mxu0 %v2449
        %3654 = vmatpush.bf16.msra.mxu0 %v2445
        %3655 = vmatpush.bf16.msra.mxu0 %v2441
        %3656 = vmatpush.bf16.msra.mxu0 %v2437
        %3657 = vmatmul.bf16.gmra.mxu0 %v341
        %v3658 = vpop.f32.mrf.mxu0
        %v3659 = vadd.f32 %v3646, %v3658
        %v3660 = vpop.f32.mrf.mxu0
        %3661 = vdwg.mxu0
        %3662 = vmatpush.bf16.msra.mxu0 %v2497
        %3663 = vmatpush.bf16.msra.mxu0 %v2493
        %3664 = vmatpush.bf16.msra.mxu0 %v2489
        %3665 = vmatpush.bf16.msra.mxu0 %v2485
        %3666 = vmatpush.bf16.msra.mxu0 %v2481
        %3667 = vmatpush.bf16.msra.mxu0 %v2477
        %3668 = vmatpush.bf16.msra.mxu0 %v2473
        %3669 = vmatpush.bf16.msra.mxu0 %v2469
        %3670 = vmatmul.bf16.gmra.mxu0 %v342
        %v3671 = vpop.f32.mrf.mxu0
        %v3672 = vadd.f32 %v3659, %v3671
        %v3673 = vpop.f32.mrf.mxu0
        %3674 = vdwg.mxu0
        %3675 = vmatpush.bf16.msra.mxu0 %v2529
        %3676 = vmatpush.bf16.msra.mxu0 %v2525
        %3677 = vmatpush.bf16.msra.mxu0 %v2521
        %3678 = vmatpush.bf16.msra.mxu0 %v2517
        %3679 = vmatpush.bf16.msra.mxu0 %v2513
        %3680 = vmatpush.bf16.msra.mxu0 %v2509
        %3681 = vmatpush.bf16.msra.mxu0 %v2505
        %3682 = vmatpush.bf16.msra.mxu0 %v2501
        %3683 = vmatmul.bf16.gmra.mxu0 %v343
        %v3684 = vpop.f32.mrf.mxu0
        %v3685 = vadd.f32 %v3672, %v3684
        %v3686 = vpop.f32.mrf.mxu0
        %3687 = vdwg.mxu0
        %3688 = vmatpush.bf16.msra.mxu0 %v2561
        %3689 = vmatpush.bf16.msra.mxu0 %v2557
        %3690 = vmatpush.bf16.msra.mxu0 %v2553
        %3691 = vmatpush.bf16.msra.mxu0 %v2549
        %3692 = vmatpush.bf16.msra.mxu0 %v2545
        %3693 = vmatpush.bf16.msra.mxu0 %v2541
        %3694 = vmatpush.bf16.msra.mxu0 %v2537
        %3695 = vmatpush.bf16.msra.mxu0 %v2533
        %3696 = vmatmul.bf16.gmra.mxu0 %v344
        %v3697 = vpop.f32.mrf.mxu0
        %v3698 = vadd.f32 %v3685, %v3697
        %v3699 = vpop.f32.mrf.mxu0
        %3700 = vdwg.mxu0
        %3701 = vmatpush.bf16.msra.mxu0 %v2593
        %3702 = vmatpush.bf16.msra.mxu0 %v2589
        %3703 = vmatpush.bf16.msra.mxu0 %v2585
        %3704 = vmatpush.bf16.msra.mxu0 %v2581
        %3705 = vmatpush.bf16.msra.mxu0 %v2577
        %3706 = vmatpush.bf16.msra.mxu0 %v2573
        %3707 = vmatpush.bf16.msra.mxu0 %v2569
        %3708 = vmatpush.bf16.msra.mxu0 %v2565
        %3709 = vmatmul.bf16.gmra.mxu0 %v345
        %v3710 = vpop.f32.mrf.mxu0
        %v3711 = vadd.f32 %v3698, %v3710
        %v3712 = vpop.f32.mrf.mxu0
        %3713 = vdwg.mxu0
        %3714 = vmatpush.bf16.msra.mxu0 %v2625
        %3715 = vmatpush.bf16.msra.mxu0 %v2621
        %3716 = vmatpush.bf16.msra.mxu0 %v2617
        %3717 = vmatpush.bf16.msra.mxu0 %v2613
        %3718 = vmatpush.bf16.msra.mxu0 %v2609
        %3719 = vmatpush.bf16.msra.mxu0 %v2605
        %3720 = vmatpush.bf16.msra.mxu0 %v2601
        %3721 = vmatpush.bf16.msra.mxu0 %v2597
        %3722 = vmatmul.bf16.gmra.mxu0 %v346
        %v3723 = vpop.f32.mrf.mxu0
        %v3724 = vadd.f32 %v3711, %v3723
        %v3725 = vpop.f32.mrf.mxu0
        %3726 = vdwg.mxu0
        %3727 = vmatpush.bf16.msra.mxu0 %v2657
        %3728 = vmatpush.bf16.msra.mxu0 %v2653
        %3729 = vmatpush.bf16.msra.mxu0 %v2649
        %3730 = vmatpush.bf16.msra.mxu0 %v2645
        %3731 = vmatpush.bf16.msra.mxu0 %v2641
        %3732 = vmatpush.bf16.msra.mxu0 %v2637
        %3733 = vmatpush.bf16.msra.mxu0 %v2633
        %3734 = vmatpush.bf16.msra.mxu0 %v2629
        %3735 = vmatmul.bf16.gmra.mxu0 %v347
        %v3736 = vpop.f32.mrf.mxu0
        %v3737 = vadd.f32 %v3724, %v3736
        %v3738 = vpop.f32.mrf.mxu0
        %3739 = vdwg.mxu0
        %3740 = vmatpush.bf16.msra.mxu0 %v2689
        %3741 = vmatpush.bf16.msra.mxu0 %v2685
        %3742 = vmatpush.bf16.msra.mxu0 %v2681
        %3743 = vmatpush.bf16.msra.mxu0 %v2677
        %3744 = vmatpush.bf16.msra.mxu0 %v2673
        %3745 = vmatpush.bf16.msra.mxu0 %v2669
        %3746 = vmatpush.bf16.msra.mxu0 %v2665
        %3747 = vmatpush.bf16.msra.mxu0 %v2661
        %3748 = vmatmul.bf16.gmra.mxu0 %v348
        %v3749 = vpop.f32.mrf.mxu0
        %v3750 = vadd.f32 %v3737, %v3749
        %v3751 = vpop.f32.mrf.mxu0
        %3752 = vdwg.mxu0
        %3753 = vmatpush.bf16.msra.mxu0 %v2721
        %3754 = vmatpush.bf16.msra.mxu0 %v2717
        %3755 = vmatpush.bf16.msra.mxu0 %v2713
        %3756 = vmatpush.bf16.msra.mxu0 %v2709
        %3757 = vmatpush.bf16.msra.mxu0 %v2705
        %3758 = vmatpush.bf16.msra.mxu0 %v2701
        %3759 = vmatpush.bf16.msra.mxu0 %v2697
        %3760 = vmatpush.bf16.msra.mxu0 %v2693
        %3761 = vmatmul.bf16.gmra.mxu0 %v349
        %v3762 = vpop.f32.mrf.mxu0
        %v3763 = vadd.f32 %v3750, %v3762
        %v3764 = vpop.f32.mrf.mxu0
        %3765 = vdwg.mxu0
        %3766 = vmatpush.bf16.msra.mxu0 %v2753
        %3767 = vmatpush.bf16.msra.mxu0 %v2749
        %3768 = vmatpush.bf16.msra.mxu0 %v2745
        %3769 = vmatpush.bf16.msra.mxu0 %v2741
        %3770 = vmatpush.bf16.msra.mxu0 %v2737
        %3771 = vmatpush.bf16.msra.mxu0 %v2733
        %3772 = vmatpush.bf16.msra.mxu0 %v2729
        %3773 = vmatpush.bf16.msra.mxu0 %v2725
        %3774 = vmatmul.bf16.gmra.mxu0 %v350
        %v3775 = vpop.f32.mrf.mxu0
        %v3776 = vadd.f32 %v3763, %v3775
        %v3777 = vpop.f32.mrf.mxu0
        %3778 = vdwg.mxu0
        %3779 = vmatpush.bf16.msra.mxu0 %v2785
        %3780 = vmatpush.bf16.msra.mxu0 %v2781
        %3781 = vmatpush.bf16.msra.mxu0 %v2777
        %3782 = vmatpush.bf16.msra.mxu0 %v2773
        %3783 = vmatpush.bf16.msra.mxu0 %v2769
        %3784 = vmatpush.bf16.msra.mxu0 %v2765
        %3785 = vmatpush.bf16.msra.mxu0 %v2761
        %3786 = vmatpush.bf16.msra.mxu0 %v2757
        %3787 = vmatmul.bf16.gmra.mxu0 %v351
        %v3788 = vpop.f32.mrf.mxu0
        %v3789 = vadd.f32 %v3776, %v3788
        %v3790 = vpop.f32.mrf.mxu0
        %3791 = vdwg.mxu0
        %3792 = vmatpush.bf16.msra.mxu0 %v2817
        %3793 = vmatpush.bf16.msra.mxu0 %v2813
        %3794 = vmatpush.bf16.msra.mxu0 %v2809
        %3795 = vmatpush.bf16.msra.mxu0 %v2805
        %3796 = vmatpush.bf16.msra.mxu0 %v2801
        %3797 = vmatpush.bf16.msra.mxu0 %v2797
        %3798 = vmatpush.bf16.msra.mxu0 %v2793
        %3799 = vmatpush.bf16.msra.mxu0 %v2789
        %3800 = vmatmul.bf16.gmra.mxu0 %v352
        %v3801 = vpop.f32.mrf.mxu0
        %v3802 = vadd.f32 %v3789, %v3801
        %v3803 = vpop.f32.mrf.mxu0
        %3804 = vdwg.mxu0
        %3805 = vmatpush.bf16.msra.mxu0 %v2849
        %3806 = vmatpush.bf16.msra.mxu0 %v2845
        %3807 = vmatpush.bf16.msra.mxu0 %v2841
        %3808 = vmatpush.bf16.msra.mxu0 %v2837
        %3809 = vmatpush.bf16.msra.mxu0 %v2833
        %3810 = vmatpush.bf16.msra.mxu0 %v2829
        %3811 = vmatpush.bf16.msra.mxu0 %v2825
        %3812 = vmatpush.bf16.msra.mxu0 %v2821
        %3813 = vmatmul.bf16.gmra.mxu0 %v353
        %v3814 = vpop.f32.mrf.mxu0
        %v3815 = vadd.f32 %v3802, %v3814
        %v3816 = vpop.f32.mrf.mxu0
        %3817 = vdwg.mxu0
        %3818 = vmatpush.bf16.msra.mxu0 %v2881
        %3819 = vmatpush.bf16.msra.mxu0 %v2877
        %3820 = vmatpush.bf16.msra.mxu0 %v2873
        %3821 = vmatpush.bf16.msra.mxu0 %v2869
        %3822 = vmatpush.bf16.msra.mxu0 %v2865
        %3823 = vmatpush.bf16.msra.mxu0 %v2861
        %3824 = vmatpush.bf16.msra.mxu0 %v2857
        %3825 = vmatpush.bf16.msra.mxu0 %v2853
        %3826 = vmatmul.bf16.gmra.mxu0 %v354
        %v3827 = vpop.f32.mrf.mxu0
        %v3828 = vadd.f32 %v3815, %v3827
        %v3829 = vpop.f32.mrf.mxu0
        %3830 = vdwg.mxu0
        %3831 = vmatpush.bf16.msra.mxu0 %v2913
        %3832 = vmatpush.bf16.msra.mxu0 %v2909
        %3833 = vmatpush.bf16.msra.mxu0 %v2905
        %3834 = vmatpush.bf16.msra.mxu0 %v2901
        %3835 = vmatpush.bf16.msra.mxu0 %v2897
        %3836 = vmatpush.bf16.msra.mxu0 %v2893
        %3837 = vmatpush.bf16.msra.mxu0 %v2889
        %3838 = vmatpush.bf16.msra.mxu0 %v2885
        %3839 = vmatmul.bf16.gmra.mxu0 %v355
        %v3840 = vpop.f32.mrf.mxu0
        %v3841 = vadd.f32 %v3828, %v3840
        %v3842 = vpop.f32.mrf.mxu0
        %3843 = vdwg.mxu0
        %3844 = vmatpush.bf16.msra.mxu0 %v2434
        %3845 = vmatpush.bf16.msra.mxu0 %v2430
        %3846 = vmatpush.bf16.msra.mxu0 %v2426
        %3847 = vmatpush.bf16.msra.mxu0 %v2422
        %3848 = vmatpush.bf16.msra.mxu0 %v2418
        %3849 = vmatpush.bf16.msra.mxu0 %v2414
        %3850 = vmatpush.bf16.msra.mxu0 %v2410
        %3851 = vmatpush.bf16.msra.mxu0 %v2406
        %3852 = vmatmul.bf16.gmra.mxu0 %v340
        %v3853 = vpop.f32.mrf.mxu0
        %v3854 = vadd.f32 0.0, %v3853
        %v3855 = vpop.f32.mrf.mxu0
        %3856 = vdwg.mxu0
        %3857 = vmatpush.bf16.msra.mxu0 %v2466
        %3858 = vmatpush.bf16.msra.mxu0 %v2462
        %3859 = vmatpush.bf16.msra.mxu0 %v2458
        %3860 = vmatpush.bf16.msra.mxu0 %v2454
        %3861 = vmatpush.bf16.msra.mxu0 %v2450
        %3862 = vmatpush.bf16.msra.mxu0 %v2446
        %3863 = vmatpush.bf16.msra.mxu0 %v2442
        %3864 = vmatpush.bf16.msra.mxu0 %v2438
        %3865 = vmatmul.bf16.gmra.mxu0 %v341
        %v3866 = vpop.f32.mrf.mxu0
        %v3867 = vadd.f32 %v3854, %v3866
        %v3868 = vpop.f32.mrf.mxu0
        %3869 = vdwg.mxu0
        %3870 = vmatpush.bf16.msra.mxu0 %v2498
        %3871 = vmatpush.bf16.msra.mxu0 %v2494
        %3872 = vmatpush.bf16.msra.mxu0 %v2490
        %3873 = vmatpush.bf16.msra.mxu0 %v2486
        %3874 = vmatpush.bf16.msra.mxu0 %v2482
        %3875 = vmatpush.bf16.msra.mxu0 %v2478
        %3876 = vmatpush.bf16.msra.mxu0 %v2474
        %3877 = vmatpush.bf16.msra.mxu0 %v2470
        %3878 = vmatmul.bf16.gmra.mxu0 %v342
        %v3879 = vpop.f32.mrf.mxu0
        %v3880 = vadd.f32 %v3867, %v3879
        %v3881 = vpop.f32.mrf.mxu0
        %3882 = vdwg.mxu0
        %3883 = vmatpush.bf16.msra.mxu0 %v2530
        %3884 = vmatpush.bf16.msra.mxu0 %v2526
        %3885 = vmatpush.bf16.msra.mxu0 %v2522
        %3886 = vmatpush.bf16.msra.mxu0 %v2518
        %3887 = vmatpush.bf16.msra.mxu0 %v2514
        %3888 = vmatpush.bf16.msra.mxu0 %v2510
        %3889 = vmatpush.bf16.msra.mxu0 %v2506
        %3890 = vmatpush.bf16.msra.mxu0 %v2502
        %3891 = vmatmul.bf16.gmra.mxu0 %v343
        %v3892 = vpop.f32.mrf.mxu0
        %v3893 = vadd.f32 %v3880, %v3892
        %v3894 = vpop.f32.mrf.mxu0
        %3895 = vdwg.mxu0
        %3896 = vmatpush.bf16.msra.mxu0 %v2562
        %3897 = vmatpush.bf16.msra.mxu0 %v2558
        %3898 = vmatpush.bf16.msra.mxu0 %v2554
        %3899 = vmatpush.bf16.msra.mxu0 %v2550
        %3900 = vmatpush.bf16.msra.mxu0 %v2546
        %3901 = vmatpush.bf16.msra.mxu0 %v2542
        %3902 = vmatpush.bf16.msra.mxu0 %v2538
        %3903 = vmatpush.bf16.msra.mxu0 %v2534
        %3904 = vmatmul.bf16.gmra.mxu0 %v344
        %v3905 = vpop.f32.mrf.mxu0
        %v3906 = vadd.f32 %v3893, %v3905
        %v3907 = vpop.f32.mrf.mxu0
        %3908 = vdwg.mxu0
        %3909 = vmatpush.bf16.msra.mxu0 %v2594
        %3910 = vmatpush.bf16.msra.mxu0 %v2590
        %3911 = vmatpush.bf16.msra.mxu0 %v2586
        %3912 = vmatpush.bf16.msra.mxu0 %v2582
        %3913 = vmatpush.bf16.msra.mxu0 %v2578
        %3914 = vmatpush.bf16.msra.mxu0 %v2574
        %3915 = vmatpush.bf16.msra.mxu0 %v2570
        %3916 = vmatpush.bf16.msra.mxu0 %v2566
        %3917 = vmatmul.bf16.gmra.mxu0 %v345
        %v3918 = vpop.f32.mrf.mxu0
        %v3919 = vadd.f32 %v3906, %v3918
        %v3920 = vpop.f32.mrf.mxu0
        %3921 = vdwg.mxu0
        %3922 = vmatpush.bf16.msra.mxu0 %v2626
        %3923 = vmatpush.bf16.msra.mxu0 %v2622
        %3924 = vmatpush.bf16.msra.mxu0 %v2618
        %3925 = vmatpush.bf16.msra.mxu0 %v2614
        %3926 = vmatpush.bf16.msra.mxu0 %v2610
        %3927 = vmatpush.bf16.msra.mxu0 %v2606
        %3928 = vmatpush.bf16.msra.mxu0 %v2602
        %3929 = vmatpush.bf16.msra.mxu0 %v2598
        %3930 = vmatmul.bf16.gmra.mxu0 %v346
        %v3931 = vpop.f32.mrf.mxu0
        %v3932 = vadd.f32 %v3919, %v3931
        %v3933 = vpop.f32.mrf.mxu0
        %3934 = vdwg.mxu0
        %3935 = vmatpush.bf16.msra.mxu0 %v2658
        %3936 = vmatpush.bf16.msra.mxu0 %v2654
        %3937 = vmatpush.bf16.msra.mxu0 %v2650
        %3938 = vmatpush.bf16.msra.mxu0 %v2646
        %3939 = vmatpush.bf16.msra.mxu0 %v2642
        %3940 = vmatpush.bf16.msra.mxu0 %v2638
        %3941 = vmatpush.bf16.msra.mxu0 %v2634
        %3942 = vmatpush.bf16.msra.mxu0 %v2630
        %3943 = vmatmul.bf16.gmra.mxu0 %v347
        %v3944 = vpop.f32.mrf.mxu0
        %v3945 = vadd.f32 %v3932, %v3944
        %v3946 = vpop.f32.mrf.mxu0
        %3947 = vdwg.mxu0
        %3948 = vmatpush.bf16.msra.mxu0 %v2690
        %3949 = vmatpush.bf16.msra.mxu0 %v2686
        %3950 = vmatpush.bf16.msra.mxu0 %v2682
        %3951 = vmatpush.bf16.msra.mxu0 %v2678
        %3952 = vmatpush.bf16.msra.mxu0 %v2674
        %3953 = vmatpush.bf16.msra.mxu0 %v2670
        %3954 = vmatpush.bf16.msra.mxu0 %v2666
        %3955 = vmatpush.bf16.msra.mxu0 %v2662
        %3956 = vmatmul.bf16.gmra.mxu0 %v348
        %v3957 = vpop.f32.mrf.mxu0
        %v3958 = vadd.f32 %v3945, %v3957
        %v3959 = vpop.f32.mrf.mxu0
        %3960 = vdwg.mxu0
        %3961 = vmatpush.bf16.msra.mxu0 %v2722
        %3962 = vmatpush.bf16.msra.mxu0 %v2718
        %3963 = vmatpush.bf16.msra.mxu0 %v2714
        %3964 = vmatpush.bf16.msra.mxu0 %v2710
        %3965 = vmatpush.bf16.msra.mxu0 %v2706
        %3966 = vmatpush.bf16.msra.mxu0 %v2702
        %3967 = vmatpush.bf16.msra.mxu0 %v2698
        %3968 = vmatpush.bf16.msra.mxu0 %v2694
        %3969 = vmatmul.bf16.gmra.mxu0 %v349
        %v3970 = vpop.f32.mrf.mxu0
        %v3971 = vadd.f32 %v3958, %v3970
        %v3972 = vpop.f32.mrf.mxu0
        %3973 = vdwg.mxu0
        %3974 = vmatpush.bf16.msra.mxu0 %v2754
        %3975 = vmatpush.bf16.msra.mxu0 %v2750
        %3976 = vmatpush.bf16.msra.mxu0 %v2746
        %3977 = vmatpush.bf16.msra.mxu0 %v2742
        %3978 = vmatpush.bf16.msra.mxu0 %v2738
        %3979 = vmatpush.bf16.msra.mxu0 %v2734
        %3980 = vmatpush.bf16.msra.mxu0 %v2730
        %3981 = vmatpush.bf16.msra.mxu0 %v2726
        %3982 = vmatmul.bf16.gmra.mxu0 %v350
        %v3983 = vpop.f32.mrf.mxu0
        %v3984 = vadd.f32 %v3971, %v3983
        %v3985 = vpop.f32.mrf.mxu0
        %3986 = vdwg.mxu0
        %3987 = vmatpush.bf16.msra.mxu0 %v2786
        %3988 = vmatpush.bf16.msra.mxu0 %v2782
        %3989 = vmatpush.bf16.msra.mxu0 %v2778
        %3990 = vmatpush.bf16.msra.mxu0 %v2774
        %3991 = vmatpush.bf16.msra.mxu0 %v2770
        %3992 = vmatpush.bf16.msra.mxu0 %v2766
        %3993 = vmatpush.bf16.msra.mxu0 %v2762
        %3994 = vmatpush.bf16.msra.mxu0 %v2758
        %3995 = vmatmul.bf16.gmra.mxu0 %v351
        %v3996 = vpop.f32.mrf.mxu0
        %v3997 = vadd.f32 %v3984, %v3996
        %v3998 = vpop.f32.mrf.mxu0
        %3999 = vdwg.mxu0
        %4000 = vmatpush.bf16.msra.mxu0 %v2818
        %4001 = vmatpush.bf16.msra.mxu0 %v2814
        %4002 = vmatpush.bf16.msra.mxu0 %v2810
        %4003 = vmatpush.bf16.msra.mxu0 %v2806
        %4004 = vmatpush.bf16.msra.mxu0 %v2802
        %4005 = vmatpush.bf16.msra.mxu0 %v2798
        %4006 = vmatpush.bf16.msra.mxu0 %v2794
        %4007 = vmatpush.bf16.msra.mxu0 %v2790
        %4008 = vmatmul.bf16.gmra.mxu0 %v352
        %v4009 = vpop.f32.mrf.mxu0
        %v4010 = vadd.f32 %v3997, %v4009
        %v4011 = vpop.f32.mrf.mxu0
        %4012 = vdwg.mxu0
        %4013 = vmatpush.bf16.msra.mxu0 %v2850
        %4014 = vmatpush.bf16.msra.mxu0 %v2846
        %4015 = vmatpush.bf16.msra.mxu0 %v2842
        %4016 = vmatpush.bf16.msra.mxu0 %v2838
        %4017 = vmatpush.bf16.msra.mxu0 %v2834
        %4018 = vmatpush.bf16.msra.mxu0 %v2830
        %4019 = vmatpush.bf16.msra.mxu0 %v2826
        %4020 = vmatpush.bf16.msra.mxu0 %v2822
        %4021 = vmatmul.bf16.gmra.mxu0 %v353
        %v4022 = vpop.f32.mrf.mxu0
        %v4023 = vadd.f32 %v4010, %v4022
        %v4024 = vpop.f32.mrf.mxu0
        %4025 = vdwg.mxu0
        %4026 = vmatpush.bf16.msra.mxu0 %v2882
        %4027 = vmatpush.bf16.msra.mxu0 %v2878
        %4028 = vmatpush.bf16.msra.mxu0 %v2874
        %4029 = vmatpush.bf16.msra.mxu0 %v2870
        %4030 = vmatpush.bf16.msra.mxu0 %v2866
        %4031 = vmatpush.bf16.msra.mxu0 %v2862
        %4032 = vmatpush.bf16.msra.mxu0 %v2858
        %4033 = vmatpush.bf16.msra.mxu0 %v2854
        %4034 = vmatmul.bf16.gmra.mxu0 %v354
        %v4035 = vpop.f32.mrf.mxu0
        %v4036 = vadd.f32 %v4023, %v4035
        %v4037 = vpop.f32.mrf.mxu0
        %4038 = vdwg.mxu0
        %4039 = vmatpush.bf16.msra.mxu0 %v2914
        %4040 = vmatpush.bf16.msra.mxu0 %v2910
        %4041 = vmatpush.bf16.msra.mxu0 %v2906
        %4042 = vmatpush.bf16.msra.mxu0 %v2902
        %4043 = vmatpush.bf16.msra.mxu0 %v2898
        %4044 = vmatpush.bf16.msra.mxu0 %v2894
        %4045 = vmatpush.bf16.msra.mxu0 %v2890
        %4046 = vmatpush.bf16.msra.mxu0 %v2886
        %4047 = vmatmul.bf16.gmra.mxu0 %v355
        %v4048 = vpop.f32.mrf.mxu0
        %v4049 = vadd.f32 %v4036, %v4048
        %v4050 = vpop.f32.mrf.mxu0
        %4051 = vdwg.mxu0
        %4052 = vmatpush.bf16.msra.mxu0 %v2435
        %4053 = vmatpush.bf16.msra.mxu0 %v2431
        %4054 = vmatpush.bf16.msra.mxu0 %v2427
        %4055 = vmatpush.bf16.msra.mxu0 %v2423
        %4056 = vmatpush.bf16.msra.mxu0 %v2419
        %4057 = vmatpush.bf16.msra.mxu0 %v2415
        %4058 = vmatpush.bf16.msra.mxu0 %v2411
        %4059 = vmatpush.bf16.msra.mxu0 %v2407
        %4060 = vmatmul.bf16.gmra.mxu0 %v340
        %v4061 = vpop.f32.mrf.mxu0
        %v4062 = vadd.f32 0.0, %v4061
        %v4063 = vpop.f32.mrf.mxu0
        %4064 = vdwg.mxu0
        %4065 = vmatpush.bf16.msra.mxu0 %v2467
        %4066 = vmatpush.bf16.msra.mxu0 %v2463
        %4067 = vmatpush.bf16.msra.mxu0 %v2459
        %4068 = vmatpush.bf16.msra.mxu0 %v2455
        %4069 = vmatpush.bf16.msra.mxu0 %v2451
        %4070 = vmatpush.bf16.msra.mxu0 %v2447
        %4071 = vmatpush.bf16.msra.mxu0 %v2443
        %4072 = vmatpush.bf16.msra.mxu0 %v2439
        %4073 = vmatmul.bf16.gmra.mxu0 %v341
        %v4074 = vpop.f32.mrf.mxu0
        %v4075 = vadd.f32 %v4062, %v4074
        %v4076 = vpop.f32.mrf.mxu0
        %4077 = vdwg.mxu0
        %4078 = vmatpush.bf16.msra.mxu0 %v2499
        %4079 = vmatpush.bf16.msra.mxu0 %v2495
        %4080 = vmatpush.bf16.msra.mxu0 %v2491
        %4081 = vmatpush.bf16.msra.mxu0 %v2487
        %4082 = vmatpush.bf16.msra.mxu0 %v2483
        %4083 = vmatpush.bf16.msra.mxu0 %v2479
        %4084 = vmatpush.bf16.msra.mxu0 %v2475
        %4085 = vmatpush.bf16.msra.mxu0 %v2471
        %4086 = vmatmul.bf16.gmra.mxu0 %v342
        %v4087 = vpop.f32.mrf.mxu0
        %v4088 = vadd.f32 %v4075, %v4087
        %v4089 = vpop.f32.mrf.mxu0
        %4090 = vdwg.mxu0
        %4091 = vmatpush.bf16.msra.mxu0 %v2531
        %4092 = vmatpush.bf16.msra.mxu0 %v2527
        %4093 = vmatpush.bf16.msra.mxu0 %v2523
        %4094 = vmatpush.bf16.msra.mxu0 %v2519
        %4095 = vmatpush.bf16.msra.mxu0 %v2515
        %4096 = vmatpush.bf16.msra.mxu0 %v2511
        %4097 = vmatpush.bf16.msra.mxu0 %v2507
        %4098 = vmatpush.bf16.msra.mxu0 %v2503
        %4099 = vmatmul.bf16.gmra.mxu0 %v343
        %v4100 = vpop.f32.mrf.mxu0
        %v4101 = vadd.f32 %v4088, %v4100
        %v4102 = vpop.f32.mrf.mxu0
        %4103 = vdwg.mxu0
        %4104 = vmatpush.bf16.msra.mxu0 %v2563
        %4105 = vmatpush.bf16.msra.mxu0 %v2559
        %4106 = vmatpush.bf16.msra.mxu0 %v2555
        %4107 = vmatpush.bf16.msra.mxu0 %v2551
        %4108 = vmatpush.bf16.msra.mxu0 %v2547
        %4109 = vmatpush.bf16.msra.mxu0 %v2543
        %4110 = vmatpush.bf16.msra.mxu0 %v2539
        %4111 = vmatpush.bf16.msra.mxu0 %v2535
        %4112 = vmatmul.bf16.gmra.mxu0 %v344
        %v4113 = vpop.f32.mrf.mxu0
        %v4114 = vadd.f32 %v4101, %v4113
        %v4115 = vpop.f32.mrf.mxu0
        %4116 = vdwg.mxu0
        %4117 = vmatpush.bf16.msra.mxu0 %v2595
        %4118 = vmatpush.bf16.msra.mxu0 %v2591
        %4119 = vmatpush.bf16.msra.mxu0 %v2587
        %4120 = vmatpush.bf16.msra.mxu0 %v2583
        %4121 = vmatpush.bf16.msra.mxu0 %v2579
        %4122 = vmatpush.bf16.msra.mxu0 %v2575
        %4123 = vmatpush.bf16.msra.mxu0 %v2571
        %4124 = vmatpush.bf16.msra.mxu0 %v2567
        %4125 = vmatmul.bf16.gmra.mxu0 %v345
        %v4126 = vpop.f32.mrf.mxu0
        %v4127 = vadd.f32 %v4114, %v4126
        %v4128 = vpop.f32.mrf.mxu0
        %4129 = vdwg.mxu0
        %4130 = vmatpush.bf16.msra.mxu0 %v2627
        %4131 = vmatpush.bf16.msra.mxu0 %v2623
        %4132 = vmatpush.bf16.msra.mxu0 %v2619
        %4133 = vmatpush.bf16.msra.mxu0 %v2615
        %4134 = vmatpush.bf16.msra.mxu0 %v2611
        %4135 = vmatpush.bf16.msra.mxu0 %v2607
        %4136 = vmatpush.bf16.msra.mxu0 %v2603
        %4137 = vmatpush.bf16.msra.mxu0 %v2599
        %4138 = vmatmul.bf16.gmra.mxu0 %v346
        %v4139 = vpop.f32.mrf.mxu0
        %v4140 = vadd.f32 %v4127, %v4139
        %v4141 = vpop.f32.mrf.mxu0
        %4142 = vdwg.mxu0
        %4143 = vmatpush.bf16.msra.mxu0 %v2659
        %4144 = vmatpush.bf16.msra.mxu0 %v2655
        %4145 = vmatpush.bf16.msra.mxu0 %v2651
        %4146 = vmatpush.bf16.msra.mxu0 %v2647
        %4147 = vmatpush.bf16.msra.mxu0 %v2643
        %4148 = vmatpush.bf16.msra.mxu0 %v2639
        %4149 = vmatpush.bf16.msra.mxu0 %v2635
        %4150 = vmatpush.bf16.msra.mxu0 %v2631
        %4151 = vmatmul.bf16.gmra.mxu0 %v347
        %v4152 = vpop.f32.mrf.mxu0
        %v4153 = vadd.f32 %v4140, %v4152
        %v4154 = vpop.f32.mrf.mxu0
        %4155 = vdwg.mxu0
        %4156 = vmatpush.bf16.msra.mxu0 %v2691
        %4157 = vmatpush.bf16.msra.mxu0 %v2687
        %4158 = vmatpush.bf16.msra.mxu0 %v2683
        %4159 = vmatpush.bf16.msra.mxu0 %v2679
        %4160 = vmatpush.bf16.msra.mxu0 %v2675
        %4161 = vmatpush.bf16.msra.mxu0 %v2671
        %4162 = vmatpush.bf16.msra.mxu0 %v2667
        %4163 = vmatpush.bf16.msra.mxu0 %v2663
        %4164 = vmatmul.bf16.gmra.mxu0 %v348
        %v4165 = vpop.f32.mrf.mxu0
        %v4166 = vadd.f32 %v4153, %v4165
        %v4167 = vpop.f32.mrf.mxu0
        %4168 = vdwg.mxu0
        %4169 = vmatpush.bf16.msra.mxu0 %v2723
        %4170 = vmatpush.bf16.msra.mxu0 %v2719
        %4171 = vmatpush.bf16.msra.mxu0 %v2715
        %4172 = vmatpush.bf16.msra.mxu0 %v2711
        %4173 = vmatpush.bf16.msra.mxu0 %v2707
        %4174 = vmatpush.bf16.msra.mxu0 %v2703
        %4175 = vmatpush.bf16.msra.mxu0 %v2699
        %4176 = vmatpush.bf16.msra.mxu0 %v2695
        %4177 = vmatmul.bf16.gmra.mxu0 %v349
        %v4178 = vpop.f32.mrf.mxu0
        %v4179 = vadd.f32 %v4166, %v4178
        %v4180 = vpop.f32.mrf.mxu0
        %4181 = vdwg.mxu0
        %4182 = vmatpush.bf16.msra.mxu0 %v2755
        %4183 = vmatpush.bf16.msra.mxu0 %v2751
        %4184 = vmatpush.bf16.msra.mxu0 %v2747
        %4185 = vmatpush.bf16.msra.mxu0 %v2743
        %4186 = vmatpush.bf16.msra.mxu0 %v2739
        %4187 = vmatpush.bf16.msra.mxu0 %v2735
        %4188 = vmatpush.bf16.msra.mxu0 %v2731
        %4189 = vmatpush.bf16.msra.mxu0 %v2727
        %4190 = vmatmul.bf16.gmra.mxu0 %v350
        %v4191 = vpop.f32.mrf.mxu0
        %v4192 = vadd.f32 %v4179, %v4191
        %v4193 = vpop.f32.mrf.mxu0
        %4194 = vdwg.mxu0
        %4195 = vmatpush.bf16.msra.mxu0 %v2787
        %4196 = vmatpush.bf16.msra.mxu0 %v2783
        %4197 = vmatpush.bf16.msra.mxu0 %v2779
        %4198 = vmatpush.bf16.msra.mxu0 %v2775
        %4199 = vmatpush.bf16.msra.mxu0 %v2771
        %4200 = vmatpush.bf16.msra.mxu0 %v2767
        %4201 = vmatpush.bf16.msra.mxu0 %v2763
        %4202 = vmatpush.bf16.msra.mxu0 %v2759
        %4203 = vmatmul.bf16.gmra.mxu0 %v351
        %v4204 = vpop.f32.mrf.mxu0
        %v4205 = vadd.f32 %v4192, %v4204
        %v4206 = vpop.f32.mrf.mxu0
        %4207 = vdwg.mxu0
        %4208 = vmatpush.bf16.msra.mxu0 %v2819
        %4209 = vmatpush.bf16.msra.mxu0 %v2815
        %4210 = vmatpush.bf16.msra.mxu0 %v2811
        %4211 = vmatpush.bf16.msra.mxu0 %v2807
        %4212 = vmatpush.bf16.msra.mxu0 %v2803
        %4213 = vmatpush.bf16.msra.mxu0 %v2799
        %4214 = vmatpush.bf16.msra.mxu0 %v2795
        %4215 = vmatpush.bf16.msra.mxu0 %v2791
        %4216 = vmatmul.bf16.gmra.mxu0 %v352
        %v4217 = vpop.f32.mrf.mxu0
        %v4218 = vadd.f32 %v4205, %v4217
        %v4219 = vpop.f32.mrf.mxu0
        %4220 = vdwg.mxu0
        %4221 = vmatpush.bf16.msra.mxu0 %v2851
        %4222 = vmatpush.bf16.msra.mxu0 %v2847
        %4223 = vmatpush.bf16.msra.mxu0 %v2843
        %4224 = vmatpush.bf16.msra.mxu0 %v2839
        %4225 = vmatpush.bf16.msra.mxu0 %v2835
        %4226 = vmatpush.bf16.msra.mxu0 %v2831
        %4227 = vmatpush.bf16.msra.mxu0 %v2827
        %4228 = vmatpush.bf16.msra.mxu0 %v2823
        %4229 = vmatmul.bf16.gmra.mxu0 %v353
        %v4230 = vpop.f32.mrf.mxu0
        %v4231 = vadd.f32 %v4218, %v4230
        %v4232 = vpop.f32.mrf.mxu0
        %4233 = vdwg.mxu0
        %4234 = vmatpush.bf16.msra.mxu0 %v2883
        %4235 = vmatpush.bf16.msra.mxu0 %v2879
        %4236 = vmatpush.bf16.msra.mxu0 %v2875
        %4237 = vmatpush.bf16.msra.mxu0 %v2871
        %4238 = vmatpush.bf16.msra.mxu0 %v2867
        %4239 = vmatpush.bf16.msra.mxu0 %v2863
        %4240 = vmatpush.bf16.msra.mxu0 %v2859
        %4241 = vmatpush.bf16.msra.mxu0 %v2855
        %4242 = vmatmul.bf16.gmra.mxu0 %v354
        %v4243 = vpop.f32.mrf.mxu0
        %v4244 = vadd.f32 %v4231, %v4243
        %v4245 = vpop.f32.mrf.mxu0
        %4246 = vdwg.mxu0
        %4247 = vmatpush.bf16.msra.mxu0 %v2915
        %4248 = vmatpush.bf16.msra.mxu0 %v2911
        %4249 = vmatpush.bf16.msra.mxu0 %v2907
        %4250 = vmatpush.bf16.msra.mxu0 %v2903
        %4251 = vmatpush.bf16.msra.mxu0 %v2899
        %4252 = vmatpush.bf16.msra.mxu0 %v2895
        %4253 = vmatpush.bf16.msra.mxu0 %v2891
        %4254 = vmatpush.bf16.msra.mxu0 %v2887
        %4255 = vmatmul.bf16.gmra.mxu0 %v355
        %v4256 = vpop.f32.mrf.mxu0
        %v4257 = vadd.f32 %v4244, %v4256
        %v4258 = vpop.f32.mrf.mxu0
        %4259 = vdwg.mxu0
        %v4260 = vadd.f32 %v320, %v3633
        %v4261 = vadd.f32 %v321, %v3841
        %v4262 = vadd.f32 %v322, %v4049
        %v4263 = vadd.f32 %v323, %v4257
        %4264 = vst [vmem:[#allocation2] sm:$0xff] %v4260
        %4265 = vst [vmem:[#allocation2 + $0x8] sm:$0xff] %v4261
        %4266 = vst [vmem:[#allocation2 + $0x10] sm:$0xff] %v4262
        %4267 = vst [vmem:[#allocation2 + $0x18] sm:$0xff] %v4263
        %p4268 = scmp.eq.s32.totalorder %s27, 1
        // Predicated region
        $region49: #{classifier_forward.2} parent=31 // pred_check
          %p4269 = pneg %p4268
        $region50: #{classifier_forward.2} parent=31 // pred_check_branch
          %4271 = sbr.rel (%p4269) target = $region52
        $region51: #{classifier_forward.2} parent=31 // pred_region
          %v4272 = vld [vmem:[#allocation2] sm:$0xff]
          %v4273 = vld [vmem:[#allocation2 + $0x8] sm:$0xff]
          %v4274 = vld [vmem:[#allocation2 + $0x10] sm:$0xff]
          %v4275 = vld [vmem:[#allocation2 + $0x18] sm:$0xff]
          %v4276 = vld [vmem:[%s260] sm:$0xf]
          %v4278 = vperm.slane %v4276, 0
          %v4279 = vperm.slane %v4276, 1
          %v4280 = vperm.slane %v4276, 2
          %v4281 = vperm.slane %v4276, 3
          %v4286 = vadd.f32 %v4272, %v4278
          %v4287 = vadd.f32 %v4273, %v4279
          %v4288 = vadd.f32 %v4274, %v4280
          %v4289 = vadd.f32 %v4275, %v4281
          %v4290 = vmax.f32 %v4286, 0.0
          %v4291 = vmax.f32 %v4287, 0.0
          %v4292 = vmax.f32 %v4288, 0.0
          %v4293 = vmax.f32 %v4289, 0.0
          %4294 = vst [vmem:[%s310] sm:$0xff] %v4290
          %4295 = vst [vmem:[%s310 + $0x8] sm:$0xff] %v4291
          %4296 = vst [vmem:[%s310 + $0x10] sm:$0xff] %v4292
          %4297 = vst [vmem:[%s310 + $0x18] sm:$0xff] %v4293
        $region52: #{classifier_forward.2} parent=31 // pred_fallthru
          _
        %s4298 = smul.u32 4, %s25
        %p4299 = scmp.lt.s32.totalorder %s26, 0
        %s4300 = scalar_select %p4299, %s26, 0
        %p4301 = scmp.lt.s32.totalorder %s4298, 7
        %s4302 = scalar_select %p4301, %s4298, 7
        %s4303 = smul.addr %s4300, 8
        %s4304 = sadd.s32 %s4302, %s4303
        %s4305 = smul.addr %s4304, 8
        %s4306 = scalar_lea.vmem %s3, %s4305
        // Predicated region
        $region53: #{classifier_forward.2} parent=31 // pred_check
          %p4307 = pneg %p141
        $region54: #{classifier_forward.2} parent=31 // pred_check_branch
          %4309 = sbr.rel (%p4307) target = $region56
        $region55: #{classifier_forward.2} parent=31 // pred_region
          %s4310 = smul.u32 4, %s25
        $region56: #{classifier_forward.2} parent=31 // pred_fallthru
          _
      $region32: #{classifier_forward.2} parent=5 // pred_fallthru
        _
      %p4311 = scmp.le.s32.totalorder 2, %s15
      // Predicated region
      $region57: #{classifier_forward.2} parent=5 // pred_check
        %p4312 = pneg %p4311
      $region58: #{classifier_forward.2} parent=5 // pred_check_branch
        %4314 = sbr.rel (%p4312) target = $region60
      $region59: #{classifier_forward.2} parent=5 // pred_region
        %s4315 = ssub.s32 %s15, 2
        // Predicated region
        $region61: #{classifier_forward.2} parent=59 // pred_check
          %p4316 = pneg %p147
        $region62: #{classifier_forward.2} parent=59 // pred_check_branch
          %4318 = sbr.rel (%p4316) target = $region64
        $region63: #{classifier_forward.2} parent=59 // pred_region
          %s4319 = smul.u32 4, %s28
          %p4320 = scmp.lt.s32.totalorder %s29, 0
          %s4321 = scalar_select %p4320, %s29, 0
          %p4322 = scmp.lt.s32.totalorder %s4319, 7
          %s4323 = scalar_select %p4322, %s4319, 7
          %s4324 = smul.addr %s4321, 8
          %s4325 = sadd.s32 %s4323, %s4324
          %s4326 = smul.addr %s4325, 8
          %s4327 = scalar_lea.vmem %s3, %s4326
        $region64: #{classifier_forward.2} parent=59 // pred_fallthru
          _
      $region60: #{classifier_forward.2} parent=5 // pred_fallthru
        _
    $region6: #{classifier_forward.2} parent=1 // loop_footer
      %s19 = sadd.s32 1, %s15
    $region7: #{classifier_forward.2} parent=1 // loop_footer_branch
      %14 = sbr.rel target = $region3
    $region8: #{classifier_forward.2} parent=1 // loop_exit
      _
    %4328 = vsyncpa [#allocation4], 1
    %s4329 = scalar_lea.sflag [#allocation4], 1
    %4330 = vsyncpa %s4329, 1
    %4331 = vsyncpa [#allocation6], 1
    %s4332 = scalar_lea.sflag [#allocation6], 1
    %4333 = vsyncpa %s4332, 1

</llo_original>
